<compile_context>
chip_gen: v7x
topology: tpu7x:2x2x1
jax: 0.10.0
libtpu: 0.0.40
codegen_flags: <defaults>
</compile_context>

<pallas_src>
import math
import numpy as np
import jax
import jax.numpy as jnp
from jax import lax
from jax.experimental import pallas as pl
from jax.experimental.pallas import tpu as pltpu

EPS = 1e-5


def _bilinear_upsample_matrix(n: int) -> np.ndarray:
    """(2n, n) matrix implementing nn.Upsample(scale_factor=2, mode='bilinear',
    align_corners=False) along one axis (PyTorch half-pixel convention)."""
    a = np.zeros((2 * n, n), dtype=np.float32)
    for i in range(2 * n):
        src = max((i + 0.5) / 2.0 - 0.5, 0.0)
        i0 = int(math.floor(src))
        i1 = min(i0 + 1, n - 1)
        f = src - i0
        a[i, i0] += 1.0 - f
        a[i, i1] += f
    return a


def _bn_relu_lanes(v, g_fold, g_bcast, gamma_c, beta_c):
    """Training-mode BatchNorm + ReLU on a lane-folded (rows, W*C) f32 slab.

    One-pass stats: per-lane sum / sum-of-squares via VPU sublane reductions; only the
    tiny channel fold and lane broadcast run on the MXU.  Applied as one FMA + max.
    (A per-channel constant added upstream -- e.g. a dropped conv bias -- shifts the
    mean and cancels here; biased variance is unchanged.)
    """
    rows, lanes = v.shape
    ch = g_fold.shape[1]
    inv_count = 1.0 / float(rows * (lanes // ch))
    col_sum = jnp.sum(v, axis=0, keepdims=True)              # (1, lanes)  VPU/XLU
    col_sq = jnp.sum(v * v, axis=0, keepdims=True)           # (1, lanes)  same pass
    mean_c = jnp.dot(col_sum, g_fold, preferred_element_type=jnp.float32) * inv_count
    msq_c = jnp.dot(col_sq, g_fold, preferred_element_type=jnp.float32) * inv_count
    var_c = msq_c - mean_c * mean_c                          # biased, training-mode
    scale_c = gamma_c * lax.rsqrt(var_c + EPS)               # (1, ch)
    shift_c = beta_c - mean_c * scale_c                      # (1, ch)
    # TODO(synk): these two M=1 broadcasts could merge into one (2,ch)@(ch,lanes)
    # matmul; kept separate to avoid a sublane-unaligned stack of (1,ch) rows.
    scale_l = jnp.dot(scale_c, g_bcast, preferred_element_type=jnp.float32)  # (1, lanes)
    shift_l = jnp.dot(shift_c, g_bcast, preferred_element_type=jnp.float32)  # (1, lanes)
    return jnp.maximum(v * scale_l + shift_l, 0.0)


def make_decoder_block23(w1, w2, gamma1, beta1, gamma2, beta2, *, N, H, W):
    """w1: (Cin, C4), w2: (C4, Cout) 1x1-conv weights in matmul form (conv biases are
    dropped: exactly cancelled by training-mode BN).  Returns jitted forward(x_nchw)
    that emits NCHW like the PyTorch module."""
    f32 = np.float32
    w1 = np.asarray(w1, f32)
    w2 = np.asarray(w2, f32)
    Cin, C4 = w1.shape
    Cout = w2.shape[1]
    H2, W2 = 2 * H, 2 * W

    # ---- host-built (numpy) constants: nothing re-materialized on device per call ----
    a_w = _bilinear_upsample_matrix(W)                              # (W2, W)
    a_h = np.asarray(_bilinear_upsample_matrix(H), f32)             # (H2, H)
    # conv1 (1x1) fused with the bilinear W-upsample (w-major, channel-minor lanes):
    m1 = np.kron(a_w.T, w1).astype(f32)                             # (W*Cin,  W2*C4)
    # conv2 (1x1) as a block-diagonal matmul in the same lane layout:
    m2 = np.kron(np.eye(W2, dtype=f32), w2).astype(f32)             # (W2*C4,  W2*Cout)
    # 0/1 channel<->lane fold / broadcast matrices (exact in bf16 -> half the DMA).
    g1f = np.kron(np.ones((W2, 1), f32), np.eye(C4, dtype=f32))     # (W2*C4,   C4)
    g2f = np.kron(np.ones((W2, 1), f32), np.eye(Cout, dtype=f32))   # (W2*Cout, Cout)
    g1f_bf = g1f.astype(jnp.bfloat16)
    g1b_bf = g1f.T.astype(jnp.bfloat16)
    g2f_bf = g2f.astype(jnp.bfloat16)
    g2b_bf = g2f.T.astype(jnp.bfloat16)
    gam1 = np.asarray(gamma1, f32).reshape(1, C4)
    bet1 = np.asarray(beta1, f32).reshape(1, C4)
    gam2 = np.asarray(gamma2, f32).reshape(1, Cout)
    bet2 = np.asarray(beta2, f32).reshape(1, Cout)

    def kernel(x_ref, m1_ref, ah_ref, m2_ref, g1f_ref, g1b_ref, g2f_ref, g2b_ref,
               gam1_ref, bet1_ref, gam2_ref, bet2_ref, o_ref):
        fp = jnp.float32
        # conv1 (1x1) fused with the bilinear W-upsample: one lane-dense MXU matmul
        # (N*H, W*Cin) @ (W*Cin, W2*C4) -> (N*H, W2*C4)
        # TODO(synk): at production sizes cast these matmul operands to bf16 (native
        # MXU dtype on v5e/v6e, halves weight DMA); kept f32 here to hold the tight
        # f32 test tolerance at this DMA/launch-bound toy shape.
        t = jnp.dot(x_ref[...], m1_ref[...], preferred_element_type=fp)
        # bilinear H-upsample, per sample (no kron(eye(N), a_h) zero inflation):
        ah = ah_ref[...]
        u = jnp.concatenate(
            [jnp.dot(ah, t[n * H:(n + 1) * H, :], preferred_element_type=fp)
             for n in range(N)],
            axis=0)                                              # (N*H2, W2*C4)
        # norm1 + relu1 (conv1 bias omitted: cancelled by BN mean subtraction)
        u = _bn_relu_lanes(u, g1f_ref[...].astype(fp), g1b_ref[...].astype(fp),
                           gam1_ref[...], bet1_ref[...])
        # conv2 (1x1) block-diagonal matmul, still lane-dense:
        z = jnp.dot(u, m2_ref[...], preferred_element_type=fp)   # (N*H2, W2*Cout)
        # norm2 + relu2, then one full-lane (last dim = W2*Cout) store
        o_ref[...] = _bn_relu_lanes(z, g2f_ref[...].astype(fp), g2b_ref[...].astype(fp),
                                    gam2_ref[...], bet2_ref[...])

    vmem = pl.BlockSpec(memory_space=pltpu.MemorySpace.VMEM)
    call = pl.pallas_call(
        kernel,
        out_shape=jax.ShapeDtypeStruct((N * H2, W2 * Cout), jnp.float32),
        in_specs=[vmem] * 12,
        out_specs=vmem,
        compiler_params=pltpu.CompilerParams(vmem_limit_bytes=16 * 1024 * 1024),
    )

    @jax.jit
    def forward(x_nchw):
        # Lane-dense input fold: NCHW -> NHWC -> (N*H, W*Cin)
        x_fold = jnp.transpose(x_nchw, (0, 2, 3, 1)).reshape(N * H, W * Cin)
        out_fold = call(x_fold, m1, a_h, m2, g1f_bf, g1b_bf, g2f_bf, g2b_bf,
                        gam1, bet1, gam2, bet2)
        # Un-fold and return NCHW, matching the PyTorch module's output layout.
        return jnp.transpose(out_fold.reshape(N, H2, W2, Cout), (0, 3, 1, 2))

    return forward


# ----------------------------- pure-JAX reference -----------------------------

def _upsample2x_ref(x_nhwc):
    """Independent bilinear 2x upsample (align_corners=False), NHWC layout."""
    def up1(v, axis):
        n = v.shape[axis]
        first = lax.slice_in_dim(v, 0, 1, axis=axis)
        last = lax.slice_in_dim(v, n - 1, n, axis=axis)
        prev = jnp.concatenate([first, lax.slice_in_dim(v, 0, n - 1, axis=axis)], axis=axis)
        nxt = jnp.concatenate([lax.slice_in_dim(v, 1, n, axis=axis), last], axis=axis)
        even = 0.25 * prev + 0.75 * v
        odd = 0.75 * v + 0.25 * nxt
        out = jnp.stack([even, odd], axis=axis + 1)
        shp = list(v.shape)
        shp[axis] = 2 * n
        return out.reshape(shp)
    return up1(up1(x_nhwc, 1), 2)


def reference(x_nchw, w1, b1, g1, be1, w2, b2, g2, be2):
    def bn_relu(v, g, b):
        mu = v.mean(axis=(0, 1, 2), keepdims=True)
        var = ((v - mu) ** 2).mean(axis=(0, 1, 2), keepdims=True)
        r = lambda p: p.reshape(1, 1, 1, -1)
        return jnp.maximum((v - mu) / jnp.sqrt(var + EPS) * r(g) + r(b), 0.0)

    x = jnp.transpose(x_nchw, (0, 2, 3, 1))          # NHWC
    x = _upsample2x_ref(x)
    y = jnp.einsum('nhwc,cd->nhwd', x, w1) + b1.reshape(1, 1, 1, -1)
    y = bn_relu(y, g1, be1)
    z = jnp.einsum('nhwc,cd->nhwd', y, w2) + b2.reshape(1, 1, 1, -1)
    z = bn_relu(z, g2, be2)
    return jnp.transpose(z, (0, 3, 1, 2))            # NCHW, like the PyTorch module


if __name__ == "__main__":
    # DecoderBlock23(in_channels=16, n_filters=32, scal=4) => mid channels = 4
    N, Cin, H, W = 2, 16, 16, 16
    C4, Cout = Cin // 4, 32

    key = jax.random.PRNGKey(0)
    k_x, k_w1, k_b1, k_w2, k_b2 = jax.random.split(key, 5)

    # PyTorch-style NCHW input.
    x_nchw = jax.random.normal(k_x, (N, Cin, H, W), dtype=jnp.float32)

    # Conv2d 1x1 weights (out,in,1,1) -> matmul form (in,out).  Biases only feed the
    # reference: they cancel exactly inside training-mode BatchNorm.
    w1 = (jax.random.normal(k_w1, (C4, Cin), dtype=jnp.float32) / jnp.sqrt(Cin)).T
    b1 = jax.random.normal(k_b1, (C4,), dtype=jnp.float32) * 0.1
    w2 = (jax.random.normal(k_w2, (Cout, C4), dtype=jnp.float32) / jnp.sqrt(C4)).T
    b2 = jax.random.normal(k_b2, (Cout,), dtype=jnp.float32) * 0.1
    # BatchNorm2d default init: weight (gamma) = 1, bias (beta) = 0.
    g1, be1 = jnp.ones((C4,), jnp.float32), jnp.zeros((C4,), jnp.float32)
    g2, be2 = jnp.ones((Cout,), jnp.float32), jnp.zeros((Cout,), jnp.float32)

    forward = make_decoder_block23(w1, w2, g1, be1, g2, be2, N=N, H=H, W=W)
    out = jax.block_until_ready(forward(x_nchw))

    ref = reference(x_nchw, w1, b1, g1, be1, w2, b2, g2, be2)
    assert out.shape == (N, Cout, 2 * H, 2 * W)
    err = float(jnp.max(jnp.abs(out - ref)))
    assert jnp.allclose(out, ref, rtol=1e-3, atol=1e-3), err

    print("KERNEL_OK")
</pallas_src>

<mosaic_0001>
module attributes {stable_mosaic.version = 11 : i64} {
  func.func @kernel(%arg0: memref<32x256xf32, #tpu.memory_space<vmem>>, %arg1: memref<256x128xf32, #tpu.memory_space<vmem>>, %arg2: memref<32x16xf32, #tpu.memory_space<vmem>>, %arg3: memref<128x1024xf32, #tpu.memory_space<vmem>>, %arg4: memref<128x4xbf16, #tpu.memory_space<vmem>>, %arg5: memref<4x128xbf16, #tpu.memory_space<vmem>>, %arg6: memref<1024x32xbf16, #tpu.memory_space<vmem>>, %arg7: memref<32x1024xbf16, #tpu.memory_space<vmem>>, %arg8: memref<1x4xf32, #tpu.memory_space<vmem>>, %arg9: memref<1x4xf32, #tpu.memory_space<vmem>>, %arg10: memref<1x32xf32, #tpu.memory_space<vmem>>, %arg11: memref<1x32xf32, #tpu.memory_space<vmem>>, %arg12: memref<64x1024xf32, #tpu.memory_space<vmem>>) attributes {dimension_semantics = [], scalar_prefetch = 0 : i64, scratch_operands = 0 : i64, tpu.core_type = #tpu.core_type<tc>} {
    %c0 = arith.constant 0 : index
    %c0_0 = arith.constant 0 : index
    %0 = vector.load %arg0[%c0, %c0_0] : memref<32x256xf32, #tpu.memory_space<vmem>>, vector<32x256xf32>
    %c0_1 = arith.constant 0 : index
    %c0_2 = arith.constant 0 : index
    %1 = vector.load %arg1[%c0_1, %c0_2] : memref<256x128xf32, #tpu.memory_space<vmem>>, vector<256x128xf32>
    %cst = arith.constant dense<0.000000e+00> : vector<32x128xf32>
    %2 = tpu.matmul %0, %1, %cst {dimension_numbers = #tpu.dot_dimension_numbers<[1], [0], [0], [1], [0, 0, 1, 1], [], []>} : vector<32x256xf32>, vector<256x128xf32>, vector<32x128xf32> -> vector<32x128xf32>
    %c0_3 = arith.constant 0 : index
    %c0_4 = arith.constant 0 : index
    %3 = vector.load %arg2[%c0_3, %c0_4] : memref<32x16xf32, #tpu.memory_space<vmem>>, vector<32x16xf32>
    %4 = vector.extract_strided_slice %2 {offsets = [0, 0], sizes = [16, 128], strides = [1, 1]} : vector<32x128xf32> to vector<16x128xf32>
    %cst_5 = arith.constant dense<0.000000e+00> : vector<32x128xf32>
    %5 = tpu.matmul %3, %4, %cst_5 {dimension_numbers = #tpu.dot_dimension_numbers<[1], [0], [0], [1], [0, 0, 1, 1], [], []>} : vector<32x16xf32>, vector<16x128xf32>, vector<32x128xf32> -> vector<32x128xf32>
    %6 = vector.extract_strided_slice %2 {offsets = [16, 0], sizes = [16, 128], strides = [1, 1]} : vector<32x128xf32> to vector<16x128xf32>
    %cst_6 = arith.constant dense<0.000000e+00> : vector<32x128xf32>
    %7 = tpu.matmul %3, %6, %cst_6 {dimension_numbers = #tpu.dot_dimension_numbers<[1], [0], [0], [1], [0, 0, 1, 1], [], []>} : vector<32x16xf32>, vector<16x128xf32>, vector<32x128xf32> -> vector<32x128xf32>
    %8 = tpu.concatenate %5, %7 in 0 : vector<32x128xf32>, vector<32x128xf32> -> vector<64x128xf32>
    %c0_7 = arith.constant 0 : index
    %c0_8 = arith.constant 0 : index
    %9 = vector.load %arg4[%c0_7, %c0_8] : memref<128x4xbf16, #tpu.memory_space<vmem>>, vector<128x4xbf16>
    %10 = arith.extf %9 : vector<128x4xbf16> to vector<128x4xf32>
    %c0_9 = arith.constant 0 : index
    %c0_10 = arith.constant 0 : index
    %11 = vector.load %arg5[%c0_9, %c0_10] : memref<4x128xbf16, #tpu.memory_space<vmem>>, vector<4x128xbf16>
    %12 = arith.extf %11 : vector<4x128xbf16> to vector<4x128xf32>
    %c0_11 = arith.constant 0 : index
    %c0_12 = arith.constant 0 : index
    %13 = vector.load %arg8[%c0_11, %c0_12] : memref<1x4xf32, #tpu.memory_space<vmem>>, vector<1x4xf32>
    %c0_13 = arith.constant 0 : index
    %c0_14 = arith.constant 0 : index
    %14 = vector.load %arg9[%c0_13, %c0_14] : memref<1x4xf32, #tpu.memory_space<vmem>>, vector<1x4xf32>
    %cst_15 = arith.constant dense<0.000000e+00> : vector<128xf32>
    %15 = vector.multi_reduction <add>, %8, %cst_15 [0] : vector<64x128xf32> to vector<128xf32>
    %16 = vector.shape_cast %15 : vector<128xf32> to vector<1x128xf32>
    %17 = arith.mulf %8, %8 : vector<64x128xf32>
    %cst_16 = arith.constant dense<0.000000e+00> : vector<128xf32>
    %18 = vector.multi_reduction <add>, %17, %cst_16 [0] : vector<64x128xf32> to vector<128xf32>
    %19 = vector.shape_cast %18 : vector<128xf32> to vector<1x128xf32>
    %cst_17 = arith.constant dense<0.000000e+00> : vector<1x4xf32>
    %20 = tpu.matmul %16, %10, %cst_17 {dimension_numbers = #tpu.dot_dimension_numbers<[1], [0], [0], [1], [0, 0, 1, 1], [], []>} : vector<1x128xf32>, vector<128x4xf32>, vector<1x4xf32> -> vector<1x4xf32>
    %cst_18 = arith.constant 4.8828125E-4 : f32
    %21 = vector.broadcast %cst_18 : f32 to vector<1x4xf32>
    %22 = arith.mulf %20, %21 : vector<1x4xf32>
    %cst_19 = arith.constant dense<0.000000e+00> : vector<1x4xf32>
    %23 = tpu.matmul %19, %10, %cst_19 {dimension_numbers = #tpu.dot_dimension_numbers<[1], [0], [0], [1], [0, 0, 1, 1], [], []>} : vector<1x128xf32>, vector<128x4xf32>, vector<1x4xf32> -> vector<1x4xf32>
    %cst_20 = arith.constant 4.8828125E-4 : f32
    %24 = vector.broadcast %cst_20 : f32 to vector<1x4xf32>
    %25 = arith.mulf %23, %24 : vector<1x4xf32>
    %26 = arith.mulf %22, %22 : vector<1x4xf32>
    %27 = arith.subf %25, %26 : vector<1x4xf32>
    %cst_21 = arith.constant 9.99999974E-6 : f32
    %28 = vector.broadcast %cst_21 : f32 to vector<1x4xf32>
    %29 = arith.addf %27, %28 : vector<1x4xf32>
    %30 = math.rsqrt %29 : vector<1x4xf32>
    %31 = arith.mulf %13, %30 : vector<1x4xf32>
    %32 = arith.mulf %22, %31 : vector<1x4xf32>
    %33 = arith.subf %14, %32 : vector<1x4xf32>
    %cst_22 = arith.constant dense<0.000000e+00> : vector<1x128xf32>
    %34 = tpu.matmul %31, %12, %cst_22 {dimension_numbers = #tpu.dot_dimension_numbers<[1], [0], [0], [1], [0, 0, 1, 1], [], []>} : vector<1x4xf32>, vector<4x128xf32>, vector<1x128xf32> -> vector<1x128xf32>
    %cst_23 = arith.constant dense<0.000000e+00> : vector<1x128xf32>
    %35 = tpu.matmul %33, %12, %cst_23 {dimension_numbers = #tpu.dot_dimension_numbers<[1], [0], [0], [1], [0, 0, 1, 1], [], []>} : vector<1x4xf32>, vector<4x128xf32>, vector<1x128xf32> -> vector<1x128xf32>
    %36 = vector.broadcast %34 : vector<1x128xf32> to vector<64x128xf32>
    %37 = arith.mulf %8, %36 : vector<64x128xf32>
    %38 = vector.broadcast %35 : vector<1x128xf32> to vector<64x128xf32>
    %39 = arith.addf %37, %38 : vector<64x128xf32>
    %cst_24 = arith.constant 0.000000e+00 : f32
    %40 = vector.broadcast %cst_24 : f32 to vector<64x128xf32>
    %41 = arith.maximumf %39, %40 : vector<64x128xf32>
    %c0_25 = arith.constant 0 : index
    %c0_26 = arith.constant 0 : index
    %42 = vector.load %arg3[%c0_25, %c0_26] : memref<128x1024xf32, #tpu.memory_space<vmem>>, vector<128x1024xf32>
    %cst_27 = arith.constant dense<0.000000e+00> : vector<64x1024xf32>
    %43 = tpu.matmul %41, %42, %cst_27 {dimension_numbers = #tpu.dot_dimension_numbers<[1], [0], [0], [1], [0, 0, 1, 1], [], []>} : vector<64x128xf32>, vector<128x1024xf32>, vector<64x1024xf32> -> vector<64x1024xf32>
    %c0_28 = arith.constant 0 : index
    %c0_29 = arith.constant 0 : index
    %44 = vector.load %arg6[%c0_28, %c0_29] : memref<1024x32xbf16, #tpu.memory_space<vmem>>, vector<1024x32xbf16>
    %45 = arith.extf %44 : vector<1024x32xbf16> to vector<1024x32xf32>
    %c0_30 = arith.constant 0 : index
    %c0_31 = arith.constant 0 : index
    %46 = vector.load %arg7[%c0_30, %c0_31] : memref<32x1024xbf16, #tpu.memory_space<vmem>>, vector<32x1024xbf16>
    %47 = arith.extf %46 : vector<32x1024xbf16> to vector<32x1024xf32>
    %c0_32 = arith.constant 0 : index
    %c0_33 = arith.constant 0 : index
    %48 = vector.load %arg10[%c0_32, %c0_33] : memref<1x32xf32, #tpu.memory_space<vmem>>, vector<1x32xf32>
    %c0_34 = arith.constant 0 : index
    %c0_35 = arith.constant 0 : index
    %49 = vector.load %arg11[%c0_34, %c0_35] : memref<1x32xf32, #tpu.memory_space<vmem>>, vector<1x32xf32>
    %cst_36 = arith.constant dense<0.000000e+00> : vector<1024xf32>
    %50 = vector.multi_reduction <add>, %43, %cst_36 [0] : vector<64x1024xf32> to vector<1024xf32>
    %51 = vector.shape_cast %50 : vector<1024xf32> to vector<1x1024xf32>
    %52 = arith.mulf %43, %43 : vector<64x1024xf32>
    %cst_37 = arith.constant dense<0.000000e+00> : vector<1024xf32>
    %53 = vector.multi_reduction <add>, %52, %cst_37 [0] : vector<64x1024xf32> to vector<1024xf32>
    %54 = vector.shape_cast %53 : vector<1024xf32> to vector<1x1024xf32>
    %cst_38 = arith.constant dense<0.000000e+00> : vector<1x32xf32>
    %55 = tpu.matmul %51, %45, %cst_38 {dimension_numbers = #tpu.dot_dimension_numbers<[1], [0], [0], [1], [0, 0, 1, 1], [], []>} : vector<1x1024xf32>, vector<1024x32xf32>, vector<1x32xf32> -> vector<1x32xf32>
    %cst_39 = arith.constant 4.8828125E-4 : f32
    %56 = vector.broadcast %cst_39 : f32 to vector<1x32xf32>
    %57 = arith.mulf %55, %56 : vector<1x32xf32>
    %cst_40 = arith.constant dense<0.000000e+00> : vector<1x32xf32>
    %58 = tpu.matmul %54, %45, %cst_40 {dimension_numbers = #tpu.dot_dimension_numbers<[1], [0], [0], [1], [0, 0, 1, 1], [], []>} : vector<1x1024xf32>, vector<1024x32xf32>, vector<1x32xf32> -> vector<1x32xf32>
    %cst_41 = arith.constant 4.8828125E-4 : f32
    %59 = vector.broadcast %cst_41 : f32 to vector<1x32xf32>
    %60 = arith.mulf %58, %59 : vector<1x32xf32>
    %61 = arith.mulf %57, %57 : vector<1x32xf32>
    %62 = arith.subf %60, %61 : vector<1x32xf32>
    %cst_42 = arith.constant 9.99999974E-6 : f32
    %63 = vector.broadcast %cst_42 : f32 to vector<1x32xf32>
    %64 = arith.addf %62, %63 : vector<1x32xf32>
    %65 = math.rsqrt %64 : vector<1x32xf32>
    %66 = arith.mulf %48, %65 : vector<1x32xf32>
    %67 = arith.mulf %57, %66 : vector<1x32xf32>
    %68 = arith.subf %49, %67 : vector<1x32xf32>
    %cst_43 = arith.constant dense<0.000000e+00> : vector<1x1024xf32>
    %69 = tpu.matmul %66, %47, %cst_43 {dimension_numbers = #tpu.dot_dimension_numbers<[1], [0], [0], [1], [0, 0, 1, 1], [], []>} : vector<1x32xf32>, vector<32x1024xf32>, vector<1x1024xf32> -> vector<1x1024xf32>
    %cst_44 = arith.constant dense<0.000000e+00> : vector<1x1024xf32>
    %70 = tpu.matmul %68, %47, %cst_44 {dimension_numbers = #tpu.dot_dimension_numbers<[1], [0], [0], [1], [0, 0, 1, 1], [], []>} : vector<1x32xf32>, vector<32x1024xf32>, vector<1x1024xf32> -> vector<1x1024xf32>
    %71 = vector.broadcast %69 : vector<1x1024xf32> to vector<64x1024xf32>
    %72 = arith.mulf %43, %71 : vector<64x1024xf32>
    %73 = vector.broadcast %70 : vector<1x1024xf32> to vector<64x1024xf32>
    %74 = arith.addf %72, %73 : vector<64x1024xf32>
    %cst_45 = arith.constant 0.000000e+00 : f32
    %75 = vector.broadcast %cst_45 : f32 to vector<64x1024xf32>
    %76 = arith.maximumf %74, %75 : vector<64x1024xf32>
    %c0_46 = arith.constant 0 : index
    %c0_47 = arith.constant 0 : index
    %77 = vector.load %arg12[%c0_46, %c0_47] : memref<64x1024xf32, #tpu.memory_space<vmem>>, vector<64x1024xf32>
    tpu.vector_store %arg12[%c0_46, %c0_47], %76 {strides = array<i32>} : memref<64x1024xf32, #tpu.memory_space<vmem>>, vector<64x1024xf32>,
    return
  }
}

</mosaic_0001>

<llo_original>
// kernel: forward.1
$region0: #{forward.1}
  #allocation0 [shape = 'u32[]', space=smem, size = 0x4, offset = 0x4, fixed_abs, tag = 'smem constant byte address 0x4 - core index']
  #allocation1 [shape = 'u32[144,128]{1,0:T(1,128)}', space=vmem, size = 0x12000, scoped, tag = 'internal scratch']
  %s0 = inlined_call_operand.vmem [shape: f32[32,256], index: 0, kind: input, shape index: {}]
  %s1 = inlined_call_operand.vmem [shape: f32[256,128], index: 1, kind: input, shape index: {}]
  %s2 = inlined_call_operand.vmem [shape: f32[32,16], index: 2, kind: input, shape index: {}]
  %s3 = inlined_call_operand.vmem [shape: f32[128,1024], index: 3, kind: input, shape index: {}]
  %s4 = inlined_call_operand.vmem [shape: bf16[128,4], index: 4, kind: input, shape index: {}]
  %s5 = inlined_call_operand.vmem [shape: bf16[4,128], index: 5, kind: input, shape index: {}]
  %s6 = inlined_call_operand.vmem [shape: bf16[1024,32], index: 6, kind: input, shape index: {}]
  %s7 = inlined_call_operand.vmem [shape: bf16[32,1024], index: 7, kind: input, shape index: {}]
  %s8 = inlined_call_operand.vmem [shape: f32[1,4], index: 8, kind: input, shape index: {}]
  %s9 = inlined_call_operand.vmem [shape: f32[1,4], index: 9, kind: input, shape index: {}]
  %s10 = inlined_call_operand.vmem [shape: f32[1,32], index: 10, kind: input, shape index: {}]
  %s11 = inlined_call_operand.vmem [shape: f32[1,32], index: 11, kind: input, shape index: {}]
  %s12 = inlined_call_operand.vmem [shape: f32[64,1024], index: 12, kind: output, shape index: {}]
  %s13 = sld [smem:[#allocation0]]
  $region58: #{forward.1} parent=0
    _
  %s15 = ssub.s32 1, %s13
  %s16 = scalar_select 0, %s15, %s13
  // Predicated region
  $region2: #{forward.1} parent=0 // pred_check
    _
  $region3: #{forward.1} parent=0 // pred_check_branch
    %18 = sbr.rel (0) target = $region5
  $region4: #{forward.1} parent=0 // pred_region
    _
  $region5: #{forward.1} parent=0 // pred_fallthru
    _
  // Predicated region
  $region6: #{forward.1} parent=0 // pred_check
    _
  $region7: #{forward.1} parent=0 // pred_check_branch
    %20 = sbr.rel (0) target = $region9
  $region8: #{forward.1} parent=0 // pred_region
    _
  $region9: #{forward.1} parent=0 // pred_fallthru
    _
  // Predicated region
  $region10: #{forward.1} parent=0 // pred_check
    _
  $region11: #{forward.1} parent=0 // pred_check_branch
    %22 = sbr.rel (0) target = $region13
  $region12: #{forward.1} parent=0 // pred_region
    _
  $region13: #{forward.1} parent=0 // pred_fallthru
    _
  // Predicated region
  $region14: #{forward.1} parent=0 // pred_check
    _
  $region15: #{forward.1} parent=0 // pred_check_branch
    %24 = sbr.rel (0) target = $region17
  $region16: #{forward.1} parent=0 // pred_region
    _
  $region17: #{forward.1} parent=0 // pred_fallthru
    _
  // Predicated region
  $region18: #{forward.1} parent=0 // pred_check
    _
  $region19: #{forward.1} parent=0 // pred_check_branch
    %26 = sbr.rel (0) target = $region21
  $region20: #{forward.1} parent=0 // pred_region
    _
  $region21: #{forward.1} parent=0 // pred_fallthru
    _
  // Predicated region
  $region22: #{forward.1} parent=0 // pred_check
    _
  $region23: #{forward.1} parent=0 // pred_check_branch
    %28 = sbr.rel (0) target = $region25
  $region24: #{forward.1} parent=0 // pred_region
    _
  $region25: #{forward.1} parent=0 // pred_fallthru
    _
  // Predicated region
  $region26: #{forward.1} parent=0 // pred_check
    _
  $region27: #{forward.1} parent=0 // pred_check_branch
    %30 = sbr.rel (0) target = $region29
  $region28: #{forward.1} parent=0 // pred_region
    _
  $region29: #{forward.1} parent=0 // pred_fallthru
    _
  // Predicated region
  $region30: #{forward.1} parent=0 // pred_check
    _
  $region31: #{forward.1} parent=0 // pred_check_branch
    %32 = sbr.rel (0) target = $region33
  $region32: #{forward.1} parent=0 // pred_region
    _
  $region33: #{forward.1} parent=0 // pred_fallthru
    _
  // Predicated region
  $region34: #{forward.1} parent=0 // pred_check
    _
  $region35: #{forward.1} parent=0 // pred_check_branch
    %34 = sbr.rel (0) target = $region37
  $region36: #{forward.1} parent=0 // pred_region
    _
  $region37: #{forward.1} parent=0 // pred_fallthru
    _
  // Predicated region
  $region38: #{forward.1} parent=0 // pred_check
    _
  $region39: #{forward.1} parent=0 // pred_check_branch
    %36 = sbr.rel (0) target = $region41
  $region40: #{forward.1} parent=0 // pred_region
    _
  $region41: #{forward.1} parent=0 // pred_fallthru
    _
  // Predicated region
  $region42: #{forward.1} parent=0 // pred_check
    _
  $region43: #{forward.1} parent=0 // pred_check_branch
    %38 = sbr.rel (0) target = $region45
  $region44: #{forward.1} parent=0 // pred_region
    _
  $region45: #{forward.1} parent=0 // pred_fallthru
    _
  // Predicated region
  $region46: #{forward.1} parent=0 // pred_check
    _
  $region47: #{forward.1} parent=0 // pred_check_branch
    %40 = sbr.rel (0) target = $region49
  $region48: #{forward.1} parent=0 // pred_region
    _
  $region49: #{forward.1} parent=0 // pred_fallthru
    _
  %v41 = vld [vmem:[%s0] sm:$0xff]
  %v42 = vld [vmem:[%s0 + $0x8] sm:$0xff]
  %v43 = vld [vmem:[%s0 + $0x10] sm:$0xff]
  %v44 = vld [vmem:[%s0 + $0x18] sm:$0xff]
  %v45 = vld [vmem:[%s0 + $0x20] sm:$0xff]
  %v46 = vld [vmem:[%s0 + $0x28] sm:$0xff]
  %v47 = vld [vmem:[%s0 + $0x30] sm:$0xff]
  %v48 = vld [vmem:[%s0 + $0x38] sm:$0xff]
  %v49 = vld [vmem:[%s1] sm:$0xff]
  %v50 = vld [vmem:[%s1 + $0x8] sm:$0xff]
  %v51 = vld [vmem:[%s1 + $0x10] sm:$0xff]
  %v52 = vld [vmem:[%s1 + $0x18] sm:$0xff]
  %v53 = vld [vmem:[%s1 + $0x20] sm:$0xff]
  %v54 = vld [vmem:[%s1 + $0x28] sm:$0xff]
  %v55 = vld [vmem:[%s1 + $0x30] sm:$0xff]
  %v56 = vld [vmem:[%s1 + $0x38] sm:$0xff]
  %v57 = vld [vmem:[%s1 + $0x40] sm:$0xff]
  %v58 = vld [vmem:[%s1 + $0x48] sm:$0xff]
  %v59 = vld [vmem:[%s1 + $0x50] sm:$0xff]
  %v60 = vld [vmem:[%s1 + $0x58] sm:$0xff]
  %v61 = vld [vmem:[%s1 + $0x60] sm:$0xff]
  %v62 = vld [vmem:[%s1 + $0x68] sm:$0xff]
  %v63 = vld [vmem:[%s1 + $0x70] sm:$0xff]
  %v64 = vld [vmem:[%s1 + $0x78] sm:$0xff]
  %v65 = vld [vmem:[%s1 + $0x80] sm:$0xff]
  %v66 = vld [vmem:[%s1 + $0x88] sm:$0xff]
  %v67 = vld [vmem:[%s1 + $0x90] sm:$0xff]
  %v68 = vld [vmem:[%s1 + $0x98] sm:$0xff]
  %v69 = vld [vmem:[%s1 + $0xa0] sm:$0xff]
  %v70 = vld [vmem:[%s1 + $0xa8] sm:$0xff]
  %v71 = vld [vmem:[%s1 + $0xb0] sm:$0xff]
  %v72 = vld [vmem:[%s1 + $0xb8] sm:$0xff]
  %v73 = vld [vmem:[%s1 + $0xc0] sm:$0xff]
  %v74 = vld [vmem:[%s1 + $0xc8] sm:$0xff]
  %v75 = vld [vmem:[%s1 + $0xd0] sm:$0xff]
  %v76 = vld [vmem:[%s1 + $0xd8] sm:$0xff]
  %v77 = vld [vmem:[%s1 + $0xe0] sm:$0xff]
  %v78 = vld [vmem:[%s1 + $0xe8] sm:$0xff]
  %v79 = vld [vmem:[%s1 + $0xf0] sm:$0xff]
  %v80 = vld [vmem:[%s1 + $0xf8] sm:$0xff]
  %81 = vmatprep.subr.mxu0 0.0
  %82 = vmatpush1.msra.mxu0 %v49
  %83 = vmatprep.subr.mxu0 0.0
  %84 = vmatpush1.msra.mxu0 %v50
  %85 = vmatprep.subr.mxu0 0.0
  %86 = vmatpush1.msra.mxu0 %v51
  %87 = vmatprep.subr.mxu0 0.0
  %88 = vmatpush1.msra.mxu0 %v52
  %89 = vmatprep.subr.mxu0 0.0
  %90 = vmatpush1.msra.mxu0 %v53
  %91 = vmatprep.subr.mxu0 0.0
  %92 = vmatpush1.msra.mxu0 %v54
  %93 = vmatprep.subr.mxu0 0.0
  %94 = vmatpush1.msra.mxu0 %v55
  %95 = vmatprep.subr.mxu0 0.0
  %96 = vmatpush1.msra.mxu0 %v56
  %97 = vmatprep.subr.mxu0 0.0
  %98 = vmatpush1.msra.mxu0 %v57
  %99 = vmatprep.subr.mxu0 0.0
  %100 = vmatpush1.msra.mxu0 %v58
  %101 = vmatprep.subr.mxu0 0.0
  %102 = vmatpush1.msra.mxu0 %v59
  %103 = vmatprep.subr.mxu0 0.0
  %104 = vmatpush1.msra.mxu0 %v60
  %105 = vmatprep.subr.mxu0 0.0
  %106 = vmatpush1.msra.mxu0 %v61
  %107 = vmatprep.subr.mxu0 0.0
  %108 = vmatpush1.msra.mxu0 %v62
  %109 = vmatprep.subr.mxu0 0.0
  %110 = vmatpush1.msra.mxu0 %v63
  %111 = vmatprep.subr.mxu0 0.0
  %112 = vmatpush1.msra.mxu0 %v64
  %113 = vmatprep.subr.mxu0 0.0
  %114 = vmatpush1.msra.mxu0 %v65
  %115 = vmatprep.subr.mxu0 0.0
  %116 = vmatpush1.msra.mxu0 %v66
  %117 = vmatprep.subr.mxu0 0.0
  %118 = vmatpush1.msra.mxu0 %v67
  %119 = vmatprep.subr.mxu0 0.0
  %120 = vmatpush1.msra.mxu0 %v68
  %121 = vmatprep.subr.mxu0 0.0
  %122 = vmatpush1.msra.mxu0 %v69
  %123 = vmatprep.subr.mxu0 0.0
  %124 = vmatpush1.msra.mxu0 %v70
  %125 = vmatprep.subr.mxu0 0.0
  %126 = vmatpush1.msra.mxu0 %v71
  %127 = vmatprep.subr.mxu0 0.0
  %128 = vmatpush1.msra.mxu0 %v72
  %129 = vmatprep.subr.mxu0 0.0
  %130 = vmatpush1.msra.mxu0 %v73
  %131 = vmatprep.subr.mxu0 0.0
  %132 = vmatpush1.msra.mxu0 %v74
  %133 = vmatprep.subr.mxu0 0.0
  %134 = vmatpush1.msra.mxu0 %v75
  %135 = vmatprep.subr.mxu0 0.0
  %136 = vmatpush1.msra.mxu0 %v76
  %137 = vmatprep.subr.mxu0 0.0
  %138 = vmatpush1.msra.mxu0 %v77
  %139 = vmatprep.subr.mxu0 0.0
  %140 = vmatpush1.msra.mxu0 %v78
  %141 = vmatprep.subr.mxu0 0.0
  %142 = vmatpush1.msra.mxu0 %v79
  %143 = vmatprep.subr.mxu0 0.0
  %144 = vmatpush1.msra.mxu0 %v80
  %145 = vmatprep.mubr.f32.mxu0 %v42
  %146 = vmatmul.mubr.f32.gmra.mrb[0].mxu0 %v41
  %v147 = vpop.f32.mrb[0].mxu0
  %v148 = vadd.f32 0.0, %v147
  %v149 = vpop.f32.mrb[0].mxu0
  %150 = vmatprep.mubr.f32.mxu0 %v44
  %151 = vmatmul.mubr.f32.gmra.mrb[0].mxu0 %v43
  %v152 = vpop.f32.mrb[0].mxu0
  %v153 = vadd.f32 0.0, %v152
  %v154 = vpop.f32.mrb[0].mxu0
  %155 = vmatprep.mubr.f32.mxu0 %v46
  %156 = vmatmul.mubr.f32.gmra.mrb[0].mxu0 %v45
  %v157 = vpop.f32.mrb[0].mxu0
  %v158 = vadd.f32 0.0, %v157
  %v159 = vpop.f32.mrb[0].mxu0
  %160 = vmatprep.mubr.f32.mxu0 %v48
  %161 = vmatmul.mubr.f32.gmra.mrb[0].mxu0 %v47
  %v162 = vpop.f32.mrb[0].mxu0
  %v163 = vadd.f32 0.0, %v162
  %v164 = vpop.f32.mrb[0].mxu0
  %165 = vdwg.mxu0
  %v166 = vld [vmem:[%s2] sm:$0xff]
  %v167 = vld [vmem:[%s2 + $0x8] sm:$0xff]
  %v168 = vld [vmem:[%s2 + $0x10] sm:$0xff]
  %v169 = vld [vmem:[%s2 + $0x18] sm:$0xff]
  %vm170 = vcmask 130048
  %v172 = vsel %vm170, %v166, 0
  %v175 = vsel %vm170, %v167, 0
  %v178 = vsel %vm170, %v168, 0
  %v181 = vsel %vm170, %v169, 0
  %183 = vmatprep.subr.mxu0 0.0
  %184 = vmatpush1.msra.mxu0 %v148
  %185 = vmatprep.subr.mxu0 0.0
  %186 = vmatpush1.msra.mxu0 %v153
  %187 = vmatprep.subr.mxu0 0.0
  %188 = vmatpush1.msra.mxu0 0.0
  %189 = vmatprep.subr.mxu0 0.0
  %190 = vmatpush1.msra.mxu0 0.0
  %191 = vmatprep.subr.mxu0 0.0
  %192 = vmatpush1.msra.mxu0 0.0
  %193 = vmatprep.subr.mxu0 0.0
  %194 = vmatpush1.msra.mxu0 0.0
  %195 = vmatprep.subr.mxu0 0.0
  %196 = vmatpush1.msra.mxu0 0.0
  %197 = vmatprep.subr.mxu0 0.0
  %198 = vmatpush1.msra.mxu0 0.0
  %199 = vmatprep.subr.mxu0 0.0
  %200 = vmatpush1.msra.mxu0 0.0
  %201 = vmatprep.subr.mxu0 0.0
  %202 = vmatpush1.msra.mxu0 0.0
  %203 = vmatprep.subr.mxu0 0.0
  %204 = vmatpush1.msra.mxu0 0.0
  %205 = vmatprep.subr.mxu0 0.0
  %206 = vmatpush1.msra.mxu0 0.0
  %207 = vmatprep.subr.mxu0 0.0
  %208 = vmatpush1.msra.mxu0 0.0
  %209 = vmatprep.subr.mxu0 0.0
  %210 = vmatpush1.msra.mxu0 0.0
  %211 = vmatprep.subr.mxu0 0.0
  %212 = vmatpush1.msra.mxu0 0.0
  %213 = vmatprep.subr.mxu0 0.0
  %214 = vmatpush1.msra.mxu0 0.0
  %215 = vmatprep.subr.mxu0 0.0
  %216 = vmatpush1.msra.mxu0 0.0
  %217 = vmatprep.subr.mxu0 0.0
  %218 = vmatpush1.msra.mxu0 0.0
  %219 = vmatprep.subr.mxu0 0.0
  %220 = vmatpush1.msra.mxu0 0.0
  %221 = vmatprep.subr.mxu0 0.0
  %222 = vmatpush1.msra.mxu0 0.0
  %223 = vmatprep.subr.mxu0 0.0
  %224 = vmatpush1.msra.mxu0 0.0
  %225 = vmatprep.subr.mxu0 0.0
  %226 = vmatpush1.msra.mxu0 0.0
  %227 = vmatprep.subr.mxu0 0.0
  %228 = vmatpush1.msra.mxu0 0.0
  %229 = vmatprep.subr.mxu0 0.0
  %230 = vmatpush1.msra.mxu0 0.0
  %231 = vmatprep.subr.mxu0 0.0
  %232 = vmatpush1.msra.mxu0 0.0
  %233 = vmatprep.subr.mxu0 0.0
  %234 = vmatpush1.msra.mxu0 0.0
  %235 = vmatprep.subr.mxu0 0.0
  %236 = vmatpush1.msra.mxu0 0.0
  %237 = vmatprep.subr.mxu0 0.0
  %238 = vmatpush1.msra.mxu0 0.0
  %239 = vmatprep.subr.mxu0 0.0
  %240 = vmatpush1.msra.mxu0 0.0
  %241 = vmatprep.subr.mxu0 0.0
  %242 = vmatpush1.msra.mxu0 0.0
  %243 = vmatprep.subr.mxu0 0.0
  %244 = vmatpush1.msra.mxu0 0.0
  %245 = vmatprep.subr.mxu0 0.0
  %246 = vmatpush1.msra.mxu0 0.0
  %247 = vmatprep.mubr.f32.mxu0 0.0
  %248 = vmatmul.mubr.f32.gmra.mrb[0].mxu0 %v172
  %v249 = vpop.f32.mrb[0].mxu0
  %v250 = vadd.f32 0.0, %v249
  %v251 = vpop.f32.mrb[0].mxu0
  %252 = vmatprep.mubr.f32.mxu0 0.0
  %253 = vmatmul.mubr.f32.gmra.mrb[0].mxu0 %v175
  %v254 = vpop.f32.mrb[0].mxu0
  %v255 = vadd.f32 0.0, %v254
  %v256 = vpop.f32.mrb[0].mxu0
  %257 = vmatprep.mubr.f32.mxu0 0.0
  %258 = vmatmul.mubr.f32.gmra.mrb[0].mxu0 %v178
  %v259 = vpop.f32.mrb[0].mxu0
  %v260 = vadd.f32 0.0, %v259
  %v261 = vpop.f32.mrb[0].mxu0
  %262 = vmatprep.mubr.f32.mxu0 0.0
  %263 = vmatmul.mubr.f32.gmra.mrb[0].mxu0 %v181
  %v264 = vpop.f32.mrb[0].mxu0
  %v265 = vadd.f32 0.0, %v264
  %v266 = vpop.f32.mrb[0].mxu0
  %267 = vdwg.mxu0
  %268 = vmatprep.subr.mxu0 0.0
  %269 = vmatpush1.msra.mxu0 %v158
  %270 = vmatprep.subr.mxu0 0.0
  %271 = vmatpush1.msra.mxu0 %v163
  %272 = vmatprep.subr.mxu0 0.0
  %273 = vmatpush1.msra.mxu0 0.0
  %274 = vmatprep.subr.mxu0 0.0
  %275 = vmatpush1.msra.mxu0 0.0
  %276 = vmatprep.subr.mxu0 0.0
  %277 = vmatpush1.msra.mxu0 0.0
  %278 = vmatprep.subr.mxu0 0.0
  %279 = vmatpush1.msra.mxu0 0.0
  %280 = vmatprep.subr.mxu0 0.0
  %281 = vmatpush1.msra.mxu0 0.0
  %282 = vmatprep.subr.mxu0 0.0
  %283 = vmatpush1.msra.mxu0 0.0
  %284 = vmatprep.subr.mxu0 0.0
  %285 = vmatpush1.msra.mxu0 0.0
  %286 = vmatprep.subr.mxu0 0.0
  %287 = vmatpush1.msra.mxu0 0.0
  %288 = vmatprep.subr.mxu0 0.0
  %289 = vmatpush1.msra.mxu0 0.0
  %290 = vmatprep.subr.mxu0 0.0
  %291 = vmatpush1.msra.mxu0 0.0
  %292 = vmatprep.subr.mxu0 0.0
  %293 = vmatpush1.msra.mxu0 0.0
  %294 = vmatprep.subr.mxu0 0.0
  %295 = vmatpush1.msra.mxu0 0.0
  %296 = vmatprep.subr.mxu0 0.0
  %297 = vmatpush1.msra.mxu0 0.0
  %298 = vmatprep.subr.mxu0 0.0
  %299 = vmatpush1.msra.mxu0 0.0
  %300 = vmatprep.subr.mxu0 0.0
  %301 = vmatpush1.msra.mxu0 0.0
  %302 = vmatprep.subr.mxu0 0.0
  %303 = vmatpush1.msra.mxu0 0.0
  %304 = vmatprep.subr.mxu0 0.0
  %305 = vmatpush1.msra.mxu0 0.0
  %306 = vmatprep.subr.mxu0 0.0
  %307 = vmatpush1.msra.mxu0 0.0
  %308 = vmatprep.subr.mxu0 0.0
  %309 = vmatpush1.msra.mxu0 0.0
  %310 = vmatprep.subr.mxu0 0.0
  %311 = vmatpush1.msra.mxu0 0.0
  %312 = vmatprep.subr.mxu0 0.0
  %313 = vmatpush1.msra.mxu0 0.0
  %314 = vmatprep.subr.mxu0 0.0
  %315 = vmatpush1.msra.mxu0 0.0
  %316 = vmatprep.subr.mxu0 0.0
  %317 = vmatpush1.msra.mxu0 0.0
  %318 = vmatprep.subr.mxu0 0.0
  %319 = vmatpush1.msra.mxu0 0.0
  %320 = vmatprep.subr.mxu0 0.0
  %321 = vmatpush1.msra.mxu0 0.0
  %322 = vmatprep.subr.mxu0 0.0
  %323 = vmatpush1.msra.mxu0 0.0
  %324 = vmatprep.subr.mxu0 0.0
  %325 = vmatpush1.msra.mxu0 0.0
  %326 = vmatprep.subr.mxu0 0.0
  %327 = vmatpush1.msra.mxu0 0.0
  %328 = vmatprep.subr.mxu0 0.0
  %329 = vmatpush1.msra.mxu0 0.0
  %330 = vmatprep.subr.mxu0 0.0
  %331 = vmatpush1.msra.mxu0 0.0
  %332 = vmatprep.mubr.f32.mxu0 0.0
  %333 = vmatmul.mubr.f32.gmra.mrb[0].mxu0 %v172
  %v334 = vpop.f32.mrb[0].mxu0
  %v335 = vadd.f32 0.0, %v334
  %v336 = vpop.f32.mrb[0].mxu0
  %337 = vmatprep.mubr.f32.mxu0 0.0
  %338 = vmatmul.mubr.f32.gmra.mrb[0].mxu0 %v175
  %v339 = vpop.f32.mrb[0].mxu0
  %v340 = vadd.f32 0.0, %v339
  %v341 = vpop.f32.mrb[0].mxu0
  %342 = vmatprep.mubr.f32.mxu0 0.0
  %343 = vmatmul.mubr.f32.gmra.mrb[0].mxu0 %v178
  %v344 = vpop.f32.mrb[0].mxu0
  %v345 = vadd.f32 0.0, %v344
  %v346 = vpop.f32.mrb[0].mxu0
  %347 = vmatprep.mubr.f32.mxu0 0.0
  %348 = vmatmul.mubr.f32.gmra.mrb[0].mxu0 %v181
  %v349 = vpop.f32.mrb[0].mxu0
  %v350 = vadd.f32 0.0, %v349
  %v351 = vpop.f32.mrb[0].mxu0
  %352 = vdwg.mxu0
  %v353 = vld [vmem:[%s4] sm:$0xf]
  %v354 = vld [vmem:[%s4 + $0x4] sm:$0xf]
  %v355 = vld [vmem:[%s4 + $0x8] sm:$0xf]
  %v356 = vld [vmem:[%s4 + $0xc] sm:$0xf]
  %v357 = vld [vmem:[%s4 + $0x10] sm:$0xf]
  %v358 = vld [vmem:[%s4 + $0x14] sm:$0xf]
  %v359 = vld [vmem:[%s4 + $0x18] sm:$0xf]
  %v360 = vld [vmem:[%s4 + $0x1c] sm:$0xf]
  %v361 = vld [vmem:[%s4 + $0x20] sm:$0xf]
  %v362 = vld [vmem:[%s4 + $0x24] sm:$0xf]
  %v363 = vld [vmem:[%s4 + $0x28] sm:$0xf]
  %v364 = vld [vmem:[%s4 + $0x2c] sm:$0xf]
  %v365 = vld [vmem:[%s4 + $0x30] sm:$0xf]
  %v366 = vld [vmem:[%s4 + $0x34] sm:$0xf]
  %v367 = vld [vmem:[%s4 + $0x38] sm:$0xf]
  %v368 = vld [vmem:[%s4 + $0x3c] sm:$0xf]
  %v369 = vunpack.c.l.bf16 %v353
  %v370 = vunpack.c.l.bf16 %v354
  %v371 = vunpack.c.l.bf16 %v355
  %v372 = vunpack.c.l.bf16 %v356
  %v373 = vunpack.c.l.bf16 %v357
  %v374 = vunpack.c.l.bf16 %v358
  %v375 = vunpack.c.l.bf16 %v359
  %v376 = vunpack.c.l.bf16 %v360
  %v377 = vunpack.c.l.bf16 %v361
  %v378 = vunpack.c.l.bf16 %v362
  %v379 = vunpack.c.l.bf16 %v363
  %v380 = vunpack.c.l.bf16 %v364
  %v381 = vunpack.c.l.bf16 %v365
  %v382 = vunpack.c.l.bf16 %v366
  %v383 = vunpack.c.l.bf16 %v367
  %v384 = vunpack.c.l.bf16 %v368
  %v385 = vld [vmem:[%s5] sm:$0x3]
  %v386 = vunpack.c.l.bf16 %v385
  %v387 = vld [vmem:[%s8] sm:$0x1]
  %v388 = vld [vmem:[%s9] sm:$0x1]
  %v389 = vadd.f32 %v250, %v255
  %v390 = vadd.f32 %v389, %v260
  %v391 = vadd.f32 %v390, %v265
  %v392 = vadd.f32 %v391, %v335
  %v393 = vadd.f32 %v392, %v340
  %v394 = vadd.f32 %v393, %v345
  %v395 = vadd.f32 %v394, %v350
  %v396 = vrot.slane %v395, 4
  %v397 = vadd.f32 %v395, %v396
  %v398 = vrot.slane %v397, 2
  %v399 = vadd.f32 %v397, %v398
  %v400 = vrot.slane %v399, 1
  %v401 = vadd.f32 %v399, %v400
  %v402 = vmul.f32 %v250, %v250
  %v403 = vmul.f32 %v255, %v255
  %v404 = vmul.f32 %v260, %v260
  %v405 = vmul.f32 %v265, %v265
  %v406 = vmul.f32 %v335, %v335
  %v407 = vmul.f32 %v340, %v340
  %v408 = vmul.f32 %v345, %v345
  %v409 = vmul.f32 %v350, %v350
  %v410 = vadd.f32 %v402, %v403
  %v411 = vadd.f32 %v410, %v404
  %v412 = vadd.f32 %v411, %v405
  %v413 = vadd.f32 %v412, %v406
  %v414 = vadd.f32 %v413, %v407
  %v415 = vadd.f32 %v414, %v408
  %v416 = vadd.f32 %v415, %v409
  %v417 = vrot.slane %v416, 4
  %v418 = vadd.f32 %v416, %v417
  %v419 = vrot.slane %v418, 2
  %v420 = vadd.f32 %v418, %v419
  %v421 = vrot.slane %v420, 1
  %v422 = vadd.f32 %v420, %v421
  %423 = vmatprep.subr.mxu0 0.0
  %424 = vmatpush1.msra.mxu0 %v369
  %425 = vmatprep.subr.mxu0 0.0
  %426 = vmatpush1.msra.mxu0 %v370
  %427 = vmatprep.subr.mxu0 0.0
  %428 = vmatpush1.msra.mxu0 %v371
  %429 = vmatprep.subr.mxu0 0.0
  %430 = vmatpush1.msra.mxu0 %v372
  %431 = vmatprep.subr.mxu0 0.0
  %432 = vmatpush1.msra.mxu0 %v373
  %433 = vmatprep.subr.mxu0 0.0
  %434 = vmatpush1.msra.mxu0 %v374
  %435 = vmatprep.subr.mxu0 0.0
  %436 = vmatpush1.msra.mxu0 %v375
  %437 = vmatprep.subr.mxu0 0.0
  %438 = vmatpush1.msra.mxu0 %v376
  %439 = vmatprep.subr.mxu0 0.0
  %440 = vmatpush1.msra.mxu0 %v377
  %441 = vmatprep.subr.mxu0 0.0
  %442 = vmatpush1.msra.mxu0 %v378
  %443 = vmatprep.subr.mxu0 0.0
  %444 = vmatpush1.msra.mxu0 %v379
  %445 = vmatprep.subr.mxu0 0.0
  %446 = vmatpush1.msra.mxu0 %v380
  %447 = vmatprep.subr.mxu0 0.0
  %448 = vmatpush1.msra.mxu0 %v381
  %449 = vmatprep.subr.mxu0 0.0
  %450 = vmatpush1.msra.mxu0 %v382
  %451 = vmatprep.subr.mxu0 0.0
  %452 = vmatpush1.msra.mxu0 %v383
  %453 = vmatprep.subr.mxu0 0.0
  %454 = vmatpush1.msra.mxu0 %v384
  %455 = vmatprep.subr.mxu0 0.0
  %456 = vmatpush1.msra.mxu0 0.0
  %457 = vmatprep.subr.mxu0 0.0
  %458 = vmatpush1.msra.mxu0 0.0
  %459 = vmatprep.subr.mxu0 0.0
  %460 = vmatpush1.msra.mxu0 0.0
  %461 = vmatprep.subr.mxu0 0.0
  %462 = vmatpush1.msra.mxu0 0.0
  %463 = vmatprep.subr.mxu0 0.0
  %464 = vmatpush1.msra.mxu0 0.0
  %465 = vmatprep.subr.mxu0 0.0
  %466 = vmatpush1.msra.mxu0 0.0
  %467 = vmatprep.subr.mxu0 0.0
  %468 = vmatpush1.msra.mxu0 0.0
  %469 = vmatprep.subr.mxu0 0.0
  %470 = vmatpush1.msra.mxu0 0.0
  %471 = vmatprep.subr.mxu0 0.0
  %472 = vmatpush1.msra.mxu0 0.0
  %473 = vmatprep.subr.mxu0 0.0
  %474 = vmatpush1.msra.mxu0 0.0
  %475 = vmatprep.subr.mxu0 0.0
  %476 = vmatpush1.msra.mxu0 0.0
  %477 = vmatprep.subr.mxu0 0.0
  %478 = vmatpush1.msra.mxu0 0.0
  %479 = vmatprep.subr.mxu0 0.0
  %480 = vmatpush1.msra.mxu0 0.0
  %481 = vmatprep.subr.mxu0 0.0
  %482 = vmatpush1.msra.mxu0 0.0
  %483 = vmatprep.subr.mxu0 0.0
  %484 = vmatpush1.msra.mxu0 0.0
  %485 = vmatprep.subr.mxu0 0.0
  %486 = vmatpush1.msra.mxu0 0.0
  %487 = vmatprep.mubr.f32.mxu0 0.0
  %488 = vmatmul.mubr.f32.gmra.mrb[0].mxu0 %v401
  %v489 = vpop.f32.mrb[0].mxu0
  %v490 = vadd.f32 0.0, %v489
  %v491 = vpop.f32.mrb[0].mxu0
  %492 = vdwg.mxu0
  %v493 = vmul.f32 %v490, 0.00048828125
  %494 = vmatprep.subr.mxu0 0.0
  %495 = vmatpush1.msra.mxu0 %v369
  %496 = vmatprep.subr.mxu0 0.0
  %497 = vmatpush1.msra.mxu0 %v370
  %498 = vmatprep.subr.mxu0 0.0
  %499 = vmatpush1.msra.mxu0 %v371
  %500 = vmatprep.subr.mxu0 0.0
  %501 = vmatpush1.msra.mxu0 %v372
  %502 = vmatprep.subr.mxu0 0.0
  %503 = vmatpush1.msra.mxu0 %v373
  %504 = vmatprep.subr.mxu0 0.0
  %505 = vmatpush1.msra.mxu0 %v374
  %506 = vmatprep.subr.mxu0 0.0
  %507 = vmatpush1.msra.mxu0 %v375
  %508 = vmatprep.subr.mxu0 0.0
  %509 = vmatpush1.msra.mxu0 %v376
  %510 = vmatprep.subr.mxu0 0.0
  %511 = vmatpush1.msra.mxu0 %v377
  %512 = vmatprep.subr.mxu0 0.0
  %513 = vmatpush1.msra.mxu0 %v378
  %514 = vmatprep.subr.mxu0 0.0
  %515 = vmatpush1.msra.mxu0 %v379
  %516 = vmatprep.subr.mxu0 0.0
  %517 = vmatpush1.msra.mxu0 %v380
  %518 = vmatprep.subr.mxu0 0.0
  %519 = vmatpush1.msra.mxu0 %v381
  %520 = vmatprep.subr.mxu0 0.0
  %521 = vmatpush1.msra.mxu0 %v382
  %522 = vmatprep.subr.mxu0 0.0
  %523 = vmatpush1.msra.mxu0 %v383
  %524 = vmatprep.subr.mxu0 0.0
  %525 = vmatpush1.msra.mxu0 %v384
  %526 = vmatprep.subr.mxu0 0.0
  %527 = vmatpush1.msra.mxu0 0.0
  %528 = vmatprep.subr.mxu0 0.0
  %529 = vmatpush1.msra.mxu0 0.0
  %530 = vmatprep.subr.mxu0 0.0
  %531 = vmatpush1.msra.mxu0 0.0
  %532 = vmatprep.subr.mxu0 0.0
  %533 = vmatpush1.msra.mxu0 0.0
  %534 = vmatprep.subr.mxu0 0.0
  %535 = vmatpush1.msra.mxu0 0.0
  %536 = vmatprep.subr.mxu0 0.0
  %537 = vmatpush1.msra.mxu0 0.0
  %538 = vmatprep.subr.mxu0 0.0
  %539 = vmatpush1.msra.mxu0 0.0
  %540 = vmatprep.subr.mxu0 0.0
  %541 = vmatpush1.msra.mxu0 0.0
  %542 = vmatprep.subr.mxu0 0.0
  %543 = vmatpush1.msra.mxu0 0.0
  %544 = vmatprep.subr.mxu0 0.0
  %545 = vmatpush1.msra.mxu0 0.0
  %546 = vmatprep.subr.mxu0 0.0
  %547 = vmatpush1.msra.mxu0 0.0
  %548 = vmatprep.subr.mxu0 0.0
  %549 = vmatpush1.msra.mxu0 0.0
  %550 = vmatprep.subr.mxu0 0.0
  %551 = vmatpush1.msra.mxu0 0.0
  %552 = vmatprep.subr.mxu0 0.0
  %553 = vmatpush1.msra.mxu0 0.0
  %554 = vmatprep.subr.mxu0 0.0
  %555 = vmatpush1.msra.mxu0 0.0
  %556 = vmatprep.subr.mxu0 0.0
  %557 = vmatpush1.msra.mxu0 0.0
  %558 = vmatprep.mubr.f32.mxu0 0.0
  %559 = vmatmul.mubr.f32.gmra.mrb[0].mxu0 %v422
  %v560 = vpop.f32.mrb[0].mxu0
  %v561 = vadd.f32 0.0, %v560
  %v562 = vpop.f32.mrb[0].mxu0
  %563 = vdwg.mxu0
  %v564 = vmul.f32 %v561, 0.00048828125
  %v565 = vmul.f32 %v493, %v493
  %v566 = vsub.f32 %v564, %v565
  %v567 = vadd.f32 %v566, 1e-05
  %v568 = vrsqrt.pop %v567
  %v569 = vmul.f32 %v387, %v568
  %v570 = vmul.f32 %v493, %v569
  %v571 = vsub.f32 %v388, %v570
  %vm572 = vcmask 31744
  %v574 = vsel %vm572, %v569, 0
  %vm576 = vcmask 1043456
  %v578 = vsel %vm576, %v386, 0
  %580 = vmatprep.subr.mxu0 0.0
  %581 = vmatpush1.msra.mxu0 %v578
  %582 = vmatprep.subr.mxu0 0.0
  %583 = vmatpush1.msra.mxu0 0.0
  %584 = vmatprep.subr.mxu0 0.0
  %585 = vmatpush1.msra.mxu0 0.0
  %586 = vmatprep.subr.mxu0 0.0
  %587 = vmatpush1.msra.mxu0 0.0
  %588 = vmatprep.subr.mxu0 0.0
  %589 = vmatpush1.msra.mxu0 0.0
  %590 = vmatprep.subr.mxu0 0.0
  %591 = vmatpush1.msra.mxu0 0.0
  %592 = vmatprep.subr.mxu0 0.0
  %593 = vmatpush1.msra.mxu0 0.0
  %594 = vmatprep.subr.mxu0 0.0
  %595 = vmatpush1.msra.mxu0 0.0
  %596 = vmatprep.subr.mxu0 0.0
  %597 = vmatpush1.msra.mxu0 0.0
  %598 = vmatprep.subr.mxu0 0.0
  %599 = vmatpush1.msra.mxu0 0.0
  %600 = vmatprep.subr.mxu0 0.0
  %601 = vmatpush1.msra.mxu0 0.0
  %602 = vmatprep.subr.mxu0 0.0
  %603 = vmatpush1.msra.mxu0 0.0
  %604 = vmatprep.subr.mxu0 0.0
  %605 = vmatpush1.msra.mxu0 0.0
  %606 = vmatprep.subr.mxu0 0.0
  %607 = vmatpush1.msra.mxu0 0.0
  %608 = vmatprep.subr.mxu0 0.0
  %609 = vmatpush1.msra.mxu0 0.0
  %610 = vmatprep.subr.mxu0 0.0
  %611 = vmatpush1.msra.mxu0 0.0
  %612 = vmatprep.subr.mxu0 0.0
  %613 = vmatpush1.msra.mxu0 0.0
  %614 = vmatprep.subr.mxu0 0.0
  %615 = vmatpush1.msra.mxu0 0.0
  %616 = vmatprep.subr.mxu0 0.0
  %617 = vmatpush1.msra.mxu0 0.0
  %618 = vmatprep.subr.mxu0 0.0
  %619 = vmatpush1.msra.mxu0 0.0
  %620 = vmatprep.subr.mxu0 0.0
  %621 = vmatpush1.msra.mxu0 0.0
  %622 = vmatprep.subr.mxu0 0.0
  %623 = vmatpush1.msra.mxu0 0.0
  %624 = vmatprep.subr.mxu0 0.0
  %625 = vmatpush1.msra.mxu0 0.0
  %626 = vmatprep.subr.mxu0 0.0
  %627 = vmatpush1.msra.mxu0 0.0
  %628 = vmatprep.subr.mxu0 0.0
  %629 = vmatpush1.msra.mxu0 0.0
  %630 = vmatprep.subr.mxu0 0.0
  %631 = vmatpush1.msra.mxu0 0.0
  %632 = vmatprep.subr.mxu0 0.0
  %633 = vmatpush1.msra.mxu0 0.0
  %634 = vmatprep.subr.mxu0 0.0
  %635 = vmatpush1.msra.mxu0 0.0
  %636 = vmatprep.subr.mxu0 0.0
  %637 = vmatpush1.msra.mxu0 0.0
  %638 = vmatprep.subr.mxu0 0.0
  %639 = vmatpush1.msra.mxu0 0.0
  %640 = vmatprep.subr.mxu0 0.0
  %641 = vmatpush1.msra.mxu0 0.0
  %642 = vmatprep.subr.mxu0 0.0
  %643 = vmatpush1.msra.mxu0 0.0
  %644 = vmatprep.mubr.f32.mxu0 0.0
  %645 = vmatmul.mubr.f32.gmra.mrb[0].mxu0 %v574
  %v646 = vpop.f32.mrb[0].mxu0
  %v647 = vadd.f32 0.0, %v646
  %v648 = vpop.f32.mrb[0].mxu0
  %649 = vdwg.mxu0
  %v651 = vsel %vm572, %v571, 0
  %653 = vmatprep.subr.mxu0 0.0
  %654 = vmatpush1.msra.mxu0 %v578
  %655 = vmatprep.subr.mxu0 0.0
  %656 = vmatpush1.msra.mxu0 0.0
  %657 = vmatprep.subr.mxu0 0.0
  %658 = vmatpush1.msra.mxu0 0.0
  %659 = vmatprep.subr.mxu0 0.0
  %660 = vmatpush1.msra.mxu0 0.0
  %661 = vmatprep.subr.mxu0 0.0
  %662 = vmatpush1.msra.mxu0 0.0
  %663 = vmatprep.subr.mxu0 0.0
  %664 = vmatpush1.msra.mxu0 0.0
  %665 = vmatprep.subr.mxu0 0.0
  %666 = vmatpush1.msra.mxu0 0.0
  %667 = vmatprep.subr.mxu0 0.0
  %668 = vmatpush1.msra.mxu0 0.0
  %669 = vmatprep.subr.mxu0 0.0
  %670 = vmatpush1.msra.mxu0 0.0
  %671 = vmatprep.subr.mxu0 0.0
  %672 = vmatpush1.msra.mxu0 0.0
  %673 = vmatprep.subr.mxu0 0.0
  %674 = vmatpush1.msra.mxu0 0.0
  %675 = vmatprep.subr.mxu0 0.0
  %676 = vmatpush1.msra.mxu0 0.0
  %677 = vmatprep.subr.mxu0 0.0
  %678 = vmatpush1.msra.mxu0 0.0
  %679 = vmatprep.subr.mxu0 0.0
  %680 = vmatpush1.msra.mxu0 0.0
  %681 = vmatprep.subr.mxu0 0.0
  %682 = vmatpush1.msra.mxu0 0.0
  %683 = vmatprep.subr.mxu0 0.0
  %684 = vmatpush1.msra.mxu0 0.0
  %685 = vmatprep.subr.mxu0 0.0
  %686 = vmatpush1.msra.mxu0 0.0
  %687 = vmatprep.subr.mxu0 0.0
  %688 = vmatpush1.msra.mxu0 0.0
  %689 = vmatprep.subr.mxu0 0.0
  %690 = vmatpush1.msra.mxu0 0.0
  %691 = vmatprep.subr.mxu0 0.0
  %692 = vmatpush1.msra.mxu0 0.0
  %693 = vmatprep.subr.mxu0 0.0
  %694 = vmatpush1.msra.mxu0 0.0
  %695 = vmatprep.subr.mxu0 0.0
  %696 = vmatpush1.msra.mxu0 0.0
  %697 = vmatprep.subr.mxu0 0.0
  %698 = vmatpush1.msra.mxu0 0.0
  %699 = vmatprep.subr.mxu0 0.0
  %700 = vmatpush1.msra.mxu0 0.0
  %701 = vmatprep.subr.mxu0 0.0
  %702 = vmatpush1.msra.mxu0 0.0
  %703 = vmatprep.subr.mxu0 0.0
  %704 = vmatpush1.msra.mxu0 0.0
  %705 = vmatprep.subr.mxu0 0.0
  %706 = vmatpush1.msra.mxu0 0.0
  %707 = vmatprep.subr.mxu0 0.0
  %708 = vmatpush1.msra.mxu0 0.0
  %709 = vmatprep.subr.mxu0 0.0
  %710 = vmatpush1.msra.mxu0 0.0
  %711 = vmatprep.subr.mxu0 0.0
  %712 = vmatpush1.msra.mxu0 0.0
  %713 = vmatprep.subr.mxu0 0.0
  %714 = vmatpush1.msra.mxu0 0.0
  %715 = vmatprep.subr.mxu0 0.0
  %716 = vmatpush1.msra.mxu0 0.0
  %717 = vmatprep.mubr.f32.mxu0 0.0
  %718 = vmatmul.mubr.f32.gmra.mrb[0].mxu0 %v651
  %v719 = vpop.f32.mrb[0].mxu0
  %v720 = vadd.f32 0.0, %v719
  %v721 = vpop.f32.mrb[0].mxu0
  %722 = vdwg.mxu0
  %v723 = vlaneseq
  %v724 = vshrl.u32 %v723, 7
  %v725 = vsub.s32 0, %v724
  %v726 = vrot.slane %v647, %v725
  %v727 = vmul.f32 %v250, %v726
  %v728 = vmul.f32 %v255, %v726
  %v729 = vmul.f32 %v260, %v726
  %v730 = vmul.f32 %v265, %v726
  %v731 = vmul.f32 %v335, %v726
  %v732 = vmul.f32 %v340, %v726
  %v733 = vmul.f32 %v345, %v726
  %v734 = vmul.f32 %v350, %v726
  %v735 = vlaneseq
  %v736 = vshrl.u32 %v735, 7
  %v737 = vsub.s32 0, %v736
  %v738 = vrot.slane %v720, %v737
  %v739 = vadd.f32 %v727, %v738
  %v740 = vadd.f32 %v728, %v738
  %v741 = vadd.f32 %v729, %v738
  %v742 = vadd.f32 %v730, %v738
  %v743 = vadd.f32 %v731, %v738
  %v744 = vadd.f32 %v732, %v738
  %v745 = vadd.f32 %v733, %v738
  %v746 = vadd.f32 %v734, %v738
  %v747 = vmax.f32 %v739, 0.0
  %v748 = vmax.f32 %v740, 0.0
  %v749 = vmax.f32 %v741, 0.0
  %v750 = vmax.f32 %v742, 0.0
  %v751 = vmax.f32 %v743, 0.0
  %v752 = vmax.f32 %v744, 0.0
  %v753 = vmax.f32 %v745, 0.0
  %v754 = vmax.f32 %v746, 0.0
  %v755 = vld [vmem:[%s3] sm:$0xff]
  %v756 = vld [vmem:[%s3 + $0x8] sm:$0xff]
  %v757 = vld [vmem:[%s3 + $0x10] sm:$0xff]
  %v758 = vld [vmem:[%s3 + $0x18] sm:$0xff]
  %v759 = vld [vmem:[%s3 + $0x20] sm:$0xff]
  %v760 = vld [vmem:[%s3 + $0x28] sm:$0xff]
  %v761 = vld [vmem:[%s3 + $0x30] sm:$0xff]
  %v762 = vld [vmem:[%s3 + $0x38] sm:$0xff]
  %v763 = vld [vmem:[%s3 + $0x40] sm:$0xff]
  %v764 = vld [vmem:[%s3 + $0x48] sm:$0xff]
  %v765 = vld [vmem:[%s3 + $0x50] sm:$0xff]
  %v766 = vld [vmem:[%s3 + $0x58] sm:$0xff]
  %v767 = vld [vmem:[%s3 + $0x60] sm:$0xff]
  %v768 = vld [vmem:[%s3 + $0x68] sm:$0xff]
  %v769 = vld [vmem:[%s3 + $0x70] sm:$0xff]
  %v770 = vld [vmem:[%s3 + $0x78] sm:$0xff]
  %v771 = vld [vmem:[%s3 + $0x80] sm:$0xff]
  %v772 = vld [vmem:[%s3 + $0x88] sm:$0xff]
  %v773 = vld [vmem:[%s3 + $0x90] sm:$0xff]
  %v774 = vld [vmem:[%s3 + $0x98] sm:$0xff]
  %v775 = vld [vmem:[%s3 + $0xa0] sm:$0xff]
  %v776 = vld [vmem:[%s3 + $0xa8] sm:$0xff]
  %v777 = vld [vmem:[%s3 + $0xb0] sm:$0xff]
  %v778 = vld [vmem:[%s3 + $0xb8] sm:$0xff]
  %v779 = vld [vmem:[%s3 + $0xc0] sm:$0xff]
  %v780 = vld [vmem:[%s3 + $0xc8] sm:$0xff]
  %v781 = vld [vmem:[%s3 + $0xd0] sm:$0xff]
  %v782 = vld [vmem:[%s3 + $0xd8] sm:$0xff]
  %v783 = vld [vmem:[%s3 + $0xe0] sm:$0xff]
  %v784 = vld [vmem:[%s3 + $0xe8] sm:$0xff]
  %v785 = vld [vmem:[%s3 + $0xf0] sm:$0xff]
  %v786 = vld [vmem:[%s3 + $0xf8] sm:$0xff]
  %v787 = vld [vmem:[%s3 + $0x100] sm:$0xff]
  %v788 = vld [vmem:[%s3 + $0x108] sm:$0xff]
  %v789 = vld [vmem:[%s3 + $0x110] sm:$0xff]
  %v790 = vld [vmem:[%s3 + $0x118] sm:$0xff]
  %v791 = vld [vmem:[%s3 + $0x120] sm:$0xff]
  %v792 = vld [vmem:[%s3 + $0x128] sm:$0xff]
  %v793 = vld [vmem:[%s3 + $0x130] sm:$0xff]
  %v794 = vld [vmem:[%s3 + $0x138] sm:$0xff]
  %v795 = vld [vmem:[%s3 + $0x140] sm:$0xff]
  %v796 = vld [vmem:[%s3 + $0x148] sm:$0xff]
  %v797 = vld [vmem:[%s3 + $0x150] sm:$0xff]
  %v798 = vld [vmem:[%s3 + $0x158] sm:$0xff]
  %v799 = vld [vmem:[%s3 + $0x160] sm:$0xff]
  %v800 = vld [vmem:[%s3 + $0x168] sm:$0xff]
  %v801 = vld [vmem:[%s3 + $0x170] sm:$0xff]
  %v802 = vld [vmem:[%s3 + $0x178] sm:$0xff]
  %v803 = vld [vmem:[%s3 + $0x180] sm:$0xff]
  %v804 = vld [vmem:[%s3 + $0x188] sm:$0xff]
  %v805 = vld [vmem:[%s3 + $0x190] sm:$0xff]
  %v806 = vld [vmem:[%s3 + $0x198] sm:$0xff]
  %v807 = vld [vmem:[%s3 + $0x1a0] sm:$0xff]
  %v808 = vld [vmem:[%s3 + $0x1a8] sm:$0xff]
  %v809 = vld [vmem:[%s3 + $0x1b0] sm:$0xff]
  %v810 = vld [vmem:[%s3 + $0x1b8] sm:$0xff]
  %v811 = vld [vmem:[%s3 + $0x1c0] sm:$0xff]
  %v812 = vld [vmem:[%s3 + $0x1c8] sm:$0xff]
  %v813 = vld [vmem:[%s3 + $0x1d0] sm:$0xff]
  %v814 = vld [vmem:[%s3 + $0x1d8] sm:$0xff]
  %v815 = vld [vmem:[%s3 + $0x1e0] sm:$0xff]
  %v816 = vld [vmem:[%s3 + $0x1e8] sm:$0xff]
  %v817 = vld [vmem:[%s3 + $0x1f0] sm:$0xff]
  %v818 = vld [vmem:[%s3 + $0x1f8] sm:$0xff]
  %v819 = vld [vmem:[%s3 + $0x200] sm:$0xff]
  %v820 = vld [vmem:[%s3 + $0x208] sm:$0xff]
  %v821 = vld [vmem:[%s3 + $0x210] sm:$0xff]
  %v822 = vld [vmem:[%s3 + $0x218] sm:$0xff]
  %v823 = vld [vmem:[%s3 + $0x220] sm:$0xff]
  %v824 = vld [vmem:[%s3 + $0x228] sm:$0xff]
  %v825 = vld [vmem:[%s3 + $0x230] sm:$0xff]
  %v826 = vld [vmem:[%s3 + $0x238] sm:$0xff]
  %v827 = vld [vmem:[%s3 + $0x240] sm:$0xff]
  %v828 = vld [vmem:[%s3 + $0x248] sm:$0xff]
  %v829 = vld [vmem:[%s3 + $0x250] sm:$0xff]
  %v830 = vld [vmem:[%s3 + $0x258] sm:$0xff]
  %v831 = vld [vmem:[%s3 + $0x260] sm:$0xff]
  %v832 = vld [vmem:[%s3 + $0x268] sm:$0xff]
  %v833 = vld [vmem:[%s3 + $0x270] sm:$0xff]
  %v834 = vld [vmem:[%s3 + $0x278] sm:$0xff]
  %v835 = vld [vmem:[%s3 + $0x280] sm:$0xff]
  %v836 = vld [vmem:[%s3 + $0x288] sm:$0xff]
  %v837 = vld [vmem:[%s3 + $0x290] sm:$0xff]
  %v838 = vld [vmem:[%s3 + $0x298] sm:$0xff]
  %v839 = vld [vmem:[%s3 + $0x2a0] sm:$0xff]
  %v840 = vld [vmem:[%s3 + $0x2a8] sm:$0xff]
  %v841 = vld [vmem:[%s3 + $0x2b0] sm:$0xff]
  %v842 = vld [vmem:[%s3 + $0x2b8] sm:$0xff]
  %v843 = vld [vmem:[%s3 + $0x2c0] sm:$0xff]
  %v844 = vld [vmem:[%s3 + $0x2c8] sm:$0xff]
  %v845 = vld [vmem:[%s3 + $0x2d0] sm:$0xff]
  %v846 = vld [vmem:[%s3 + $0x2d8] sm:$0xff]
  %v847 = vld [vmem:[%s3 + $0x2e0] sm:$0xff]
  %v848 = vld [vmem:[%s3 + $0x2e8] sm:$0xff]
  %v849 = vld [vmem:[%s3 + $0x2f0] sm:$0xff]
  %v850 = vld [vmem:[%s3 + $0x2f8] sm:$0xff]
  %v851 = vld [vmem:[%s3 + $0x300] sm:$0xff]
  %v852 = vld [vmem:[%s3 + $0x308] sm:$0xff]
  %v853 = vld [vmem:[%s3 + $0x310] sm:$0xff]
  %v854 = vld [vmem:[%s3 + $0x318] sm:$0xff]
  %v855 = vld [vmem:[%s3 + $0x320] sm:$0xff]
  %v856 = vld [vmem:[%s3 + $0x328] sm:$0xff]
  %v857 = vld [vmem:[%s3 + $0x330] sm:$0xff]
  %v858 = vld [vmem:[%s3 + $0x338] sm:$0xff]
  %v859 = vld [vmem:[%s3 + $0x340] sm:$0xff]
  %v860 = vld [vmem:[%s3 + $0x348] sm:$0xff]
  %v861 = vld [vmem:[%s3 + $0x350] sm:$0xff]
  %v862 = vld [vmem:[%s3 + $0x358] sm:$0xff]
  %v863 = vld [vmem:[%s3 + $0x360] sm:$0xff]
  %v864 = vld [vmem:[%s3 + $0x368] sm:$0xff]
  %v865 = vld [vmem:[%s3 + $0x370] sm:$0xff]
  %v866 = vld [vmem:[%s3 + $0x378] sm:$0xff]
  %v867 = vld [vmem:[%s3 + $0x380] sm:$0xff]
  %v868 = vld [vmem:[%s3 + $0x388] sm:$0xff]
  %v869 = vld [vmem:[%s3 + $0x390] sm:$0xff]
  %v870 = vld [vmem:[%s3 + $0x398] sm:$0xff]
  %v871 = vld [vmem:[%s3 + $0x3a0] sm:$0xff]
  %v872 = vld [vmem:[%s3 + $0x3a8] sm:$0xff]
  %v873 = vld [vmem:[%s3 + $0x3b0] sm:$0xff]
  %v874 = vld [vmem:[%s3 + $0x3b8] sm:$0xff]
  %v875 = vld [vmem:[%s3 + $0x3c0] sm:$0xff]
  %v876 = vld [vmem:[%s3 + $0x3c8] sm:$0xff]
  %v877 = vld [vmem:[%s3 + $0x3d0] sm:$0xff]
  %v878 = vld [vmem:[%s3 + $0x3d8] sm:$0xff]
  %v879 = vld [vmem:[%s3 + $0x3e0] sm:$0xff]
  %v880 = vld [vmem:[%s3 + $0x3e8] sm:$0xff]
  %v881 = vld [vmem:[%s3 + $0x3f0] sm:$0xff]
  %v882 = vld [vmem:[%s3 + $0x3f8] sm:$0xff]
  %883 = vmatprep.subr.mxu0 %v756
  %884 = vmatpush1.msra.mxu0 %v755
  %885 = vmatprep.subr.mxu0 %v764
  %886 = vmatpush1.msra.mxu0 %v763
  %887 = vmatprep.subr.mxu0 %v772
  %888 = vmatpush1.msra.mxu0 %v771
  %889 = vmatprep.subr.mxu0 %v780
  %890 = vmatpush1.msra.mxu0 %v779
  %891 = vmatprep.subr.mxu0 %v788
  %892 = vmatpush1.msra.mxu0 %v787
  %893 = vmatprep.subr.mxu0 %v796
  %894 = vmatpush1.msra.mxu0 %v795
  %895 = vmatprep.subr.mxu0 %v804
  %896 = vmatpush1.msra.mxu0 %v803
  %897 = vmatprep.subr.mxu0 %v812
  %898 = vmatpush1.msra.mxu0 %v811
  %899 = vmatprep.subr.mxu0 %v820
  %900 = vmatpush1.msra.mxu0 %v819
  %901 = vmatprep.subr.mxu0 %v828
  %902 = vmatpush1.msra.mxu0 %v827
  %903 = vmatprep.subr.mxu0 %v836
  %904 = vmatpush1.msra.mxu0 %v835
  %905 = vmatprep.subr.mxu0 %v844
  %906 = vmatpush1.msra.mxu0 %v843
  %907 = vmatprep.subr.mxu0 %v852
  %908 = vmatpush1.msra.mxu0 %v851
  %909 = vmatprep.subr.mxu0 %v860
  %910 = vmatpush1.msra.mxu0 %v859
  %911 = vmatprep.subr.mxu0 %v868
  %912 = vmatpush1.msra.mxu0 %v867
  %913 = vmatprep.subr.mxu0 %v876
  %914 = vmatpush1.msra.mxu0 %v875
  %915 = vmatprep.subr.mxu0 0.0
  %916 = vmatpush1.msra.mxu0 0.0
  %917 = vmatprep.subr.mxu0 0.0
  %918 = vmatpush1.msra.mxu0 0.0
  %919 = vmatprep.subr.mxu0 0.0
  %920 = vmatpush1.msra.mxu0 0.0
  %921 = vmatprep.subr.mxu0 0.0
  %922 = vmatpush1.msra.mxu0 0.0
  %923 = vmatprep.subr.mxu0 0.0
  %924 = vmatpush1.msra.mxu0 0.0
  %925 = vmatprep.subr.mxu0 0.0
  %926 = vmatpush1.msra.mxu0 0.0
  %927 = vmatprep.subr.mxu0 0.0
  %928 = vmatpush1.msra.mxu0 0.0
  %929 = vmatprep.subr.mxu0 0.0
  %930 = vmatpush1.msra.mxu0 0.0
  %931 = vmatprep.subr.mxu0 0.0
  %932 = vmatpush1.msra.mxu0 0.0
  %933 = vmatprep.subr.mxu0 0.0
  %934 = vmatpush1.msra.mxu0 0.0
  %935 = vmatprep.subr.mxu0 0.0
  %936 = vmatpush1.msra.mxu0 0.0
  %937 = vmatprep.subr.mxu0 0.0
  %938 = vmatpush1.msra.mxu0 0.0
  %939 = vmatprep.subr.mxu0 0.0
  %940 = vmatpush1.msra.mxu0 0.0
  %941 = vmatprep.subr.mxu0 0.0
  %942 = vmatpush1.msra.mxu0 0.0
  %943 = vmatprep.subr.mxu0 0.0
  %944 = vmatpush1.msra.mxu0 0.0
  %945 = vmatprep.subr.mxu0 0.0
  %946 = vmatpush1.msra.mxu0 0.0
  %947 = vmatprep.mubr.f32.mxu0 0.0
  %948 = vmatmul.mubr.f32.gmra.mrb[0].mxu0 %v747
  %v949 = vpop.f32.mrb[0].mxu0
  %v950 = vadd.f32 0.0, %v949
  %v951 = vpop.f32.mrb[0].mxu0
  %v952 = vadd.f32 0.0, %v951
  %953 = vmatprep.mubr.f32.mxu0 0.0
  %954 = vmatmul.mubr.f32.gmra.mrb[0].mxu0 %v748
  %v955 = vpop.f32.mrb[0].mxu0
  %v956 = vadd.f32 0.0, %v955
  %v957 = vpop.f32.mrb[0].mxu0
  %v958 = vadd.f32 0.0, %v957
  %959 = vmatprep.mubr.f32.mxu0 0.0
  %960 = vmatmul.mubr.f32.gmra.mrb[0].mxu0 %v749
  %v961 = vpop.f32.mrb[0].mxu0
  %v962 = vadd.f32 0.0, %v961
  %v963 = vpop.f32.mrb[0].mxu0
  %v964 = vadd.f32 0.0, %v963
  %965 = vmatprep.mubr.f32.mxu0 0.0
  %966 = vmatmul.mubr.f32.gmra.mrb[0].mxu0 %v750
  %v967 = vpop.f32.mrb[0].mxu0
  %v968 = vadd.f32 0.0, %v967
  %v969 = vpop.f32.mrb[0].mxu0
  %v970 = vadd.f32 0.0, %v969
  %971 = vmatprep.mubr.f32.mxu0 0.0
  %972 = vmatmul.mubr.f32.gmra.mrb[0].mxu0 %v751
  %v973 = vpop.f32.mrb[0].mxu0
  %v974 = vadd.f32 0.0, %v973
  %v975 = vpop.f32.mrb[0].mxu0
  %v976 = vadd.f32 0.0, %v975
  %977 = vmatprep.mubr.f32.mxu0 0.0
  %978 = vmatmul.mubr.f32.gmra.mrb[0].mxu0 %v752
  %v979 = vpop.f32.mrb[0].mxu0
  %v980 = vadd.f32 0.0, %v979
  %v981 = vpop.f32.mrb[0].mxu0
  %v982 = vadd.f32 0.0, %v981
  %983 = vmatprep.mubr.f32.mxu0 0.0
  %984 = vmatmul.mubr.f32.gmra.mrb[0].mxu0 %v753
  %v985 = vpop.f32.mrb[0].mxu0
  %v986 = vadd.f32 0.0, %v985
  %v987 = vpop.f32.mrb[0].mxu0
  %v988 = vadd.f32 0.0, %v987
  %989 = vmatprep.mubr.f32.mxu0 0.0
  %990 = vmatmul.mubr.f32.gmra.mrb[0].mxu0 %v754
  %v991 = vpop.f32.mrb[0].mxu0
  %v992 = vadd.f32 0.0, %v991
  %v993 = vpop.f32.mrb[0].mxu0
  %v994 = vadd.f32 0.0, %v993
  %995 = vdwg.mxu0
  %996 = vmatprep.subr.mxu0 %v758
  %997 = vmatpush1.msra.mxu0 %v757
  %998 = vmatprep.subr.mxu0 %v766
  %999 = vmatpush1.msra.mxu0 %v765
  %1000 = vmatprep.subr.mxu0 %v774
  %1001 = vmatpush1.msra.mxu0 %v773
  %1002 = vmatprep.subr.mxu0 %v782
  %1003 = vmatpush1.msra.mxu0 %v781
  %1004 = vmatprep.subr.mxu0 %v790
  %1005 = vmatpush1.msra.mxu0 %v789
  %1006 = vmatprep.subr.mxu0 %v798
  %1007 = vmatpush1.msra.mxu0 %v797
  %1008 = vmatprep.subr.mxu0 %v806
  %1009 = vmatpush1.msra.mxu0 %v805
  %1010 = vmatprep.subr.mxu0 %v814
  %1011 = vmatpush1.msra.mxu0 %v813
  %1012 = vmatprep.subr.mxu0 %v822
  %1013 = vmatpush1.msra.mxu0 %v821
  %1014 = vmatprep.subr.mxu0 %v830
  %1015 = vmatpush1.msra.mxu0 %v829
  %1016 = vmatprep.subr.mxu0 %v838
  %1017 = vmatpush1.msra.mxu0 %v837
  %1018 = vmatprep.subr.mxu0 %v846
  %1019 = vmatpush1.msra.mxu0 %v845
  %1020 = vmatprep.subr.mxu0 %v854
  %1021 = vmatpush1.msra.mxu0 %v853
  %1022 = vmatprep.subr.mxu0 %v862
  %1023 = vmatpush1.msra.mxu0 %v861
  %1024 = vmatprep.subr.mxu0 %v870
  %1025 = vmatpush1.msra.mxu0 %v869
  %1026 = vmatprep.subr.mxu0 %v878
  %1027 = vmatpush1.msra.mxu0 %v877
  %1028 = vmatprep.subr.mxu0 0.0
  %1029 = vmatpush1.msra.mxu0 0.0
  %1030 = vmatprep.subr.mxu0 0.0
  %1031 = vmatpush1.msra.mxu0 0.0
  %1032 = vmatprep.subr.mxu0 0.0
  %1033 = vmatpush1.msra.mxu0 0.0
  %1034 = vmatprep.subr.mxu0 0.0
  %1035 = vmatpush1.msra.mxu0 0.0
  %1036 = vmatprep.subr.mxu0 0.0
  %1037 = vmatpush1.msra.mxu0 0.0
  %1038 = vmatprep.subr.mxu0 0.0
  %1039 = vmatpush1.msra.mxu0 0.0
  %1040 = vmatprep.subr.mxu0 0.0
  %1041 = vmatpush1.msra.mxu0 0.0
  %1042 = vmatprep.subr.mxu0 0.0
  %1043 = vmatpush1.msra.mxu0 0.0
  %1044 = vmatprep.subr.mxu0 0.0
  %1045 = vmatpush1.msra.mxu0 0.0
  %1046 = vmatprep.subr.mxu0 0.0
  %1047 = vmatpush1.msra.mxu0 0.0
  %1048 = vmatprep.subr.mxu0 0.0
  %1049 = vmatpush1.msra.mxu0 0.0
  %1050 = vmatprep.subr.mxu0 0.0
  %1051 = vmatpush1.msra.mxu0 0.0
  %1052 = vmatprep.subr.mxu0 0.0
  %1053 = vmatpush1.msra.mxu0 0.0
  %1054 = vmatprep.subr.mxu0 0.0
  %1055 = vmatpush1.msra.mxu0 0.0
  %1056 = vmatprep.subr.mxu0 0.0
  %1057 = vmatpush1.msra.mxu0 0.0
  %1058 = vmatprep.subr.mxu0 0.0
  %1059 = vmatpush1.msra.mxu0 0.0
  %1060 = vmatprep.mubr.f32.mxu0 0.0
  %1061 = vmatmul.mubr.f32.gmra.mrb[0].mxu0 %v747
  %v1062 = vpop.f32.mrb[0].mxu0
  %v1063 = vadd.f32 0.0, %v1062
  %v1064 = vpop.f32.mrb[0].mxu0
  %v1065 = vadd.f32 0.0, %v1064
  %1066 = vmatprep.mubr.f32.mxu0 0.0
  %1067 = vmatmul.mubr.f32.gmra.mrb[0].mxu0 %v748
  %v1068 = vpop.f32.mrb[0].mxu0
  %v1069 = vadd.f32 0.0, %v1068
  %v1070 = vpop.f32.mrb[0].mxu0
  %v1071 = vadd.f32 0.0, %v1070
  %1072 = vmatprep.mubr.f32.mxu0 0.0
  %1073 = vmatmul.mubr.f32.gmra.mrb[0].mxu0 %v749
  %v1074 = vpop.f32.mrb[0].mxu0
  %v1075 = vadd.f32 0.0, %v1074
  %v1076 = vpop.f32.mrb[0].mxu0
  %v1077 = vadd.f32 0.0, %v1076
  %1078 = vmatprep.mubr.f32.mxu0 0.0
  %1079 = vmatmul.mubr.f32.gmra.mrb[0].mxu0 %v750
  %v1080 = vpop.f32.mrb[0].mxu0
  %v1081 = vadd.f32 0.0, %v1080
  %v1082 = vpop.f32.mrb[0].mxu0
  %v1083 = vadd.f32 0.0, %v1082
  %1084 = vmatprep.mubr.f32.mxu0 0.0
  %1085 = vmatmul.mubr.f32.gmra.mrb[0].mxu0 %v751
  %v1086 = vpop.f32.mrb[0].mxu0
  %v1087 = vadd.f32 0.0, %v1086
  %v1088 = vpop.f32.mrb[0].mxu0
  %v1089 = vadd.f32 0.0, %v1088
  %1090 = vmatprep.mubr.f32.mxu0 0.0
  %1091 = vmatmul.mubr.f32.gmra.mrb[0].mxu0 %v752
  %v1092 = vpop.f32.mrb[0].mxu0
  %v1093 = vadd.f32 0.0, %v1092
  %v1094 = vpop.f32.mrb[0].mxu0
  %v1095 = vadd.f32 0.0, %v1094
  %1096 = vmatprep.mubr.f32.mxu0 0.0
  %1097 = vmatmul.mubr.f32.gmra.mrb[0].mxu0 %v753
  %v1098 = vpop.f32.mrb[0].mxu0
  %v1099 = vadd.f32 0.0, %v1098
  %v1100 = vpop.f32.mrb[0].mxu0
  %v1101 = vadd.f32 0.0, %v1100
  %1102 = vmatprep.mubr.f32.mxu0 0.0
  %1103 = vmatmul.mubr.f32.gmra.mrb[0].mxu0 %v754
  %v1104 = vpop.f32.mrb[0].mxu0
  %v1105 = vadd.f32 0.0, %v1104
  %v1106 = vpop.f32.mrb[0].mxu0
  %v1107 = vadd.f32 0.0, %v1106
  %1108 = vdwg.mxu0
  %1109 = vmatprep.subr.mxu0 %v760
  %1110 = vmatpush1.msra.mxu0 %v759
  %1111 = vmatprep.subr.mxu0 %v768
  %1112 = vmatpush1.msra.mxu0 %v767
  %1113 = vmatprep.subr.mxu0 %v776
  %1114 = vmatpush1.msra.mxu0 %v775
  %1115 = vmatprep.subr.mxu0 %v784
  %1116 = vmatpush1.msra.mxu0 %v783
  %1117 = vmatprep.subr.mxu0 %v792
  %1118 = vmatpush1.msra.mxu0 %v791
  %1119 = vmatprep.subr.mxu0 %v800
  %1120 = vmatpush1.msra.mxu0 %v799
  %1121 = vmatprep.subr.mxu0 %v808
  %1122 = vmatpush1.msra.mxu0 %v807
  %1123 = vmatprep.subr.mxu0 %v816
  %1124 = vmatpush1.msra.mxu0 %v815
  %1125 = vmatprep.subr.mxu0 %v824
  %1126 = vmatpush1.msra.mxu0 %v823
  %1127 = vmatprep.subr.mxu0 %v832
  %1128 = vmatpush1.msra.mxu0 %v831
  %1129 = vmatprep.subr.mxu0 %v840
  %1130 = vmatpush1.msra.mxu0 %v839
  %1131 = vmatprep.subr.mxu0 %v848
  %1132 = vmatpush1.msra.mxu0 %v847
  %1133 = vmatprep.subr.mxu0 %v856
  %1134 = vmatpush1.msra.mxu0 %v855
  %1135 = vmatprep.subr.mxu0 %v864
  %1136 = vmatpush1.msra.mxu0 %v863
  %1137 = vmatprep.subr.mxu0 %v872
  %1138 = vmatpush1.msra.mxu0 %v871
  %1139 = vmatprep.subr.mxu0 %v880
  %1140 = vmatpush1.msra.mxu0 %v879
  %1141 = vmatprep.subr.mxu0 0.0
  %1142 = vmatpush1.msra.mxu0 0.0
  %1143 = vmatprep.subr.mxu0 0.0
  %1144 = vmatpush1.msra.mxu0 0.0
  %1145 = vmatprep.subr.mxu0 0.0
  %1146 = vmatpush1.msra.mxu0 0.0
  %1147 = vmatprep.subr.mxu0 0.0
  %1148 = vmatpush1.msra.mxu0 0.0
  %1149 = vmatprep.subr.mxu0 0.0
  %1150 = vmatpush1.msra.mxu0 0.0
  %1151 = vmatprep.subr.mxu0 0.0
  %1152 = vmatpush1.msra.mxu0 0.0
  %1153 = vmatprep.subr.mxu0 0.0
  %1154 = vmatpush1.msra.mxu0 0.0
  %1155 = vmatprep.subr.mxu0 0.0
  %1156 = vmatpush1.msra.mxu0 0.0
  %1157 = vmatprep.subr.mxu0 0.0
  %1158 = vmatpush1.msra.mxu0 0.0
  %1159 = vmatprep.subr.mxu0 0.0
  %1160 = vmatpush1.msra.mxu0 0.0
  %1161 = vmatprep.subr.mxu0 0.0
  %1162 = vmatpush1.msra.mxu0 0.0
  %1163 = vmatprep.subr.mxu0 0.0
  %1164 = vmatpush1.msra.mxu0 0.0
  %1165 = vmatprep.subr.mxu0 0.0
  %1166 = vmatpush1.msra.mxu0 0.0
  %1167 = vmatprep.subr.mxu0 0.0
  %1168 = vmatpush1.msra.mxu0 0.0
  %1169 = vmatprep.subr.mxu0 0.0
  %1170 = vmatpush1.msra.mxu0 0.0
  %1171 = vmatprep.subr.mxu0 0.0
  %1172 = vmatpush1.msra.mxu0 0.0
  %1173 = vmatprep.mubr.f32.mxu0 0.0
  %1174 = vmatmul.mubr.f32.gmra.mrb[0].mxu0 %v747
  %v1175 = vpop.f32.mrb[0].mxu0
  %v1176 = vadd.f32 0.0, %v1175
  %v1177 = vpop.f32.mrb[0].mxu0
  %v1178 = vadd.f32 0.0, %v1177
  %1179 = vmatprep.mubr.f32.mxu0 0.0
  %1180 = vmatmul.mubr.f32.gmra.mrb[0].mxu0 %v748
  %v1181 = vpop.f32.mrb[0].mxu0
  %v1182 = vadd.f32 0.0, %v1181
  %v1183 = vpop.f32.mrb[0].mxu0
  %v1184 = vadd.f32 0.0, %v1183
  %1185 = vmatprep.mubr.f32.mxu0 0.0
  %1186 = vmatmul.mubr.f32.gmra.mrb[0].mxu0 %v749
  %v1187 = vpop.f32.mrb[0].mxu0
  %v1188 = vadd.f32 0.0, %v1187
  %v1189 = vpop.f32.mrb[0].mxu0
  %v1190 = vadd.f32 0.0, %v1189
  %1191 = vmatprep.mubr.f32.mxu0 0.0
  %1192 = vmatmul.mubr.f32.gmra.mrb[0].mxu0 %v750
  %v1193 = vpop.f32.mrb[0].mxu0
  %v1194 = vadd.f32 0.0, %v1193
  %v1195 = vpop.f32.mrb[0].mxu0
  %v1196 = vadd.f32 0.0, %v1195
  %1197 = vmatprep.mubr.f32.mxu0 0.0
  %1198 = vmatmul.mubr.f32.gmra.mrb[0].mxu0 %v751
  %v1199 = vpop.f32.mrb[0].mxu0
  %v1200 = vadd.f32 0.0, %v1199
  %v1201 = vpop.f32.mrb[0].mxu0
  %v1202 = vadd.f32 0.0, %v1201
  %1203 = vmatprep.mubr.f32.mxu0 0.0
  %1204 = vmatmul.mubr.f32.gmra.mrb[0].mxu0 %v752
  %v1205 = vpop.f32.mrb[0].mxu0
  %v1206 = vadd.f32 0.0, %v1205
  %v1207 = vpop.f32.mrb[0].mxu0
  %v1208 = vadd.f32 0.0, %v1207
  %1209 = vmatprep.mubr.f32.mxu0 0.0
  %1210 = vmatmul.mubr.f32.gmra.mrb[0].mxu0 %v753
  %v1211 = vpop.f32.mrb[0].mxu0
  %v1212 = vadd.f32 0.0, %v1211
  %v1213 = vpop.f32.mrb[0].mxu0
  %v1214 = vadd.f32 0.0, %v1213
  %1215 = vmatprep.mubr.f32.mxu0 0.0
  %1216 = vmatmul.mubr.f32.gmra.mrb[0].mxu0 %v754
  %v1217 = vpop.f32.mrb[0].mxu0
  %v1218 = vadd.f32 0.0, %v1217
  %v1219 = vpop.f32.mrb[0].mxu0
  %v1220 = vadd.f32 0.0, %v1219
  %1221 = vdwg.mxu0
  %1222 = vmatprep.subr.mxu0 %v762
  %1223 = vmatpush1.msra.mxu0 %v761
  %1224 = vmatprep.subr.mxu0 %v770
  %1225 = vmatpush1.msra.mxu0 %v769
  %1226 = vmatprep.subr.mxu0 %v778
  %1227 = vmatpush1.msra.mxu0 %v777
  %1228 = vmatprep.subr.mxu0 %v786
  %1229 = vmatpush1.msra.mxu0 %v785
  %1230 = vmatprep.subr.mxu0 %v794
  %1231 = vmatpush1.msra.mxu0 %v793
  %1232 = vmatprep.subr.mxu0 %v802
  %1233 = vmatpush1.msra.mxu0 %v801
  %1234 = vmatprep.subr.mxu0 %v810
  %1235 = vmatpush1.msra.mxu0 %v809
  %1236 = vmatprep.subr.mxu0 %v818
  %1237 = vmatpush1.msra.mxu0 %v817
  %1238 = vmatprep.subr.mxu0 %v826
  %1239 = vmatpush1.msra.mxu0 %v825
  %1240 = vmatprep.subr.mxu0 %v834
  %1241 = vmatpush1.msra.mxu0 %v833
  %1242 = vmatprep.subr.mxu0 %v842
  %1243 = vmatpush1.msra.mxu0 %v841
  %1244 = vmatprep.subr.mxu0 %v850
  %1245 = vmatpush1.msra.mxu0 %v849
  %1246 = vmatprep.subr.mxu0 %v858
  %1247 = vmatpush1.msra.mxu0 %v857
  %1248 = vmatprep.subr.mxu0 %v866
  %1249 = vmatpush1.msra.mxu0 %v865
  %1250 = vmatprep.subr.mxu0 %v874
  %1251 = vmatpush1.msra.mxu0 %v873
  %1252 = vmatprep.subr.mxu0 %v882
  %1253 = vmatpush1.msra.mxu0 %v881
  %1254 = vmatprep.subr.mxu0 0.0
  %1255 = vmatpush1.msra.mxu0 0.0
  %1256 = vmatprep.subr.mxu0 0.0
  %1257 = vmatpush1.msra.mxu0 0.0
  %1258 = vmatprep.subr.mxu0 0.0
  %1259 = vmatpush1.msra.mxu0 0.0
  %1260 = vmatprep.subr.mxu0 0.0
  %1261 = vmatpush1.msra.mxu0 0.0
  %1262 = vmatprep.subr.mxu0 0.0
  %1263 = vmatpush1.msra.mxu0 0.0
  %1264 = vmatprep.subr.mxu0 0.0
  %1265 = vmatpush1.msra.mxu0 0.0
  %1266 = vmatprep.subr.mxu0 0.0
  %1267 = vmatpush1.msra.mxu0 0.0
  %1268 = vmatprep.subr.mxu0 0.0
  %1269 = vmatpush1.msra.mxu0 0.0
  %1270 = vmatprep.subr.mxu0 0.0
  %1271 = vmatpush1.msra.mxu0 0.0
  %1272 = vmatprep.subr.mxu0 0.0
  %1273 = vmatpush1.msra.mxu0 0.0
  %1274 = vmatprep.subr.mxu0 0.0
  %1275 = vmatpush1.msra.mxu0 0.0
  %1276 = vmatprep.subr.mxu0 0.0
  %1277 = vmatpush1.msra.mxu0 0.0
  %1278 = vmatprep.subr.mxu0 0.0
  %1279 = vmatpush1.msra.mxu0 0.0
  %1280 = vmatprep.subr.mxu0 0.0
  %1281 = vmatpush1.msra.mxu0 0.0
  %1282 = vmatprep.subr.mxu0 0.0
  %1283 = vmatpush1.msra.mxu0 0.0
  %1284 = vmatprep.subr.mxu0 0.0
  %1285 = vmatpush1.msra.mxu0 0.0
  %1286 = vmatprep.mubr.f32.mxu0 0.0
  %1287 = vmatmul.mubr.f32.gmra.mrb[0].mxu0 %v747
  %v1288 = vpop.f32.mrb[0].mxu0
  %v1289 = vadd.f32 0.0, %v1288
  %v1290 = vpop.f32.mrb[0].mxu0
  %v1291 = vadd.f32 0.0, %v1290
  %1292 = vmatprep.mubr.f32.mxu0 0.0
  %1293 = vmatmul.mubr.f32.gmra.mrb[0].mxu0 %v748
  %v1294 = vpop.f32.mrb[0].mxu0
  %v1295 = vadd.f32 0.0, %v1294
  %v1296 = vpop.f32.mrb[0].mxu0
  %v1297 = vadd.f32 0.0, %v1296
  %1298 = vmatprep.mubr.f32.mxu0 0.0
  %1299 = vmatmul.mubr.f32.gmra.mrb[0].mxu0 %v749
  %v1300 = vpop.f32.mrb[0].mxu0
  %v1301 = vadd.f32 0.0, %v1300
  %v1302 = vpop.f32.mrb[0].mxu0
  %v1303 = vadd.f32 0.0, %v1302
  %1304 = vmatprep.mubr.f32.mxu0 0.0
  %1305 = vmatmul.mubr.f32.gmra.mrb[0].mxu0 %v750
  %v1306 = vpop.f32.mrb[0].mxu0
  %v1307 = vadd.f32 0.0, %v1306
  %v1308 = vpop.f32.mrb[0].mxu0
  %v1309 = vadd.f32 0.0, %v1308
  %1310 = vmatprep.mubr.f32.mxu0 0.0
  %1311 = vmatmul.mubr.f32.gmra.mrb[0].mxu0 %v751
  %v1312 = vpop.f32.mrb[0].mxu0
  %v1313 = vadd.f32 0.0, %v1312
  %v1314 = vpop.f32.mrb[0].mxu0
  %v1315 = vadd.f32 0.0, %v1314
  %1316 = vmatprep.mubr.f32.mxu0 0.0
  %1317 = vmatmul.mubr.f32.gmra.mrb[0].mxu0 %v752
  %v1318 = vpop.f32.mrb[0].mxu0
  %v1319 = vadd.f32 0.0, %v1318
  %v1320 = vpop.f32.mrb[0].mxu0
  %v1321 = vadd.f32 0.0, %v1320
  %1322 = vmatprep.mubr.f32.mxu0 0.0
  %1323 = vmatmul.mubr.f32.gmra.mrb[0].mxu0 %v753
  %v1324 = vpop.f32.mrb[0].mxu0
  %v1325 = vadd.f32 0.0, %v1324
  %v1326 = vpop.f32.mrb[0].mxu0
  %v1327 = vadd.f32 0.0, %v1326
  %1328 = vmatprep.mubr.f32.mxu0 0.0
  %1329 = vmatmul.mubr.f32.gmra.mrb[0].mxu0 %v754
  %v1330 = vpop.f32.mrb[0].mxu0
  %v1331 = vadd.f32 0.0, %v1330
  %v1332 = vpop.f32.mrb[0].mxu0
  %v1333 = vadd.f32 0.0, %v1332
  %1334 = vdwg.mxu0
  %v1335 = vld [vmem:[%s6] sm:$0xf]
  %v1336 = vld [vmem:[%s6 + $0x4] sm:$0xf]
  %v1337 = vld [vmem:[%s6 + $0x8] sm:$0xf]
  %v1338 = vld [vmem:[%s6 + $0xc] sm:$0xf]
  %v1339 = vld [vmem:[%s6 + $0x10] sm:$0xf]
  %v1340 = vld [vmem:[%s6 + $0x14] sm:$0xf]
  %v1341 = vld [vmem:[%s6 + $0x18] sm:$0xf]
  %v1342 = vld [vmem:[%s6 + $0x1c] sm:$0xf]
  %v1343 = vld [vmem:[%s6 + $0x20] sm:$0xf]
  %v1344 = vld [vmem:[%s6 + $0x24] sm:$0xf]
  %v1345 = vld [vmem:[%s6 + $0x28] sm:$0xf]
  %v1346 = vld [vmem:[%s6 + $0x2c] sm:$0xf]
  %v1347 = vld [vmem:[%s6 + $0x30] sm:$0xf]
  %v1348 = vld [vmem:[%s6 + $0x34] sm:$0xf]
  %v1349 = vld [vmem:[%s6 + $0x38] sm:$0xf]
  %v1350 = vld [vmem:[%s6 + $0x3c] sm:$0xf]
  %v1351 = vld [vmem:[%s6 + $0x40] sm:$0xf]
  %v1352 = vld [vmem:[%s6 + $0x44] sm:$0xf]
  %v1353 = vld [vmem:[%s6 + $0x48] sm:$0xf]
  %v1354 = vld [vmem:[%s6 + $0x4c] sm:$0xf]
  %v1355 = vld [vmem:[%s6 + $0x50] sm:$0xf]
  %v1356 = vld [vmem:[%s6 + $0x54] sm:$0xf]
  %v1357 = vld [vmem:[%s6 + $0x58] sm:$0xf]
  %v1358 = vld [vmem:[%s6 + $0x5c] sm:$0xf]
  %v1359 = vld [vmem:[%s6 + $0x60] sm:$0xf]
  %v1360 = vld [vmem:[%s6 + $0x64] sm:$0xf]
  %v1361 = vld [vmem:[%s6 + $0x68] sm:$0xf]
  %v1362 = vld [vmem:[%s6 + $0x6c] sm:$0xf]
  %v1363 = vld [vmem:[%s6 + $0x70] sm:$0xf]
  %v1364 = vld [vmem:[%s6 + $0x74] sm:$0xf]
  %v1365 = vld [vmem:[%s6 + $0x78] sm:$0xf]
  %v1366 = vld [vmem:[%s6 + $0x7c] sm:$0xf]
  %v1367 = vld [vmem:[%s6 + $0x80] sm:$0xf]
  %v1368 = vld [vmem:[%s6 + $0x84] sm:$0xf]
  %v1369 = vld [vmem:[%s6 + $0x88] sm:$0xf]
  %v1370 = vld [vmem:[%s6 + $0x8c] sm:$0xf]
  %v1371 = vld [vmem:[%s6 + $0x90] sm:$0xf]
  %v1372 = vld [vmem:[%s6 + $0x94] sm:$0xf]
  %v1373 = vld [vmem:[%s6 + $0x98] sm:$0xf]
  %v1374 = vld [vmem:[%s6 + $0x9c] sm:$0xf]
  %v1375 = vld [vmem:[%s6 + $0xa0] sm:$0xf]
  %v1376 = vld [vmem:[%s6 + $0xa4] sm:$0xf]
  %v1377 = vld [vmem:[%s6 + $0xa8] sm:$0xf]
  %v1378 = vld [vmem:[%s6 + $0xac] sm:$0xf]
  %v1379 = vld [vmem:[%s6 + $0xb0] sm:$0xf]
  %v1380 = vld [vmem:[%s6 + $0xb4] sm:$0xf]
  %v1381 = vld [vmem:[%s6 + $0xb8] sm:$0xf]
  %v1382 = vld [vmem:[%s6 + $0xbc] sm:$0xf]
  %v1383 = vld [vmem:[%s6 + $0xc0] sm:$0xf]
  %v1384 = vld [vmem:[%s6 + $0xc4] sm:$0xf]
  %v1385 = vld [vmem:[%s6 + $0xc8] sm:$0xf]
  %v1386 = vld [vmem:[%s6 + $0xcc] sm:$0xf]
  %v1387 = vld [vmem:[%s6 + $0xd0] sm:$0xf]
  %v1388 = vld [vmem:[%s6 + $0xd4] sm:$0xf]
  %v1389 = vld [vmem:[%s6 + $0xd8] sm:$0xf]
  %v1390 = vld [vmem:[%s6 + $0xdc] sm:$0xf]
  %v1391 = vld [vmem:[%s6 + $0xe0] sm:$0xf]
  %v1392 = vld [vmem:[%s6 + $0xe4] sm:$0xf]
  %v1393 = vld [vmem:[%s6 + $0xe8] sm:$0xf]
  %v1394 = vld [vmem:[%s6 + $0xec] sm:$0xf]
  %v1395 = vld [vmem:[%s6 + $0xf0] sm:$0xf]
  %v1396 = vld [vmem:[%s6 + $0xf4] sm:$0xf]
  %v1397 = vld [vmem:[%s6 + $0xf8] sm:$0xf]
  %v1398 = vld [vmem:[%s6 + $0xfc] sm:$0xf]
  %v1399 = vld [vmem:[%s6 + $0x100] sm:$0xf]
  %v1400 = vld [vmem:[%s6 + $0x104] sm:$0xf]
  %v1401 = vld [vmem:[%s6 + $0x108] sm:$0xf]
  %v1402 = vld [vmem:[%s6 + $0x10c] sm:$0xf]
  %v1403 = vld [vmem:[%s6 + $0x110] sm:$0xf]
  %v1404 = vld [vmem:[%s6 + $0x114] sm:$0xf]
  %v1405 = vld [vmem:[%s6 + $0x118] sm:$0xf]
  %v1406 = vld [vmem:[%s6 + $0x11c] sm:$0xf]
  %v1407 = vld [vmem:[%s6 + $0x120] sm:$0xf]
  %v1408 = vld [vmem:[%s6 + $0x124] sm:$0xf]
  %v1409 = vld [vmem:[%s6 + $0x128] sm:$0xf]
  %v1410 = vld [vmem:[%s6 + $0x12c] sm:$0xf]
  %v1411 = vld [vmem:[%s6 + $0x130] sm:$0xf]
  %v1412 = vld [vmem:[%s6 + $0x134] sm:$0xf]
  %v1413 = vld [vmem:[%s6 + $0x138] sm:$0xf]
  %v1414 = vld [vmem:[%s6 + $0x13c] sm:$0xf]
  %v1415 = vld [vmem:[%s6 + $0x140] sm:$0xf]
  %v1416 = vld [vmem:[%s6 + $0x144] sm:$0xf]
  %v1417 = vld [vmem:[%s6 + $0x148] sm:$0xf]
  %v1418 = vld [vmem:[%s6 + $0x14c] sm:$0xf]
  %v1419 = vld [vmem:[%s6 + $0x150] sm:$0xf]
  %v1420 = vld [vmem:[%s6 + $0x154] sm:$0xf]
  %v1421 = vld [vmem:[%s6 + $0x158] sm:$0xf]
  %v1422 = vld [vmem:[%s6 + $0x15c] sm:$0xf]
  %v1423 = vld [vmem:[%s6 + $0x160] sm:$0xf]
  %v1424 = vld [vmem:[%s6 + $0x164] sm:$0xf]
  %v1425 = vld [vmem:[%s6 + $0x168] sm:$0xf]
  %v1426 = vld [vmem:[%s6 + $0x16c] sm:$0xf]
  %v1427 = vld [vmem:[%s6 + $0x170] sm:$0xf]
  %v1428 = vld [vmem:[%s6 + $0x174] sm:$0xf]
  %v1429 = vld [vmem:[%s6 + $0x178] sm:$0xf]
  %v1430 = vld [vmem:[%s6 + $0x17c] sm:$0xf]
  %v1431 = vld [vmem:[%s6 + $0x180] sm:$0xf]
  %v1432 = vld [vmem:[%s6 + $0x184] sm:$0xf]
  %v1433 = vld [vmem:[%s6 + $0x188] sm:$0xf]
  %v1434 = vld [vmem:[%s6 + $0x18c] sm:$0xf]
  %v1435 = vld [vmem:[%s6 + $0x190] sm:$0xf]
  %v1436 = vld [vmem:[%s6 + $0x194] sm:$0xf]
  %v1437 = vld [vmem:[%s6 + $0x198] sm:$0xf]
  %v1438 = vld [vmem:[%s6 + $0x19c] sm:$0xf]
  %v1439 = vld [vmem:[%s6 + $0x1a0] sm:$0xf]
  %v1440 = vld [vmem:[%s6 + $0x1a4] sm:$0xf]
  %v1441 = vld [vmem:[%s6 + $0x1a8] sm:$0xf]
  %v1442 = vld [vmem:[%s6 + $0x1ac] sm:$0xf]
  %v1443 = vld [vmem:[%s6 + $0x1b0] sm:$0xf]
  %v1444 = vld [vmem:[%s6 + $0x1b4] sm:$0xf]
  %v1445 = vld [vmem:[%s6 + $0x1b8] sm:$0xf]
  %v1446 = vld [vmem:[%s6 + $0x1bc] sm:$0xf]
  %v1447 = vld [vmem:[%s6 + $0x1c0] sm:$0xf]
  %v1448 = vld [vmem:[%s6 + $0x1c4] sm:$0xf]
  %v1449 = vld [vmem:[%s6 + $0x1c8] sm:$0xf]
  %v1450 = vld [vmem:[%s6 + $0x1cc] sm:$0xf]
  %v1451 = vld [vmem:[%s6 + $0x1d0] sm:$0xf]
  %v1452 = vld [vmem:[%s6 + $0x1d4] sm:$0xf]
  %v1453 = vld [vmem:[%s6 + $0x1d8] sm:$0xf]
  %v1454 = vld [vmem:[%s6 + $0x1dc] sm:$0xf]
  %v1455 = vld [vmem:[%s6 + $0x1e0] sm:$0xf]
  %v1456 = vld [vmem:[%s6 + $0x1e4] sm:$0xf]
  %v1457 = vld [vmem:[%s6 + $0x1e8] sm:$0xf]
  %v1458 = vld [vmem:[%s6 + $0x1ec] sm:$0xf]
  %v1459 = vld [vmem:[%s6 + $0x1f0] sm:$0xf]
  %v1460 = vld [vmem:[%s6 + $0x1f4] sm:$0xf]
  %v1461 = vld [vmem:[%s6 + $0x1f8] sm:$0xf]
  %v1462 = vld [vmem:[%s6 + $0x1fc] sm:$0xf]
  %v1463 = vunpack.c.l.bf16 %v1335
  %v1464 = vunpack.c.l.bf16 %v1336
  %v1465 = vunpack.c.l.bf16 %v1337
  %v1466 = vunpack.c.l.bf16 %v1338
  %v1467 = vunpack.c.l.bf16 %v1339
  %v1468 = vunpack.c.l.bf16 %v1340
  %v1469 = vunpack.c.l.bf16 %v1341
  %v1470 = vunpack.c.l.bf16 %v1342
  %v1471 = vunpack.c.l.bf16 %v1343
  %v1472 = vunpack.c.l.bf16 %v1344
  %v1473 = vunpack.c.l.bf16 %v1345
  %v1474 = vunpack.c.l.bf16 %v1346
  %v1475 = vunpack.c.l.bf16 %v1347
  %v1476 = vunpack.c.l.bf16 %v1348
  %v1477 = vunpack.c.l.bf16 %v1349
  %v1478 = vunpack.c.l.bf16 %v1350
  %v1479 = vunpack.c.l.bf16 %v1351
  %v1480 = vunpack.c.l.bf16 %v1352
  %v1481 = vunpack.c.l.bf16 %v1353
  %v1482 = vunpack.c.l.bf16 %v1354
  %v1483 = vunpack.c.l.bf16 %v1355
  %v1484 = vunpack.c.l.bf16 %v1356
  %v1485 = vunpack.c.l.bf16 %v1357
  %v1486 = vunpack.c.l.bf16 %v1358
  %v1487 = vunpack.c.l.bf16 %v1359
  %v1488 = vunpack.c.l.bf16 %v1360
  %v1489 = vunpack.c.l.bf16 %v1361
  %v1490 = vunpack.c.l.bf16 %v1362
  %v1491 = vunpack.c.l.bf16 %v1363
  %v1492 = vunpack.c.l.bf16 %v1364
  %v1493 = vunpack.c.l.bf16 %v1365
  %v1494 = vunpack.c.l.bf16 %v1366
  %v1495 = vunpack.c.l.bf16 %v1367
  %v1496 = vunpack.c.l.bf16 %v1368
  %v1497 = vunpack.c.l.bf16 %v1369
  %v1498 = vunpack.c.l.bf16 %v1370
  %v1499 = vunpack.c.l.bf16 %v1371
  %v1500 = vunpack.c.l.bf16 %v1372
  %v1501 = vunpack.c.l.bf16 %v1373
  %v1502 = vunpack.c.l.bf16 %v1374
  %v1503 = vunpack.c.l.bf16 %v1375
  %v1504 = vunpack.c.l.bf16 %v1376
  %v1505 = vunpack.c.l.bf16 %v1377
  %v1506 = vunpack.c.l.bf16 %v1378
  %v1507 = vunpack.c.l.bf16 %v1379
  %v1508 = vunpack.c.l.bf16 %v1380
  %v1509 = vunpack.c.l.bf16 %v1381
  %v1510 = vunpack.c.l.bf16 %v1382
  %v1511 = vunpack.c.l.bf16 %v1383
  %v1512 = vunpack.c.l.bf16 %v1384
  %v1513 = vunpack.c.l.bf16 %v1385
  %v1514 = vunpack.c.l.bf16 %v1386
  %v1515 = vunpack.c.l.bf16 %v1387
  %v1516 = vunpack.c.l.bf16 %v1388
  %v1517 = vunpack.c.l.bf16 %v1389
  %v1518 = vunpack.c.l.bf16 %v1390
  %v1519 = vunpack.c.l.bf16 %v1391
  %v1520 = vunpack.c.l.bf16 %v1392
  %v1521 = vunpack.c.l.bf16 %v1393
  %v1522 = vunpack.c.l.bf16 %v1394
  %v1523 = vunpack.c.l.bf16 %v1395
  %v1524 = vunpack.c.l.bf16 %v1396
  %v1525 = vunpack.c.l.bf16 %v1397
  %v1526 = vunpack.c.l.bf16 %v1398
  %v1527 = vunpack.c.l.bf16 %v1399
  %v1528 = vunpack.c.l.bf16 %v1400
  %v1529 = vunpack.c.l.bf16 %v1401
  %v1530 = vunpack.c.l.bf16 %v1402
  %v1531 = vunpack.c.l.bf16 %v1403
  %v1532 = vunpack.c.l.bf16 %v1404
  %v1533 = vunpack.c.l.bf16 %v1405
  %v1534 = vunpack.c.l.bf16 %v1406
  %v1535 = vunpack.c.l.bf16 %v1407
  %v1536 = vunpack.c.l.bf16 %v1408
  %v1537 = vunpack.c.l.bf16 %v1409
  %v1538 = vunpack.c.l.bf16 %v1410
  %v1539 = vunpack.c.l.bf16 %v1411
  %v1540 = vunpack.c.l.bf16 %v1412
  %v1541 = vunpack.c.l.bf16 %v1413
  %v1542 = vunpack.c.l.bf16 %v1414
  %v1543 = vunpack.c.l.bf16 %v1415
  %v1544 = vunpack.c.l.bf16 %v1416
  %v1545 = vunpack.c.l.bf16 %v1417
  %v1546 = vunpack.c.l.bf16 %v1418
  %v1547 = vunpack.c.l.bf16 %v1419
  %v1548 = vunpack.c.l.bf16 %v1420
  %v1549 = vunpack.c.l.bf16 %v1421
  %v1550 = vunpack.c.l.bf16 %v1422
  %v1551 = vunpack.c.l.bf16 %v1423
  %v1552 = vunpack.c.l.bf16 %v1424
  %v1553 = vunpack.c.l.bf16 %v1425
  %v1554 = vunpack.c.l.bf16 %v1426
  %v1555 = vunpack.c.l.bf16 %v1427
  %v1556 = vunpack.c.l.bf16 %v1428
  %v1557 = vunpack.c.l.bf16 %v1429
  %v1558 = vunpack.c.l.bf16 %v1430
  %v1559 = vunpack.c.l.bf16 %v1431
  %v1560 = vunpack.c.l.bf16 %v1432
  %v1561 = vunpack.c.l.bf16 %v1433
  %v1562 = vunpack.c.l.bf16 %v1434
  %v1563 = vunpack.c.l.bf16 %v1435
  %v1564 = vunpack.c.l.bf16 %v1436
  %v1565 = vunpack.c.l.bf16 %v1437
  %v1566 = vunpack.c.l.bf16 %v1438
  %v1567 = vunpack.c.l.bf16 %v1439
  %v1568 = vunpack.c.l.bf16 %v1440
  %v1569 = vunpack.c.l.bf16 %v1441
  %v1570 = vunpack.c.l.bf16 %v1442
  %v1571 = vunpack.c.l.bf16 %v1443
  %v1572 = vunpack.c.l.bf16 %v1444
  %v1573 = vunpack.c.l.bf16 %v1445
  %v1574 = vunpack.c.l.bf16 %v1446
  %v1575 = vunpack.c.l.bf16 %v1447
  %v1576 = vunpack.c.l.bf16 %v1448
  %v1577 = vunpack.c.l.bf16 %v1449
  %v1578 = vunpack.c.l.bf16 %v1450
  %v1579 = vunpack.c.l.bf16 %v1451
  %v1580 = vunpack.c.l.bf16 %v1452
  %v1581 = vunpack.c.l.bf16 %v1453
  %v1582 = vunpack.c.l.bf16 %v1454
  %v1583 = vunpack.c.l.bf16 %v1455
  %v1584 = vunpack.c.l.bf16 %v1456
  %v1585 = vunpack.c.l.bf16 %v1457
  %v1586 = vunpack.c.l.bf16 %v1458
  %v1587 = vunpack.c.l.bf16 %v1459
  %v1588 = vunpack.c.l.bf16 %v1460
  %v1589 = vunpack.c.l.bf16 %v1461
  %v1590 = vunpack.c.l.bf16 %v1462
  %v1591 = vld [vmem:[%s7] sm:$0xff]
  %v1592 = vld [vmem:[%s7 + $0x8] sm:$0xff]
  %v1593 = vld [vmem:[%s7 + $0x10] sm:$0xff]
  %v1594 = vld [vmem:[%s7 + $0x18] sm:$0xff]
  %v1595 = vld [vmem:[%s7 + $0x20] sm:$0xff]
  %v1596 = vld [vmem:[%s7 + $0x28] sm:$0xff]
  %v1597 = vld [vmem:[%s7 + $0x30] sm:$0xff]
  %v1598 = vld [vmem:[%s7 + $0x38] sm:$0xff]
  %v1599 = vld [vmem:[%s7 + $0x40] sm:$0xff]
  %v1600 = vld [vmem:[%s7 + $0x48] sm:$0xff]
  %v1601 = vld [vmem:[%s7 + $0x50] sm:$0xff]
  %v1602 = vld [vmem:[%s7 + $0x58] sm:$0xff]
  %v1603 = vld [vmem:[%s7 + $0x60] sm:$0xff]
  %v1604 = vld [vmem:[%s7 + $0x68] sm:$0xff]
  %v1605 = vld [vmem:[%s7 + $0x70] sm:$0xff]
  %v1606 = vld [vmem:[%s7 + $0x78] sm:$0xff]
  %v1607 = vunpack.c.l.bf16 %v1591
  %v1608 = vunpack.c.h.bf16 %v1591
  %v1609 = vunpack.c.l.bf16 %v1592
  %v1610 = vunpack.c.h.bf16 %v1592
  %v1611 = vunpack.c.l.bf16 %v1593
  %v1612 = vunpack.c.h.bf16 %v1593
  %v1613 = vunpack.c.l.bf16 %v1594
  %v1614 = vunpack.c.h.bf16 %v1594
  %v1615 = vunpack.c.l.bf16 %v1595
  %v1616 = vunpack.c.h.bf16 %v1595
  %v1617 = vunpack.c.l.bf16 %v1596
  %v1618 = vunpack.c.h.bf16 %v1596
  %v1619 = vunpack.c.l.bf16 %v1597
  %v1620 = vunpack.c.h.bf16 %v1597
  %v1621 = vunpack.c.l.bf16 %v1598
  %v1622 = vunpack.c.h.bf16 %v1598
  %v1623 = vunpack.c.l.bf16 %v1599
  %v1624 = vunpack.c.h.bf16 %v1599
  %v1625 = vunpack.c.l.bf16 %v1600
  %v1626 = vunpack.c.h.bf16 %v1600
  %v1627 = vunpack.c.l.bf16 %v1601
  %v1628 = vunpack.c.h.bf16 %v1601
  %v1629 = vunpack.c.l.bf16 %v1602
  %v1630 = vunpack.c.h.bf16 %v1602
  %v1631 = vunpack.c.l.bf16 %v1603
  %v1632 = vunpack.c.h.bf16 %v1603
  %v1633 = vunpack.c.l.bf16 %v1604
  %v1634 = vunpack.c.h.bf16 %v1604
  %v1635 = vunpack.c.l.bf16 %v1605
  %v1636 = vunpack.c.h.bf16 %v1605
  %v1637 = vunpack.c.l.bf16 %v1606
  %v1638 = vunpack.c.h.bf16 %v1606
  %v1639 = vld [vmem:[%s10] sm:$0x1]
  %v1640 = vld [vmem:[%s11] sm:$0x1]
  %v1641 = vadd.f32 %v950, %v956
  %v1642 = vadd.f32 %v1641, %v962
  %v1643 = vadd.f32 %v1642, %v968
  %v1644 = vadd.f32 %v1643, %v974
  %v1645 = vadd.f32 %v1644, %v980
  %v1646 = vadd.f32 %v1645, %v986
  %v1647 = vadd.f32 %v1646, %v992
  %v1648 = vrot.slane %v1647, 4
  %v1649 = vadd.f32 %v1647, %v1648
  %v1650 = vrot.slane %v1649, 2
  %v1651 = vadd.f32 %v1649, %v1650
  %v1652 = vrot.slane %v1651, 1
  %v1653 = vadd.f32 %v1651, %v1652
  %v1654 = vadd.f32 %v952, %v958
  %v1655 = vadd.f32 %v1654, %v964
  %v1656 = vadd.f32 %v1655, %v970
  %v1657 = vadd.f32 %v1656, %v976
  %v1658 = vadd.f32 %v1657, %v982
  %v1659 = vadd.f32 %v1658, %v988
  %v1660 = vadd.f32 %v1659, %v994
  %v1661 = vrot.slane %v1660, 4
  %v1662 = vadd.f32 %v1660, %v1661
  %v1663 = vrot.slane %v1662, 2
  %v1664 = vadd.f32 %v1662, %v1663
  %v1665 = vrot.slane %v1664, 1
  %v1666 = vadd.f32 %v1664, %v1665
  %v1667 = vadd.f32 %v1063, %v1069
  %v1668 = vadd.f32 %v1667, %v1075
  %v1669 = vadd.f32 %v1668, %v1081
  %v1670 = vadd.f32 %v1669, %v1087
  %v1671 = vadd.f32 %v1670, %v1093
  %v1672 = vadd.f32 %v1671, %v1099
  %v1673 = vadd.f32 %v1672, %v1105
  %v1674 = vrot.slane %v1673, 4
  %v1675 = vadd.f32 %v1673, %v1674
  %v1676 = vrot.slane %v1675, 2
  %v1677 = vadd.f32 %v1675, %v1676
  %v1678 = vrot.slane %v1677, 1
  %v1679 = vadd.f32 %v1677, %v1678
  %v1680 = vadd.f32 %v1065, %v1071
  %v1681 = vadd.f32 %v1680, %v1077
  %v1682 = vadd.f32 %v1681, %v1083
  %v1683 = vadd.f32 %v1682, %v1089
  %v1684 = vadd.f32 %v1683, %v1095
  %v1685 = vadd.f32 %v1684, %v1101
  %v1686 = vadd.f32 %v1685, %v1107
  %v1687 = vrot.slane %v1686, 4
  %v1688 = vadd.f32 %v1686, %v1687
  %v1689 = vrot.slane %v1688, 2
  %v1690 = vadd.f32 %v1688, %v1689
  %v1691 = vrot.slane %v1690, 1
  %v1692 = vadd.f32 %v1690, %v1691
  %v1693 = vadd.f32 %v1176, %v1182
  %v1694 = vadd.f32 %v1693, %v1188
  %v1695 = vadd.f32 %v1694, %v1194
  %v1696 = vadd.f32 %v1695, %v1200
  %v1697 = vadd.f32 %v1696, %v1206
  %v1698 = vadd.f32 %v1697, %v1212
  %v1699 = vadd.f32 %v1698, %v1218
  %v1700 = vrot.slane %v1699, 4
  %v1701 = vadd.f32 %v1699, %v1700
  %v1702 = vrot.slane %v1701, 2
  %v1703 = vadd.f32 %v1701, %v1702
  %v1704 = vrot.slane %v1703, 1
  %v1705 = vadd.f32 %v1703, %v1704
  %v1706 = vadd.f32 %v1178, %v1184
  %v1707 = vadd.f32 %v1706, %v1190
  %v1708 = vadd.f32 %v1707, %v1196
  %v1709 = vadd.f32 %v1708, %v1202
  %v1710 = vadd.f32 %v1709, %v1208
  %v1711 = vadd.f32 %v1710, %v1214
  %v1712 = vadd.f32 %v1711, %v1220
  %v1713 = vrot.slane %v1712, 4
  %v1714 = vadd.f32 %v1712, %v1713
  %v1715 = vrot.slane %v1714, 2
  %v1716 = vadd.f32 %v1714, %v1715
  %v1717 = vrot.slane %v1716, 1
  %v1718 = vadd.f32 %v1716, %v1717
  %v1719 = vadd.f32 %v1289, %v1295
  %v1720 = vadd.f32 %v1719, %v1301
  %v1721 = vadd.f32 %v1720, %v1307
  %v1722 = vadd.f32 %v1721, %v1313
  %v1723 = vadd.f32 %v1722, %v1319
  %v1724 = vadd.f32 %v1723, %v1325
  %v1725 = vadd.f32 %v1724, %v1331
  %v1726 = vrot.slane %v1725, 4
  %v1727 = vadd.f32 %v1725, %v1726
  %v1728 = vrot.slane %v1727, 2
  %v1729 = vadd.f32 %v1727, %v1728
  %v1730 = vrot.slane %v1729, 1
  %v1731 = vadd.f32 %v1729, %v1730
  %v1732 = vadd.f32 %v1291, %v1297
  %v1733 = vadd.f32 %v1732, %v1303
  %v1734 = vadd.f32 %v1733, %v1309
  %v1735 = vadd.f32 %v1734, %v1315
  %v1736 = vadd.f32 %v1735, %v1321
  %v1737 = vadd.f32 %v1736, %v1327
  %v1738 = vadd.f32 %v1737, %v1333
  %v1739 = vrot.slane %v1738, 4
  %v1740 = vadd.f32 %v1738, %v1739
  %v1741 = vrot.slane %v1740, 2
  %v1742 = vadd.f32 %v1740, %v1741
  %v1743 = vrot.slane %v1742, 1
  %v1744 = vadd.f32 %v1742, %v1743
  %v1745 = vmul.f32 %v950, %v950
  %v1746 = vmul.f32 %v952, %v952
  %v1747 = vmul.f32 %v1063, %v1063
  %v1748 = vmul.f32 %v1065, %v1065
  %v1749 = vmul.f32 %v1176, %v1176
  %v1750 = vmul.f32 %v1178, %v1178
  %v1751 = vmul.f32 %v1289, %v1289
  %v1752 = vmul.f32 %v1291, %v1291
  %v1753 = vmul.f32 %v956, %v956
  %v1754 = vmul.f32 %v958, %v958
  %v1755 = vmul.f32 %v1069, %v1069
  %v1756 = vmul.f32 %v1071, %v1071
  %v1757 = vmul.f32 %v1182, %v1182
  %v1758 = vmul.f32 %v1184, %v1184
  %v1759 = vmul.f32 %v1295, %v1295
  %v1760 = vmul.f32 %v1297, %v1297
  %v1761 = vmul.f32 %v962, %v962
  %v1762 = vmul.f32 %v964, %v964
  %v1763 = vmul.f32 %v1075, %v1075
  %v1764 = vmul.f32 %v1077, %v1077
  %v1765 = vmul.f32 %v1188, %v1188
  %v1766 = vmul.f32 %v1190, %v1190
  %v1767 = vmul.f32 %v1301, %v1301
  %v1768 = vmul.f32 %v1303, %v1303
  %v1769 = vmul.f32 %v968, %v968
  %v1770 = vmul.f32 %v970, %v970
  %v1771 = vmul.f32 %v1081, %v1081
  %v1772 = vmul.f32 %v1083, %v1083
  %v1773 = vmul.f32 %v1194, %v1194
  %v1774 = vmul.f32 %v1196, %v1196
  %v1775 = vmul.f32 %v1307, %v1307
  %v1776 = vmul.f32 %v1309, %v1309
  %v1777 = vmul.f32 %v974, %v974
  %v1778 = vmul.f32 %v976, %v976
  %v1779 = vmul.f32 %v1087, %v1087
  %v1780 = vmul.f32 %v1089, %v1089
  %v1781 = vmul.f32 %v1200, %v1200
  %v1782 = vmul.f32 %v1202, %v1202
  %v1783 = vmul.f32 %v1313, %v1313
  %v1784 = vmul.f32 %v1315, %v1315
  %v1785 = vmul.f32 %v980, %v980
  %v1786 = vmul.f32 %v982, %v982
  %v1787 = vmul.f32 %v1093, %v1093
  %v1788 = vmul.f32 %v1095, %v1095
  %v1789 = vmul.f32 %v1206, %v1206
  %v1790 = vmul.f32 %v1208, %v1208
  %v1791 = vmul.f32 %v1319, %v1319
  %v1792 = vmul.f32 %v1321, %v1321
  %v1793 = vmul.f32 %v986, %v986
  %v1794 = vmul.f32 %v988, %v988
  %v1795 = vmul.f32 %v1099, %v1099
  %v1796 = vmul.f32 %v1101, %v1101
  %v1797 = vmul.f32 %v1212, %v1212
  %v1798 = vmul.f32 %v1214, %v1214
  %v1799 = vmul.f32 %v1325, %v1325
  %v1800 = vmul.f32 %v1327, %v1327
  %v1801 = vmul.f32 %v992, %v992
  %v1802 = vmul.f32 %v994, %v994
  %v1803 = vmul.f32 %v1105, %v1105
  %v1804 = vmul.f32 %v1107, %v1107
  %v1805 = vmul.f32 %v1218, %v1218
  %v1806 = vmul.f32 %v1220, %v1220
  %v1807 = vmul.f32 %v1331, %v1331
  %v1808 = vmul.f32 %v1333, %v1333
  %v1809 = vadd.f32 %v1745, %v1753
  %v1810 = vadd.f32 %v1809, %v1761
  %v1811 = vadd.f32 %v1810, %v1769
  %v1812 = vadd.f32 %v1811, %v1777
  %v1813 = vadd.f32 %v1812, %v1785
  %v1814 = vadd.f32 %v1813, %v1793
  %v1815 = vadd.f32 %v1814, %v1801
  %v1816 = vrot.slane %v1815, 4
  %v1817 = vadd.f32 %v1815, %v1816
  %v1818 = vrot.slane %v1817, 2
  %v1819 = vadd.f32 %v1817, %v1818
  %v1820 = vrot.slane %v1819, 1
  %v1821 = vadd.f32 %v1819, %v1820
  %v1822 = vadd.f32 %v1746, %v1754
  %v1823 = vadd.f32 %v1822, %v1762
  %v1824 = vadd.f32 %v1823, %v1770
  %v1825 = vadd.f32 %v1824, %v1778
  %v1826 = vadd.f32 %v1825, %v1786
  %v1827 = vadd.f32 %v1826, %v1794
  %v1828 = vadd.f32 %v1827, %v1802
  %v1829 = vrot.slane %v1828, 4
  %v1830 = vadd.f32 %v1828, %v1829
  %v1831 = vrot.slane %v1830, 2
  %v1832 = vadd.f32 %v1830, %v1831
  %v1833 = vrot.slane %v1832, 1
  %v1834 = vadd.f32 %v1832, %v1833
  %v1835 = vadd.f32 %v1747, %v1755
  %v1836 = vadd.f32 %v1835, %v1763
  %v1837 = vadd.f32 %v1836, %v1771
  %v1838 = vadd.f32 %v1837, %v1779
  %v1839 = vadd.f32 %v1838, %v1787
  %v1840 = vadd.f32 %v1839, %v1795
  %v1841 = vadd.f32 %v1840, %v1803
  %v1842 = vrot.slane %v1841, 4
  %v1843 = vadd.f32 %v1841, %v1842
  %v1844 = vrot.slane %v1843, 2
  %v1845 = vadd.f32 %v1843, %v1844
  %v1846 = vrot.slane %v1845, 1
  %v1847 = vadd.f32 %v1845, %v1846
  %v1848 = vadd.f32 %v1748, %v1756
  %v1849 = vadd.f32 %v1848, %v1764
  %v1850 = vadd.f32 %v1849, %v1772
  %v1851 = vadd.f32 %v1850, %v1780
  %v1852 = vadd.f32 %v1851, %v1788
  %v1853 = vadd.f32 %v1852, %v1796
  %v1854 = vadd.f32 %v1853, %v1804
  %v1855 = vrot.slane %v1854, 4
  %v1856 = vadd.f32 %v1854, %v1855
  %v1857 = vrot.slane %v1856, 2
  %v1858 = vadd.f32 %v1856, %v1857
  %v1859 = vrot.slane %v1858, 1
  %v1860 = vadd.f32 %v1858, %v1859
  %v1861 = vadd.f32 %v1749, %v1757
  %v1862 = vadd.f32 %v1861, %v1765
  %v1863 = vadd.f32 %v1862, %v1773
  %v1864 = vadd.f32 %v1863, %v1781
  %v1865 = vadd.f32 %v1864, %v1789
  %v1866 = vadd.f32 %v1865, %v1797
  %v1867 = vadd.f32 %v1866, %v1805
  %v1868 = vrot.slane %v1867, 4
  %v1869 = vadd.f32 %v1867, %v1868
  %v1870 = vrot.slane %v1869, 2
  %v1871 = vadd.f32 %v1869, %v1870
  %v1872 = vrot.slane %v1871, 1
  %v1873 = vadd.f32 %v1871, %v1872
  %v1874 = vadd.f32 %v1750, %v1758
  %v1875 = vadd.f32 %v1874, %v1766
  %v1876 = vadd.f32 %v1875, %v1774
  %v1877 = vadd.f32 %v1876, %v1782
  %v1878 = vadd.f32 %v1877, %v1790
  %v1879 = vadd.f32 %v1878, %v1798
  %v1880 = vadd.f32 %v1879, %v1806
  %v1881 = vrot.slane %v1880, 4
  %v1882 = vadd.f32 %v1880, %v1881
  %v1883 = vrot.slane %v1882, 2
  %v1884 = vadd.f32 %v1882, %v1883
  %v1885 = vrot.slane %v1884, 1
  %v1886 = vadd.f32 %v1884, %v1885
  %v1887 = vadd.f32 %v1751, %v1759
  %v1888 = vadd.f32 %v1887, %v1767
  %v1889 = vadd.f32 %v1888, %v1775
  %v1890 = vadd.f32 %v1889, %v1783
  %v1891 = vadd.f32 %v1890, %v1791
  %v1892 = vadd.f32 %v1891, %v1799
  %v1893 = vadd.f32 %v1892, %v1807
  %v1894 = vrot.slane %v1893, 4
  %v1895 = vadd.f32 %v1893, %v1894
  %v1896 = vrot.slane %v1895, 2
  %v1897 = vadd.f32 %v1895, %v1896
  %v1898 = vrot.slane %v1897, 1
  %v1899 = vadd.f32 %v1897, %v1898
  %v1900 = vadd.f32 %v1752, %v1760
  %v1901 = vadd.f32 %v1900, %v1768
  %v1902 = vadd.f32 %v1901, %v1776
  %v1903 = vadd.f32 %v1902, %v1784
  %v1904 = vadd.f32 %v1903, %v1792
  %v1905 = vadd.f32 %v1904, %v1800
  %v1906 = vadd.f32 %v1905, %v1808
  %v1907 = vrot.slane %v1906, 4
  %v1908 = vadd.f32 %v1906, %v1907
  %v1909 = vrot.slane %v1908, 2
  %v1910 = vadd.f32 %v1908, %v1909
  %v1911 = vrot.slane %v1910, 1
  %v1912 = vadd.f32 %v1910, %v1911
  %1913 = vmatprep.subr.mxu0 0.0
  %1914 = vmatpush1.msra.mxu0 %v1463
  %1915 = vmatprep.subr.mxu0 0.0
  %1916 = vmatpush1.msra.mxu0 %v1464
  %1917 = vmatprep.subr.mxu0 0.0
  %1918 = vmatpush1.msra.mxu0 %v1465
  %1919 = vmatprep.subr.mxu0 0.0
  %1920 = vmatpush1.msra.mxu0 %v1466
  %1921 = vmatprep.subr.mxu0 0.0
  %1922 = vmatpush1.msra.mxu0 %v1467
  %1923 = vmatprep.subr.mxu0 0.0
  %1924 = vmatpush1.msra.mxu0 %v1468
  %1925 = vmatprep.subr.mxu0 0.0
  %1926 = vmatpush1.msra.mxu0 %v1469
  %1927 = vmatprep.subr.mxu0 0.0
  %1928 = vmatpush1.msra.mxu0 %v1470
  %1929 = vmatprep.subr.mxu0 0.0
  %1930 = vmatpush1.msra.mxu0 %v1471
  %1931 = vmatprep.subr.mxu0 0.0
  %1932 = vmatpush1.msra.mxu0 %v1472
  %1933 = vmatprep.subr.mxu0 0.0
  %1934 = vmatpush1.msra.mxu0 %v1473
  %1935 = vmatprep.subr.mxu0 0.0
  %1936 = vmatpush1.msra.mxu0 %v1474
  %1937 = vmatprep.subr.mxu0 0.0
  %1938 = vmatpush1.msra.mxu0 %v1475
  %1939 = vmatprep.subr.mxu0 0.0
  %1940 = vmatpush1.msra.mxu0 %v1476
  %1941 = vmatprep.subr.mxu0 0.0
  %1942 = vmatpush1.msra.mxu0 %v1477
  %1943 = vmatprep.subr.mxu0 0.0
  %1944 = vmatpush1.msra.mxu0 %v1478
  %1945 = vmatprep.subr.mxu0 0.0
  %1946 = vmatpush1.msra.mxu0 %v1479
  %1947 = vmatprep.subr.mxu0 0.0
  %1948 = vmatpush1.msra.mxu0 %v1480
  %1949 = vmatprep.subr.mxu0 0.0
  %1950 = vmatpush1.msra.mxu0 %v1481
  %1951 = vmatprep.subr.mxu0 0.0
  %1952 = vmatpush1.msra.mxu0 %v1482
  %1953 = vmatprep.subr.mxu0 0.0
  %1954 = vmatpush1.msra.mxu0 %v1483
  %1955 = vmatprep.subr.mxu0 0.0
  %1956 = vmatpush1.msra.mxu0 %v1484
  %1957 = vmatprep.subr.mxu0 0.0
  %1958 = vmatpush1.msra.mxu0 %v1485
  %1959 = vmatprep.subr.mxu0 0.0
  %1960 = vmatpush1.msra.mxu0 %v1486
  %1961 = vmatprep.subr.mxu0 0.0
  %1962 = vmatpush1.msra.mxu0 %v1487
  %1963 = vmatprep.subr.mxu0 0.0
  %1964 = vmatpush1.msra.mxu0 %v1488
  %1965 = vmatprep.subr.mxu0 0.0
  %1966 = vmatpush1.msra.mxu0 %v1489
  %1967 = vmatprep.subr.mxu0 0.0
  %1968 = vmatpush1.msra.mxu0 %v1490
  %1969 = vmatprep.subr.mxu0 0.0
  %1970 = vmatpush1.msra.mxu0 %v1491
  %1971 = vmatprep.subr.mxu0 0.0
  %1972 = vmatpush1.msra.mxu0 %v1492
  %1973 = vmatprep.subr.mxu0 0.0
  %1974 = vmatpush1.msra.mxu0 %v1493
  %1975 = vmatprep.subr.mxu0 0.0
  %1976 = vmatpush1.msra.mxu0 %v1494
  %1977 = vmatprep.mubr.f32.mxu0 %v1666
  %1978 = vmatmul.mubr.f32.gmra.mrb[0].mxu0 %v1653
  %v1979 = vpop.f32.mrb[0].mxu0
  %v1980 = vadd.f32 0.0, %v1979
  %v1981 = vpop.f32.mrb[0].mxu0
  %1982 = vdwg.mxu0
  %1983 = vmatprep.subr.mxu0 0.0
  %1984 = vmatpush1.msra.mxu0 %v1495
  %1985 = vmatprep.subr.mxu0 0.0
  %1986 = vmatpush1.msra.mxu0 %v1496
  %1987 = vmatprep.subr.mxu0 0.0
  %1988 = vmatpush1.msra.mxu0 %v1497
  %1989 = vmatprep.subr.mxu0 0.0
  %1990 = vmatpush1.msra.mxu0 %v1498
  %1991 = vmatprep.subr.mxu0 0.0
  %1992 = vmatpush1.msra.mxu0 %v1499
  %1993 = vmatprep.subr.mxu0 0.0
  %1994 = vmatpush1.msra.mxu0 %v1500
  %1995 = vmatprep.subr.mxu0 0.0
  %1996 = vmatpush1.msra.mxu0 %v1501
  %1997 = vmatprep.subr.mxu0 0.0
  %1998 = vmatpush1.msra.mxu0 %v1502
  %1999 = vmatprep.subr.mxu0 0.0
  %2000 = vmatpush1.msra.mxu0 %v1503
  %2001 = vmatprep.subr.mxu0 0.0
  %2002 = vmatpush1.msra.mxu0 %v1504
  %2003 = vmatprep.subr.mxu0 0.0
  %2004 = vmatpush1.msra.mxu0 %v1505
  %2005 = vmatprep.subr.mxu0 0.0
  %2006 = vmatpush1.msra.mxu0 %v1506
  %2007 = vmatprep.subr.mxu0 0.0
  %2008 = vmatpush1.msra.mxu0 %v1507
  %2009 = vmatprep.subr.mxu0 0.0
  %2010 = vmatpush1.msra.mxu0 %v1508
  %2011 = vmatprep.subr.mxu0 0.0
  %2012 = vmatpush1.msra.mxu0 %v1509
  %2013 = vmatprep.subr.mxu0 0.0
  %2014 = vmatpush1.msra.mxu0 %v1510
  %2015 = vmatprep.subr.mxu0 0.0
  %2016 = vmatpush1.msra.mxu0 %v1511
  %2017 = vmatprep.subr.mxu0 0.0
  %2018 = vmatpush1.msra.mxu0 %v1512
  %2019 = vmatprep.subr.mxu0 0.0
  %2020 = vmatpush1.msra.mxu0 %v1513
  %2021 = vmatprep.subr.mxu0 0.0
  %2022 = vmatpush1.msra.mxu0 %v1514
  %2023 = vmatprep.subr.mxu0 0.0
  %2024 = vmatpush1.msra.mxu0 %v1515
  %2025 = vmatprep.subr.mxu0 0.0
  %2026 = vmatpush1.msra.mxu0 %v1516
  %2027 = vmatprep.subr.mxu0 0.0
  %2028 = vmatpush1.msra.mxu0 %v1517
  %2029 = vmatprep.subr.mxu0 0.0
  %2030 = vmatpush1.msra.mxu0 %v1518
  %2031 = vmatprep.subr.mxu0 0.0
  %2032 = vmatpush1.msra.mxu0 %v1519
  %2033 = vmatprep.subr.mxu0 0.0
  %2034 = vmatpush1.msra.mxu0 %v1520
  %2035 = vmatprep.subr.mxu0 0.0
  %2036 = vmatpush1.msra.mxu0 %v1521
  %2037 = vmatprep.subr.mxu0 0.0
  %2038 = vmatpush1.msra.mxu0 %v1522
  %2039 = vmatprep.subr.mxu0 0.0
  %2040 = vmatpush1.msra.mxu0 %v1523
  %2041 = vmatprep.subr.mxu0 0.0
  %2042 = vmatpush1.msra.mxu0 %v1524
  %2043 = vmatprep.subr.mxu0 0.0
  %2044 = vmatpush1.msra.mxu0 %v1525
  %2045 = vmatprep.subr.mxu0 0.0
  %2046 = vmatpush1.msra.mxu0 %v1526
  %2047 = vmatprep.mubr.f32.mxu0 %v1692
  %2048 = vmatmul.mubr.f32.gmra.mrb[0].mxu0 %v1679
  %v2049 = vpop.f32.mrb[0].mxu0
  %v2050 = vadd.f32 %v1980, %v2049
  %v2051 = vpop.f32.mrb[0].mxu0
  %2052 = vdwg.mxu0
  %2053 = vmatprep.subr.mxu0 0.0
  %2054 = vmatpush1.msra.mxu0 %v1527
  %2055 = vmatprep.subr.mxu0 0.0
  %2056 = vmatpush1.msra.mxu0 %v1528
  %2057 = vmatprep.subr.mxu0 0.0
  %2058 = vmatpush1.msra.mxu0 %v1529
  %2059 = vmatprep.subr.mxu0 0.0
  %2060 = vmatpush1.msra.mxu0 %v1530
  %2061 = vmatprep.subr.mxu0 0.0
  %2062 = vmatpush1.msra.mxu0 %v1531
  %2063 = vmatprep.subr.mxu0 0.0
  %2064 = vmatpush1.msra.mxu0 %v1532
  %2065 = vmatprep.subr.mxu0 0.0
  %2066 = vmatpush1.msra.mxu0 %v1533
  %2067 = vmatprep.subr.mxu0 0.0
  %2068 = vmatpush1.msra.mxu0 %v1534
  %2069 = vmatprep.subr.mxu0 0.0
  %2070 = vmatpush1.msra.mxu0 %v1535
  %2071 = vmatprep.subr.mxu0 0.0
  %2072 = vmatpush1.msra.mxu0 %v1536
  %2073 = vmatprep.subr.mxu0 0.0
  %2074 = vmatpush1.msra.mxu0 %v1537
  %2075 = vmatprep.subr.mxu0 0.0
  %2076 = vmatpush1.msra.mxu0 %v1538
  %2077 = vmatprep.subr.mxu0 0.0
  %2078 = vmatpush1.msra.mxu0 %v1539
  %2079 = vmatprep.subr.mxu0 0.0
  %2080 = vmatpush1.msra.mxu0 %v1540
  %2081 = vmatprep.subr.mxu0 0.0
  %2082 = vmatpush1.msra.mxu0 %v1541
  %2083 = vmatprep.subr.mxu0 0.0
  %2084 = vmatpush1.msra.mxu0 %v1542
  %2085 = vmatprep.subr.mxu0 0.0
  %2086 = vmatpush1.msra.mxu0 %v1543
  %2087 = vmatprep.subr.mxu0 0.0
  %2088 = vmatpush1.msra.mxu0 %v1544
  %2089 = vmatprep.subr.mxu0 0.0
  %2090 = vmatpush1.msra.mxu0 %v1545
  %2091 = vmatprep.subr.mxu0 0.0
  %2092 = vmatpush1.msra.mxu0 %v1546
  %2093 = vmatprep.subr.mxu0 0.0
  %2094 = vmatpush1.msra.mxu0 %v1547
  %2095 = vmatprep.subr.mxu0 0.0
  %2096 = vmatpush1.msra.mxu0 %v1548
  %2097 = vmatprep.subr.mxu0 0.0
  %2098 = vmatpush1.msra.mxu0 %v1549
  %2099 = vmatprep.subr.mxu0 0.0
  %2100 = vmatpush1.msra.mxu0 %v1550
  %2101 = vmatprep.subr.mxu0 0.0
  %2102 = vmatpush1.msra.mxu0 %v1551
  %2103 = vmatprep.subr.mxu0 0.0
  %2104 = vmatpush1.msra.mxu0 %v1552
  %2105 = vmatprep.subr.mxu0 0.0
  %2106 = vmatpush1.msra.mxu0 %v1553
  %2107 = vmatprep.subr.mxu0 0.0
  %2108 = vmatpush1.msra.mxu0 %v1554
  %2109 = vmatprep.subr.mxu0 0.0
  %2110 = vmatpush1.msra.mxu0 %v1555
  %2111 = vmatprep.subr.mxu0 0.0
  %2112 = vmatpush1.msra.mxu0 %v1556
  %2113 = vmatprep.subr.mxu0 0.0
  %2114 = vmatpush1.msra.mxu0 %v1557
  %2115 = vmatprep.subr.mxu0 0.0
  %2116 = vmatpush1.msra.mxu0 %v1558
  %2117 = vmatprep.mubr.f32.mxu0 %v1718
  %2118 = vmatmul.mubr.f32.gmra.mrb[0].mxu0 %v1705
  %v2119 = vpop.f32.mrb[0].mxu0
  %v2120 = vadd.f32 %v2050, %v2119
  %v2121 = vpop.f32.mrb[0].mxu0
  %2122 = vdwg.mxu0
  %2123 = vmatprep.subr.mxu0 0.0
  %2124 = vmatpush1.msra.mxu0 %v1559
  %2125 = vmatprep.subr.mxu0 0.0
  %2126 = vmatpush1.msra.mxu0 %v1560
  %2127 = vmatprep.subr.mxu0 0.0
  %2128 = vmatpush1.msra.mxu0 %v1561
  %2129 = vmatprep.subr.mxu0 0.0
  %2130 = vmatpush1.msra.mxu0 %v1562
  %2131 = vmatprep.subr.mxu0 0.0
  %2132 = vmatpush1.msra.mxu0 %v1563
  %2133 = vmatprep.subr.mxu0 0.0
  %2134 = vmatpush1.msra.mxu0 %v1564
  %2135 = vmatprep.subr.mxu0 0.0
  %2136 = vmatpush1.msra.mxu0 %v1565
  %2137 = vmatprep.subr.mxu0 0.0
  %2138 = vmatpush1.msra.mxu0 %v1566
  %2139 = vmatprep.subr.mxu0 0.0
  %2140 = vmatpush1.msra.mxu0 %v1567
  %2141 = vmatprep.subr.mxu0 0.0
  %2142 = vmatpush1.msra.mxu0 %v1568
  %2143 = vmatprep.subr.mxu0 0.0
  %2144 = vmatpush1.msra.mxu0 %v1569
  %2145 = vmatprep.subr.mxu0 0.0
  %2146 = vmatpush1.msra.mxu0 %v1570
  %2147 = vmatprep.subr.mxu0 0.0
  %2148 = vmatpush1.msra.mxu0 %v1571
  %2149 = vmatprep.subr.mxu0 0.0
  %2150 = vmatpush1.msra.mxu0 %v1572
  %2151 = vmatprep.subr.mxu0 0.0
  %2152 = vmatpush1.msra.mxu0 %v1573
  %2153 = vmatprep.subr.mxu0 0.0
  %2154 = vmatpush1.msra.mxu0 %v1574
  %2155 = vmatprep.subr.mxu0 0.0
  %2156 = vmatpush1.msra.mxu0 %v1575
  %2157 = vmatprep.subr.mxu0 0.0
  %2158 = vmatpush1.msra.mxu0 %v1576
  %2159 = vmatprep.subr.mxu0 0.0
  %2160 = vmatpush1.msra.mxu0 %v1577
  %2161 = vmatprep.subr.mxu0 0.0
  %2162 = vmatpush1.msra.mxu0 %v1578
  %2163 = vmatprep.subr.mxu0 0.0
  %2164 = vmatpush1.msra.mxu0 %v1579
  %2165 = vmatprep.subr.mxu0 0.0
  %2166 = vmatpush1.msra.mxu0 %v1580
  %2167 = vmatprep.subr.mxu0 0.0
  %2168 = vmatpush1.msra.mxu0 %v1581
  %2169 = vmatprep.subr.mxu0 0.0
  %2170 = vmatpush1.msra.mxu0 %v1582
  %2171 = vmatprep.subr.mxu0 0.0
  %2172 = vmatpush1.msra.mxu0 %v1583
  %2173 = vmatprep.subr.mxu0 0.0
  %2174 = vmatpush1.msra.mxu0 %v1584
  %2175 = vmatprep.subr.mxu0 0.0
  %2176 = vmatpush1.msra.mxu0 %v1585
  %2177 = vmatprep.subr.mxu0 0.0
  %2178 = vmatpush1.msra.mxu0 %v1586
  %2179 = vmatprep.subr.mxu0 0.0
  %2180 = vmatpush1.msra.mxu0 %v1587
  %2181 = vmatprep.subr.mxu0 0.0
  %2182 = vmatpush1.msra.mxu0 %v1588
  %2183 = vmatprep.subr.mxu0 0.0
  %2184 = vmatpush1.msra.mxu0 %v1589
  %2185 = vmatprep.subr.mxu0 0.0
  %2186 = vmatpush1.msra.mxu0 %v1590
  %2187 = vmatprep.mubr.f32.mxu0 %v1744
  %2188 = vmatmul.mubr.f32.gmra.mrb[0].mxu0 %v1731
  %v2189 = vpop.f32.mrb[0].mxu0
  %v2190 = vadd.f32 %v2120, %v2189
  %v2191 = vpop.f32.mrb[0].mxu0
  %2192 = vdwg.mxu0
  %v2193 = vmul.f32 %v2190, 0.00048828125
  %2194 = vmatprep.subr.mxu0 0.0
  %2195 = vmatpush1.msra.mxu0 %v1463
  %2196 = vmatprep.subr.mxu0 0.0
  %2197 = vmatpush1.msra.mxu0 %v1464
  %2198 = vmatprep.subr.mxu0 0.0
  %2199 = vmatpush1.msra.mxu0 %v1465
  %2200 = vmatprep.subr.mxu0 0.0
  %2201 = vmatpush1.msra.mxu0 %v1466
  %2202 = vmatprep.subr.mxu0 0.0
  %2203 = vmatpush1.msra.mxu0 %v1467
  %2204 = vmatprep.subr.mxu0 0.0
  %2205 = vmatpush1.msra.mxu0 %v1468
  %2206 = vmatprep.subr.mxu0 0.0
  %2207 = vmatpush1.msra.mxu0 %v1469
  %2208 = vmatprep.subr.mxu0 0.0
  %2209 = vmatpush1.msra.mxu0 %v1470
  %2210 = vmatprep.subr.mxu0 0.0
  %2211 = vmatpush1.msra.mxu0 %v1471
  %2212 = vmatprep.subr.mxu0 0.0
  %2213 = vmatpush1.msra.mxu0 %v1472
  %2214 = vmatprep.subr.mxu0 0.0
  %2215 = vmatpush1.msra.mxu0 %v1473
  %2216 = vmatprep.subr.mxu0 0.0
  %2217 = vmatpush1.msra.mxu0 %v1474
  %2218 = vmatprep.subr.mxu0 0.0
  %2219 = vmatpush1.msra.mxu0 %v1475
  %2220 = vmatprep.subr.mxu0 0.0
  %2221 = vmatpush1.msra.mxu0 %v1476
  %2222 = vmatprep.subr.mxu0 0.0
  %2223 = vmatpush1.msra.mxu0 %v1477
  %2224 = vmatprep.subr.mxu0 0.0
  %2225 = vmatpush1.msra.mxu0 %v1478
  %2226 = vmatprep.subr.mxu0 0.0
  %2227 = vmatpush1.msra.mxu0 %v1479
  %2228 = vmatprep.subr.mxu0 0.0
  %2229 = vmatpush1.msra.mxu0 %v1480
  %2230 = vmatprep.subr.mxu0 0.0
  %2231 = vmatpush1.msra.mxu0 %v1481
  %2232 = vmatprep.subr.mxu0 0.0
  %2233 = vmatpush1.msra.mxu0 %v1482
  %2234 = vmatprep.subr.mxu0 0.0
  %2235 = vmatpush1.msra.mxu0 %v1483
  %2236 = vmatprep.subr.mxu0 0.0
  %2237 = vmatpush1.msra.mxu0 %v1484
  %2238 = vmatprep.subr.mxu0 0.0
  %2239 = vmatpush1.msra.mxu0 %v1485
  %2240 = vmatprep.subr.mxu0 0.0
  %2241 = vmatpush1.msra.mxu0 %v1486
  %2242 = vmatprep.subr.mxu0 0.0
  %2243 = vmatpush1.msra.mxu0 %v1487
  %2244 = vmatprep.subr.mxu0 0.0
  %2245 = vmatpush1.msra.mxu0 %v1488
  %2246 = vmatprep.subr.mxu0 0.0
  %2247 = vmatpush1.msra.mxu0 %v1489
  %2248 = vmatprep.subr.mxu0 0.0
  %2249 = vmatpush1.msra.mxu0 %v1490
  %2250 = vmatprep.subr.mxu0 0.0
  %2251 = vmatpush1.msra.mxu0 %v1491
  %2252 = vmatprep.subr.mxu0 0.0
  %2253 = vmatpush1.msra.mxu0 %v1492
  %2254 = vmatprep.subr.mxu0 0.0
  %2255 = vmatpush1.msra.mxu0 %v1493
  %2256 = vmatprep.subr.mxu0 0.0
  %2257 = vmatpush1.msra.mxu0 %v1494
  %2258 = vmatprep.mubr.f32.mxu0 %v1834
  %2259 = vmatmul.mubr.f32.gmra.mrb[0].mxu0 %v1821
  %v2260 = vpop.f32.mrb[0].mxu0
  %v2261 = vadd.f32 0.0, %v2260
  %v2262 = vpop.f32.mrb[0].mxu0
  %2263 = vdwg.mxu0
  %2264 = vmatprep.subr.mxu0 0.0
  %2265 = vmatpush1.msra.mxu0 %v1495
  %2266 = vmatprep.subr.mxu0 0.0
  %2267 = vmatpush1.msra.mxu0 %v1496
  %2268 = vmatprep.subr.mxu0 0.0
  %2269 = vmatpush1.msra.mxu0 %v1497
  %2270 = vmatprep.subr.mxu0 0.0
  %2271 = vmatpush1.msra.mxu0 %v1498
  %2272 = vmatprep.subr.mxu0 0.0
  %2273 = vmatpush1.msra.mxu0 %v1499
  %2274 = vmatprep.subr.mxu0 0.0
  %2275 = vmatpush1.msra.mxu0 %v1500
  %2276 = vmatprep.subr.mxu0 0.0
  %2277 = vmatpush1.msra.mxu0 %v1501
  %2278 = vmatprep.subr.mxu0 0.0
  %2279 = vmatpush1.msra.mxu0 %v1502
  %2280 = vmatprep.subr.mxu0 0.0
  %2281 = vmatpush1.msra.mxu0 %v1503
  %2282 = vmatprep.subr.mxu0 0.0
  %2283 = vmatpush1.msra.mxu0 %v1504
  %2284 = vmatprep.subr.mxu0 0.0
  %2285 = vmatpush1.msra.mxu0 %v1505
  %2286 = vmatprep.subr.mxu0 0.0
  %2287 = vmatpush1.msra.mxu0 %v1506
  %2288 = vmatprep.subr.mxu0 0.0
  %2289 = vmatpush1.msra.mxu0 %v1507
  %2290 = vmatprep.subr.mxu0 0.0
  %2291 = vmatpush1.msra.mxu0 %v1508
  %2292 = vmatprep.subr.mxu0 0.0
  %2293 = vmatpush1.msra.mxu0 %v1509
  %2294 = vmatprep.subr.mxu0 0.0
  %2295 = vmatpush1.msra.mxu0 %v1510
  %2296 = vmatprep.subr.mxu0 0.0
  %2297 = vmatpush1.msra.mxu0 %v1511
  %2298 = vmatprep.subr.mxu0 0.0
  %2299 = vmatpush1.msra.mxu0 %v1512
  %2300 = vmatprep.subr.mxu0 0.0
  %2301 = vmatpush1.msra.mxu0 %v1513
  %2302 = vmatprep.subr.mxu0 0.0
  %2303 = vmatpush1.msra.mxu0 %v1514
  %2304 = vmatprep.subr.mxu0 0.0
  %2305 = vmatpush1.msra.mxu0 %v1515
  %2306 = vmatprep.subr.mxu0 0.0
  %2307 = vmatpush1.msra.mxu0 %v1516
  %2308 = vmatprep.subr.mxu0 0.0
  %2309 = vmatpush1.msra.mxu0 %v1517
  %2310 = vmatprep.subr.mxu0 0.0
  %2311 = vmatpush1.msra.mxu0 %v1518
  %2312 = vmatprep.subr.mxu0 0.0
  %2313 = vmatpush1.msra.mxu0 %v1519
  %2314 = vmatprep.subr.mxu0 0.0
  %2315 = vmatpush1.msra.mxu0 %v1520
  %2316 = vmatprep.subr.mxu0 0.0
  %2317 = vmatpush1.msra.mxu0 %v1521
  %2318 = vmatprep.subr.mxu0 0.0
  %2319 = vmatpush1.msra.mxu0 %v1522
  %2320 = vmatprep.subr.mxu0 0.0
  %2321 = vmatpush1.msra.mxu0 %v1523
  %2322 = vmatprep.subr.mxu0 0.0
  %2323 = vmatpush1.msra.mxu0 %v1524
  %2324 = vmatprep.subr.mxu0 0.0
  %2325 = vmatpush1.msra.mxu0 %v1525
  %2326 = vmatprep.subr.mxu0 0.0
  %2327 = vmatpush1.msra.mxu0 %v1526
  %2328 = vmatprep.mubr.f32.mxu0 %v1860
  %2329 = vmatmul.mubr.f32.gmra.mrb[0].mxu0 %v1847
  %v2330 = vpop.f32.mrb[0].mxu0
  %v2331 = vadd.f32 %v2261, %v2330
  %v2332 = vpop.f32.mrb[0].mxu0
  %2333 = vdwg.mxu0
  %2334 = vmatprep.subr.mxu0 0.0
  %2335 = vmatpush1.msra.mxu0 %v1527
  %2336 = vmatprep.subr.mxu0 0.0
  %2337 = vmatpush1.msra.mxu0 %v1528
  %2338 = vmatprep.subr.mxu0 0.0
  %2339 = vmatpush1.msra.mxu0 %v1529
  %2340 = vmatprep.subr.mxu0 0.0
  %2341 = vmatpush1.msra.mxu0 %v1530
  %2342 = vmatprep.subr.mxu0 0.0
  %2343 = vmatpush1.msra.mxu0 %v1531
  %2344 = vmatprep.subr.mxu0 0.0
  %2345 = vmatpush1.msra.mxu0 %v1532
  %2346 = vmatprep.subr.mxu0 0.0
  %2347 = vmatpush1.msra.mxu0 %v1533
  %2348 = vmatprep.subr.mxu0 0.0
  %2349 = vmatpush1.msra.mxu0 %v1534
  %2350 = vmatprep.subr.mxu0 0.0
  %2351 = vmatpush1.msra.mxu0 %v1535
  %2352 = vmatprep.subr.mxu0 0.0
  %2353 = vmatpush1.msra.mxu0 %v1536
  %2354 = vmatprep.subr.mxu0 0.0
  %2355 = vmatpush1.msra.mxu0 %v1537
  %2356 = vmatprep.subr.mxu0 0.0
  %2357 = vmatpush1.msra.mxu0 %v1538
  %2358 = vmatprep.subr.mxu0 0.0
  %2359 = vmatpush1.msra.mxu0 %v1539
  %2360 = vmatprep.subr.mxu0 0.0
  %2361 = vmatpush1.msra.mxu0 %v1540
  %2362 = vmatprep.subr.mxu0 0.0
  %2363 = vmatpush1.msra.mxu0 %v1541
  %2364 = vmatprep.subr.mxu0 0.0
  %2365 = vmatpush1.msra.mxu0 %v1542
  %2366 = vmatprep.subr.mxu0 0.0
  %2367 = vmatpush1.msra.mxu0 %v1543
  %2368 = vmatprep.subr.mxu0 0.0
  %2369 = vmatpush1.msra.mxu0 %v1544
  %2370 = vmatprep.subr.mxu0 0.0
  %2371 = vmatpush1.msra.mxu0 %v1545
  %2372 = vmatprep.subr.mxu0 0.0
  %2373 = vmatpush1.msra.mxu0 %v1546
  %2374 = vmatprep.subr.mxu0 0.0
  %2375 = vmatpush1.msra.mxu0 %v1547
  %2376 = vmatprep.subr.mxu0 0.0
  %2377 = vmatpush1.msra.mxu0 %v1548
  %2378 = vmatprep.subr.mxu0 0.0
  %2379 = vmatpush1.msra.mxu0 %v1549
  %2380 = vmatprep.subr.mxu0 0.0
  %2381 = vmatpush1.msra.mxu0 %v1550
  %2382 = vmatprep.subr.mxu0 0.0
  %2383 = vmatpush1.msra.mxu0 %v1551
  %2384 = vmatprep.subr.mxu0 0.0
  %2385 = vmatpush1.msra.mxu0 %v1552
  %2386 = vmatprep.subr.mxu0 0.0
  %2387 = vmatpush1.msra.mxu0 %v1553
  %2388 = vmatprep.subr.mxu0 0.0
  %2389 = vmatpush1.msra.mxu0 %v1554
  %2390 = vmatprep.subr.mxu0 0.0
  %2391 = vmatpush1.msra.mxu0 %v1555
  %2392 = vmatprep.subr.mxu0 0.0
  %2393 = vmatpush1.msra.mxu0 %v1556
  %2394 = vmatprep.subr.mxu0 0.0
  %2395 = vmatpush1.msra.mxu0 %v1557
  %2396 = vmatprep.subr.mxu0 0.0
  %2397 = vmatpush1.msra.mxu0 %v1558
  %2398 = vmatprep.mubr.f32.mxu0 %v1886
  %2399 = vmatmul.mubr.f32.gmra.mrb[0].mxu0 %v1873
  %v2400 = vpop.f32.mrb[0].mxu0
  %v2401 = vadd.f32 %v2331, %v2400
  %v2402 = vpop.f32.mrb[0].mxu0
  %2403 = vdwg.mxu0
  %2404 = vmatprep.subr.mxu0 0.0
  %2405 = vmatpush1.msra.mxu0 %v1559
  %2406 = vmatprep.subr.mxu0 0.0
  %2407 = vmatpush1.msra.mxu0 %v1560
  %2408 = vmatprep.subr.mxu0 0.0
  %2409 = vmatpush1.msra.mxu0 %v1561
  %2410 = vmatprep.subr.mxu0 0.0
  %2411 = vmatpush1.msra.mxu0 %v1562
  %2412 = vmatprep.subr.mxu0 0.0
  %2413 = vmatpush1.msra.mxu0 %v1563
  %2414 = vmatprep.subr.mxu0 0.0
  %2415 = vmatpush1.msra.mxu0 %v1564
  %2416 = vmatprep.subr.mxu0 0.0
  %2417 = vmatpush1.msra.mxu0 %v1565
  %2418 = vmatprep.subr.mxu0 0.0
  %2419 = vmatpush1.msra.mxu0 %v1566
  %2420 = vmatprep.subr.mxu0 0.0
  %2421 = vmatpush1.msra.mxu0 %v1567
  %2422 = vmatprep.subr.mxu0 0.0
  %2423 = vmatpush1.msra.mxu0 %v1568
  %2424 = vmatprep.subr.mxu0 0.0
  %2425 = vmatpush1.msra.mxu0 %v1569
  %2426 = vmatprep.subr.mxu0 0.0
  %2427 = vmatpush1.msra.mxu0 %v1570
  %2428 = vmatprep.subr.mxu0 0.0
  %2429 = vmatpush1.msra.mxu0 %v1571
  %2430 = vmatprep.subr.mxu0 0.0
  %2431 = vmatpush1.msra.mxu0 %v1572
  %2432 = vmatprep.subr.mxu0 0.0
  %2433 = vmatpush1.msra.mxu0 %v1573
  %2434 = vmatprep.subr.mxu0 0.0
  %2435 = vmatpush1.msra.mxu0 %v1574
  %2436 = vmatprep.subr.mxu0 0.0
  %2437 = vmatpush1.msra.mxu0 %v1575
  %2438 = vmatprep.subr.mxu0 0.0
  %2439 = vmatpush1.msra.mxu0 %v1576
  %2440 = vmatprep.subr.mxu0 0.0
  %2441 = vmatpush1.msra.mxu0 %v1577
  %2442 = vmatprep.subr.mxu0 0.0
  %2443 = vmatpush1.msra.mxu0 %v1578
  %2444 = vmatprep.subr.mxu0 0.0
  %2445 = vmatpush1.msra.mxu0 %v1579
  %2446 = vmatprep.subr.mxu0 0.0
  %2447 = vmatpush1.msra.mxu0 %v1580
  %2448 = vmatprep.subr.mxu0 0.0
  %2449 = vmatpush1.msra.mxu0 %v1581
  %2450 = vmatprep.subr.mxu0 0.0
  %2451 = vmatpush1.msra.mxu0 %v1582
  %2452 = vmatprep.subr.mxu0 0.0
  %2453 = vmatpush1.msra.mxu0 %v1583
  %2454 = vmatprep.subr.mxu0 0.0
  %2455 = vmatpush1.msra.mxu0 %v1584
  %2456 = vmatprep.subr.mxu0 0.0
  %2457 = vmatpush1.msra.mxu0 %v1585
  %2458 = vmatprep.subr.mxu0 0.0
  %2459 = vmatpush1.msra.mxu0 %v1586
  %2460 = vmatprep.subr.mxu0 0.0
  %2461 = vmatpush1.msra.mxu0 %v1587
  %2462 = vmatprep.subr.mxu0 0.0
  %2463 = vmatpush1.msra.mxu0 %v1588
  %2464 = vmatprep.subr.mxu0 0.0
  %2465 = vmatpush1.msra.mxu0 %v1589
  %2466 = vmatprep.subr.mxu0 0.0
  %2467 = vmatpush1.msra.mxu0 %v1590
  %2468 = vmatprep.mubr.f32.mxu0 %v1912
  %2469 = vmatmul.mubr.f32.gmra.mrb[0].mxu0 %v1899
  %v2470 = vpop.f32.mrb[0].mxu0
  %v2471 = vadd.f32 %v2401, %v2470
  %v2472 = vpop.f32.mrb[0].mxu0
  %2473 = vdwg.mxu0
  %v2474 = vmul.f32 %v2471, 0.00048828125
  %v2475 = vmul.f32 %v2193, %v2193
  %v2476 = vsub.f32 %v2474, %v2475
  %v2477 = vadd.f32 %v2476, 1e-05
  %v2478 = vrsqrt.pop %v2477
  %v2479 = vmul.f32 %v1639, %v2478
  %v2480 = vmul.f32 %v2193, %v2479
  %v2481 = vsub.f32 %v1640, %v2480
  %vm2482 = vcmask 261120
  %v2484 = vsel %vm2482, %v2479, 0
  %2486 = vmatprep.subr.mxu0 %v1608
  %2487 = vmatpush1.msra.mxu0 %v1607
  %2488 = vmatprep.subr.mxu0 %v1616
  %2489 = vmatpush1.msra.mxu0 %v1615
  %2490 = vmatprep.subr.mxu0 %v1624
  %2491 = vmatpush1.msra.mxu0 %v1623
  %2492 = vmatprep.subr.mxu0 %v1632
  %2493 = vmatpush1.msra.mxu0 %v1631
  %2494 = vmatprep.subr.mxu0 0.0
  %2495 = vmatpush1.msra.mxu0 0.0
  %2496 = vmatprep.subr.mxu0 0.0
  %2497 = vmatpush1.msra.mxu0 0.0
  %2498 = vmatprep.subr.mxu0 0.0
  %2499 = vmatpush1.msra.mxu0 0.0
  %2500 = vmatprep.subr.mxu0 0.0
  %2501 = vmatpush1.msra.mxu0 0.0
  %2502 = vmatprep.subr.mxu0 0.0
  %2503 = vmatpush1.msra.mxu0 0.0
  %2504 = vmatprep.subr.mxu0 0.0
  %2505 = vmatpush1.msra.mxu0 0.0
  %2506 = vmatprep.subr.mxu0 0.0
  %2507 = vmatpush1.msra.mxu0 0.0
  %2508 = vmatprep.subr.mxu0 0.0
  %2509 = vmatpush1.msra.mxu0 0.0
  %2510 = vmatprep.subr.mxu0 0.0
  %2511 = vmatpush1.msra.mxu0 0.0
  %2512 = vmatprep.subr.mxu0 0.0
  %2513 = vmatpush1.msra.mxu0 0.0
  %2514 = vmatprep.subr.mxu0 0.0
  %2515 = vmatpush1.msra.mxu0 0.0
  %2516 = vmatprep.subr.mxu0 0.0
  %2517 = vmatpush1.msra.mxu0 0.0
  %2518 = vmatprep.subr.mxu0 0.0
  %2519 = vmatpush1.msra.mxu0 0.0
  %2520 = vmatprep.subr.mxu0 0.0
  %2521 = vmatpush1.msra.mxu0 0.0
  %2522 = vmatprep.subr.mxu0 0.0
  %2523 = vmatpush1.msra.mxu0 0.0
  %2524 = vmatprep.subr.mxu0 0.0
  %2525 = vmatpush1.msra.mxu0 0.0
  %2526 = vmatprep.subr.mxu0 0.0
  %2527 = vmatpush1.msra.mxu0 0.0
  %2528 = vmatprep.subr.mxu0 0.0
  %2529 = vmatpush1.msra.mxu0 0.0
  %2530 = vmatprep.subr.mxu0 0.0
  %2531 = vmatpush1.msra.mxu0 0.0
  %2532 = vmatprep.subr.mxu0 0.0
  %2533 = vmatpush1.msra.mxu0 0.0
  %2534 = vmatprep.subr.mxu0 0.0
  %2535 = vmatpush1.msra.mxu0 0.0
  %2536 = vmatprep.subr.mxu0 0.0
  %2537 = vmatpush1.msra.mxu0 0.0
  %2538 = vmatprep.subr.mxu0 0.0
  %2539 = vmatpush1.msra.mxu0 0.0
  %2540 = vmatprep.subr.mxu0 0.0
  %2541 = vmatpush1.msra.mxu0 0.0
  %2542 = vmatprep.subr.mxu0 0.0
  %2543 = vmatpush1.msra.mxu0 0.0
  %2544 = vmatprep.subr.mxu0 0.0
  %2545 = vmatpush1.msra.mxu0 0.0
  %2546 = vmatprep.subr.mxu0 0.0
  %2547 = vmatpush1.msra.mxu0 0.0
  %2548 = vmatprep.subr.mxu0 0.0
  %2549 = vmatpush1.msra.mxu0 0.0
  %2550 = vmatprep.mubr.f32.mxu0 0.0
  %2551 = vmatmul.mubr.f32.gmra.mrb[0].mxu0 %v2484
  %v2552 = vpop.f32.mrb[0].mxu0
  %v2553 = vadd.f32 0.0, %v2552
  %v2554 = vpop.f32.mrb[0].mxu0
  %v2555 = vadd.f32 0.0, %v2554
  %2556 = vdwg.mxu0
  %2557 = vmatprep.subr.mxu0 %v1610
  %2558 = vmatpush1.msra.mxu0 %v1609
  %2559 = vmatprep.subr.mxu0 %v1618
  %2560 = vmatpush1.msra.mxu0 %v1617
  %2561 = vmatprep.subr.mxu0 %v1626
  %2562 = vmatpush1.msra.mxu0 %v1625
  %2563 = vmatprep.subr.mxu0 %v1634
  %2564 = vmatpush1.msra.mxu0 %v1633
  %2565 = vmatprep.subr.mxu0 0.0
  %2566 = vmatpush1.msra.mxu0 0.0
  %2567 = vmatprep.subr.mxu0 0.0
  %2568 = vmatpush1.msra.mxu0 0.0
  %2569 = vmatprep.subr.mxu0 0.0
  %2570 = vmatpush1.msra.mxu0 0.0
  %2571 = vmatprep.subr.mxu0 0.0
  %2572 = vmatpush1.msra.mxu0 0.0
  %2573 = vmatprep.subr.mxu0 0.0
  %2574 = vmatpush1.msra.mxu0 0.0
  %2575 = vmatprep.subr.mxu0 0.0
  %2576 = vmatpush1.msra.mxu0 0.0
  %2577 = vmatprep.subr.mxu0 0.0
  %2578 = vmatpush1.msra.mxu0 0.0
  %2579 = vmatprep.subr.mxu0 0.0
  %2580 = vmatpush1.msra.mxu0 0.0
  %2581 = vmatprep.subr.mxu0 0.0
  %2582 = vmatpush1.msra.mxu0 0.0
  %2583 = vmatprep.subr.mxu0 0.0
  %2584 = vmatpush1.msra.mxu0 0.0
  %2585 = vmatprep.subr.mxu0 0.0
  %2586 = vmatpush1.msra.mxu0 0.0
  %2587 = vmatprep.subr.mxu0 0.0
  %2588 = vmatpush1.msra.mxu0 0.0
  %2589 = vmatprep.subr.mxu0 0.0
  %2590 = vmatpush1.msra.mxu0 0.0
  %2591 = vmatprep.subr.mxu0 0.0
  %2592 = vmatpush1.msra.mxu0 0.0
  %2593 = vmatprep.subr.mxu0 0.0
  %2594 = vmatpush1.msra.mxu0 0.0
  %2595 = vmatprep.subr.mxu0 0.0
  %2596 = vmatpush1.msra.mxu0 0.0
  %2597 = vmatprep.subr.mxu0 0.0
  %2598 = vmatpush1.msra.mxu0 0.0
  %2599 = vmatprep.subr.mxu0 0.0
  %2600 = vmatpush1.msra.mxu0 0.0
  %2601 = vmatprep.subr.mxu0 0.0
  %2602 = vmatpush1.msra.mxu0 0.0
  %2603 = vmatprep.subr.mxu0 0.0
  %2604 = vmatpush1.msra.mxu0 0.0
  %2605 = vmatprep.subr.mxu0 0.0
  %2606 = vmatpush1.msra.mxu0 0.0
  %2607 = vmatprep.subr.mxu0 0.0
  %2608 = vmatpush1.msra.mxu0 0.0
  %2609 = vmatprep.subr.mxu0 0.0
  %2610 = vmatpush1.msra.mxu0 0.0
  %2611 = vmatprep.subr.mxu0 0.0
  %2612 = vmatpush1.msra.mxu0 0.0
  %2613 = vmatprep.subr.mxu0 0.0
  %2614 = vmatpush1.msra.mxu0 0.0
  %2615 = vmatprep.subr.mxu0 0.0
  %2616 = vmatpush1.msra.mxu0 0.0
  %2617 = vmatprep.subr.mxu0 0.0
  %2618 = vmatpush1.msra.mxu0 0.0
  %2619 = vmatprep.subr.mxu0 0.0
  %2620 = vmatpush1.msra.mxu0 0.0
  %2621 = vmatprep.mubr.f32.mxu0 0.0
  %2622 = vmatmul.mubr.f32.gmra.mrb[0].mxu0 %v2484
  %v2623 = vpop.f32.mrb[0].mxu0
  %v2624 = vadd.f32 0.0, %v2623
  %v2625 = vpop.f32.mrb[0].mxu0
  %v2626 = vadd.f32 0.0, %v2625
  %2627 = vdwg.mxu0
  %2628 = vmatprep.subr.mxu0 %v1612
  %2629 = vmatpush1.msra.mxu0 %v1611
  %2630 = vmatprep.subr.mxu0 %v1620
  %2631 = vmatpush1.msra.mxu0 %v1619
  %2632 = vmatprep.subr.mxu0 %v1628
  %2633 = vmatpush1.msra.mxu0 %v1627
  %2634 = vmatprep.subr.mxu0 %v1636
  %2635 = vmatpush1.msra.mxu0 %v1635
  %2636 = vmatprep.subr.mxu0 0.0
  %2637 = vmatpush1.msra.mxu0 0.0
  %2638 = vmatprep.subr.mxu0 0.0
  %2639 = vmatpush1.msra.mxu0 0.0
  %2640 = vmatprep.subr.mxu0 0.0
  %2641 = vmatpush1.msra.mxu0 0.0
  %2642 = vmatprep.subr.mxu0 0.0
  %2643 = vmatpush1.msra.mxu0 0.0
  %2644 = vmatprep.subr.mxu0 0.0
  %2645 = vmatpush1.msra.mxu0 0.0
  %2646 = vmatprep.subr.mxu0 0.0
  %2647 = vmatpush1.msra.mxu0 0.0
  %2648 = vmatprep.subr.mxu0 0.0
  %2649 = vmatpush1.msra.mxu0 0.0
  %2650 = vmatprep.subr.mxu0 0.0
  %2651 = vmatpush1.msra.mxu0 0.0
  %2652 = vmatprep.subr.mxu0 0.0
  %2653 = vmatpush1.msra.mxu0 0.0
  %2654 = vmatprep.subr.mxu0 0.0
  %2655 = vmatpush1.msra.mxu0 0.0
  %2656 = vmatprep.subr.mxu0 0.0
  %2657 = vmatpush1.msra.mxu0 0.0
  %2658 = vmatprep.subr.mxu0 0.0
  %2659 = vmatpush1.msra.mxu0 0.0
  %2660 = vmatprep.subr.mxu0 0.0
  %2661 = vmatpush1.msra.mxu0 0.0
  %2662 = vmatprep.subr.mxu0 0.0
  %2663 = vmatpush1.msra.mxu0 0.0
  %2664 = vmatprep.subr.mxu0 0.0
  %2665 = vmatpush1.msra.mxu0 0.0
  %2666 = vmatprep.subr.mxu0 0.0
  %2667 = vmatpush1.msra.mxu0 0.0
  %2668 = vmatprep.subr.mxu0 0.0
  %2669 = vmatpush1.msra.mxu0 0.0
  %2670 = vmatprep.subr.mxu0 0.0
  %2671 = vmatpush1.msra.mxu0 0.0
  %2672 = vmatprep.subr.mxu0 0.0
  %2673 = vmatpush1.msra.mxu0 0.0
  %2674 = vmatprep.subr.mxu0 0.0
  %2675 = vmatpush1.msra.mxu0 0.0
  %2676 = vmatprep.subr.mxu0 0.0
  %2677 = vmatpush1.msra.mxu0 0.0
  %2678 = vmatprep.subr.mxu0 0.0
  %2679 = vmatpush1.msra.mxu0 0.0
  %2680 = vmatprep.subr.mxu0 0.0
  %2681 = vmatpush1.msra.mxu0 0.0
  %2682 = vmatprep.subr.mxu0 0.0
  %2683 = vmatpush1.msra.mxu0 0.0
  %2684 = vmatprep.subr.mxu0 0.0
  %2685 = vmatpush1.msra.mxu0 0.0
  %2686 = vmatprep.subr.mxu0 0.0
  %2687 = vmatpush1.msra.mxu0 0.0
  %2688 = vmatprep.subr.mxu0 0.0
  %2689 = vmatpush1.msra.mxu0 0.0
  %2690 = vmatprep.subr.mxu0 0.0
  %2691 = vmatpush1.msra.mxu0 0.0
  %2692 = vmatprep.mubr.f32.mxu0 0.0
  %2693 = vmatmul.mubr.f32.gmra.mrb[0].mxu0 %v2484
  %v2694 = vpop.f32.mrb[0].mxu0
  %v2695 = vadd.f32 0.0, %v2694
  %v2696 = vpop.f32.mrb[0].mxu0
  %v2697 = vadd.f32 0.0, %v2696
  %2698 = vdwg.mxu0
  %2699 = vmatprep.subr.mxu0 %v1614
  %2700 = vmatpush1.msra.mxu0 %v1613
  %2701 = vmatprep.subr.mxu0 %v1622
  %2702 = vmatpush1.msra.mxu0 %v1621
  %2703 = vmatprep.subr.mxu0 %v1630
  %2704 = vmatpush1.msra.mxu0 %v1629
  %2705 = vmatprep.subr.mxu0 %v1638
  %2706 = vmatpush1.msra.mxu0 %v1637
  %2707 = vmatprep.subr.mxu0 0.0
  %2708 = vmatpush1.msra.mxu0 0.0
  %2709 = vmatprep.subr.mxu0 0.0
  %2710 = vmatpush1.msra.mxu0 0.0
  %2711 = vmatprep.subr.mxu0 0.0
  %2712 = vmatpush1.msra.mxu0 0.0
  %2713 = vmatprep.subr.mxu0 0.0
  %2714 = vmatpush1.msra.mxu0 0.0
  %2715 = vmatprep.subr.mxu0 0.0
  %2716 = vmatpush1.msra.mxu0 0.0
  %2717 = vmatprep.subr.mxu0 0.0
  %2718 = vmatpush1.msra.mxu0 0.0
  %2719 = vmatprep.subr.mxu0 0.0
  %2720 = vmatpush1.msra.mxu0 0.0
  %2721 = vmatprep.subr.mxu0 0.0
  %2722 = vmatpush1.msra.mxu0 0.0
  %2723 = vmatprep.subr.mxu0 0.0
  %2724 = vmatpush1.msra.mxu0 0.0
  %2725 = vmatprep.subr.mxu0 0.0
  %2726 = vmatpush1.msra.mxu0 0.0
  %2727 = vmatprep.subr.mxu0 0.0
  %2728 = vmatpush1.msra.mxu0 0.0
  %2729 = vmatprep.subr.mxu0 0.0
  %2730 = vmatpush1.msra.mxu0 0.0
  %2731 = vmatprep.subr.mxu0 0.0
  %2732 = vmatpush1.msra.mxu0 0.0
  %2733 = vmatprep.subr.mxu0 0.0
  %2734 = vmatpush1.msra.mxu0 0.0
  %2735 = vmatprep.subr.mxu0 0.0
  %2736 = vmatpush1.msra.mxu0 0.0
  %2737 = vmatprep.subr.mxu0 0.0
  %2738 = vmatpush1.msra.mxu0 0.0
  %2739 = vmatprep.subr.mxu0 0.0
  %2740 = vmatpush1.msra.mxu0 0.0
  %2741 = vmatprep.subr.mxu0 0.0
  %2742 = vmatpush1.msra.mxu0 0.0
  %2743 = vmatprep.subr.mxu0 0.0
  %2744 = vmatpush1.msra.mxu0 0.0
  %2745 = vmatprep.subr.mxu0 0.0
  %2746 = vmatpush1.msra.mxu0 0.0
  %2747 = vmatprep.subr.mxu0 0.0
  %2748 = vmatpush1.msra.mxu0 0.0
  %2749 = vmatprep.subr.mxu0 0.0
  %2750 = vmatpush1.msra.mxu0 0.0
  %2751 = vmatprep.subr.mxu0 0.0
  %2752 = vmatpush1.msra.mxu0 0.0
  %2753 = vmatprep.subr.mxu0 0.0
  %2754 = vmatpush1.msra.mxu0 0.0
  %2755 = vmatprep.subr.mxu0 0.0
  %2756 = vmatpush1.msra.mxu0 0.0
  %2757 = vmatprep.subr.mxu0 0.0
  %2758 = vmatpush1.msra.mxu0 0.0
  %2759 = vmatprep.subr.mxu0 0.0
  %2760 = vmatpush1.msra.mxu0 0.0
  %2761 = vmatprep.subr.mxu0 0.0
  %2762 = vmatpush1.msra.mxu0 0.0
  %2763 = vmatprep.mubr.f32.mxu0 0.0
  %2764 = vmatmul.mubr.f32.gmra.mrb[0].mxu0 %v2484
  %v2765 = vpop.f32.mrb[0].mxu0
  %v2766 = vadd.f32 0.0, %v2765
  %v2767 = vpop.f32.mrb[0].mxu0
  %v2768 = vadd.f32 0.0, %v2767
  %2769 = vdwg.mxu0
  %v2771 = vsel %vm2482, %v2481, 0
  %2773 = vmatprep.subr.mxu0 %v1608
  %2774 = vmatpush1.msra.mxu0 %v1607
  %2775 = vmatprep.subr.mxu0 %v1616
  %2776 = vmatpush1.msra.mxu0 %v1615
  %2777 = vmatprep.subr.mxu0 %v1624
  %2778 = vmatpush1.msra.mxu0 %v1623
  %2779 = vmatprep.subr.mxu0 %v1632
  %2780 = vmatpush1.msra.mxu0 %v1631
  %2781 = vmatprep.subr.mxu0 0.0
  %2782 = vmatpush1.msra.mxu0 0.0
  %2783 = vmatprep.subr.mxu0 0.0
  %2784 = vmatpush1.msra.mxu0 0.0
  %2785 = vmatprep.subr.mxu0 0.0
  %2786 = vmatpush1.msra.mxu0 0.0
  %2787 = vmatprep.subr.mxu0 0.0
  %2788 = vmatpush1.msra.mxu0 0.0
  %2789 = vmatprep.subr.mxu0 0.0
  %2790 = vmatpush1.msra.mxu0 0.0
  %2791 = vmatprep.subr.mxu0 0.0
  %2792 = vmatpush1.msra.mxu0 0.0
  %2793 = vmatprep.subr.mxu0 0.0
  %2794 = vmatpush1.msra.mxu0 0.0
  %2795 = vmatprep.subr.mxu0 0.0
  %2796 = vmatpush1.msra.mxu0 0.0
  %2797 = vmatprep.subr.mxu0 0.0
  %2798 = vmatpush1.msra.mxu0 0.0
  %2799 = vmatprep.subr.mxu0 0.0
  %2800 = vmatpush1.msra.mxu0 0.0
  %2801 = vmatprep.subr.mxu0 0.0
  %2802 = vmatpush1.msra.mxu0 0.0
  %2803 = vmatprep.subr.mxu0 0.0
  %2804 = vmatpush1.msra.mxu0 0.0
  %2805 = vmatprep.subr.mxu0 0.0
  %2806 = vmatpush1.msra.mxu0 0.0
  %2807 = vmatprep.subr.mxu0 0.0
  %2808 = vmatpush1.msra.mxu0 0.0
  %2809 = vmatprep.subr.mxu0 0.0
  %2810 = vmatpush1.msra.mxu0 0.0
  %2811 = vmatprep.subr.mxu0 0.0
  %2812 = vmatpush1.msra.mxu0 0.0
  %2813 = vmatprep.subr.mxu0 0.0
  %2814 = vmatpush1.msra.mxu0 0.0
  %2815 = vmatprep.subr.mxu0 0.0
  %2816 = vmatpush1.msra.mxu0 0.0
  %2817 = vmatprep.subr.mxu0 0.0
  %2818 = vmatpush1.msra.mxu0 0.0
  %2819 = vmatprep.subr.mxu0 0.0
  %2820 = vmatpush1.msra.mxu0 0.0
  %2821 = vmatprep.subr.mxu0 0.0
  %2822 = vmatpush1.msra.mxu0 0.0
  %2823 = vmatprep.subr.mxu0 0.0
  %2824 = vmatpush1.msra.mxu0 0.0
  %2825 = vmatprep.subr.mxu0 0.0
  %2826 = vmatpush1.msra.mxu0 0.0
  %2827 = vmatprep.subr.mxu0 0.0
  %2828 = vmatpush1.msra.mxu0 0.0
  %2829 = vmatprep.subr.mxu0 0.0
  %2830 = vmatpush1.msra.mxu0 0.0
  %2831 = vmatprep.subr.mxu0 0.0
  %2832 = vmatpush1.msra.mxu0 0.0
  %2833 = vmatprep.subr.mxu0 0.0
  %2834 = vmatpush1.msra.mxu0 0.0
  %2835 = vmatprep.subr.mxu0 0.0
  %2836 = vmatpush1.msra.mxu0 0.0
  %2837 = vmatprep.mubr.f32.mxu0 0.0
  %2838 = vmatmul.mubr.f32.gmra.mrb[0].mxu0 %v2771
  %v2839 = vpop.f32.mrb[0].mxu0
  %v2840 = vadd.f32 0.0, %v2839
  %v2841 = vpop.f32.mrb[0].mxu0
  %v2842 = vadd.f32 0.0, %v2841
  %2843 = vdwg.mxu0
  %2844 = vmatprep.subr.mxu0 %v1610
  %2845 = vmatpush1.msra.mxu0 %v1609
  %2846 = vmatprep.subr.mxu0 %v1618
  %2847 = vmatpush1.msra.mxu0 %v1617
  %2848 = vmatprep.subr.mxu0 %v1626
  %2849 = vmatpush1.msra.mxu0 %v1625
  %2850 = vmatprep.subr.mxu0 %v1634
  %2851 = vmatpush1.msra.mxu0 %v1633
  %2852 = vmatprep.subr.mxu0 0.0
  %2853 = vmatpush1.msra.mxu0 0.0
  %2854 = vmatprep.subr.mxu0 0.0
  %2855 = vmatpush1.msra.mxu0 0.0
  %2856 = vmatprep.subr.mxu0 0.0
  %2857 = vmatpush1.msra.mxu0 0.0
  %2858 = vmatprep.subr.mxu0 0.0
  %2859 = vmatpush1.msra.mxu0 0.0
  %2860 = vmatprep.subr.mxu0 0.0
  %2861 = vmatpush1.msra.mxu0 0.0
  %2862 = vmatprep.subr.mxu0 0.0
  %2863 = vmatpush1.msra.mxu0 0.0
  %2864 = vmatprep.subr.mxu0 0.0
  %2865 = vmatpush1.msra.mxu0 0.0
  %2866 = vmatprep.subr.mxu0 0.0
  %2867 = vmatpush1.msra.mxu0 0.0
  %2868 = vmatprep.subr.mxu0 0.0
  %2869 = vmatpush1.msra.mxu0 0.0
  %2870 = vmatprep.subr.mxu0 0.0
  %2871 = vmatpush1.msra.mxu0 0.0
  %2872 = vmatprep.subr.mxu0 0.0
  %2873 = vmatpush1.msra.mxu0 0.0
  %2874 = vmatprep.subr.mxu0 0.0
  %2875 = vmatpush1.msra.mxu0 0.0
  %2876 = vmatprep.subr.mxu0 0.0
  %2877 = vmatpush1.msra.mxu0 0.0
  %2878 = vmatprep.subr.mxu0 0.0
  %2879 = vmatpush1.msra.mxu0 0.0
  %2880 = vmatprep.subr.mxu0 0.0
  %2881 = vmatpush1.msra.mxu0 0.0
  %2882 = vmatprep.subr.mxu0 0.0
  %2883 = vmatpush1.msra.mxu0 0.0
  %2884 = vmatprep.subr.mxu0 0.0
  %2885 = vmatpush1.msra.mxu0 0.0
  %2886 = vmatprep.subr.mxu0 0.0
  %2887 = vmatpush1.msra.mxu0 0.0
  %2888 = vmatprep.subr.mxu0 0.0
  %2889 = vmatpush1.msra.mxu0 0.0
  %2890 = vmatprep.subr.mxu0 0.0
  %2891 = vmatpush1.msra.mxu0 0.0
  %2892 = vmatprep.subr.mxu0 0.0
  %2893 = vmatpush1.msra.mxu0 0.0
  %2894 = vmatprep.subr.mxu0 0.0
  %2895 = vmatpush1.msra.mxu0 0.0
  %2896 = vmatprep.subr.mxu0 0.0
  %2897 = vmatpush1.msra.mxu0 0.0
  %2898 = vmatprep.subr.mxu0 0.0
  %2899 = vmatpush1.msra.mxu0 0.0
  %2900 = vmatprep.subr.mxu0 0.0
  %2901 = vmatpush1.msra.mxu0 0.0
  %2902 = vmatprep.subr.mxu0 0.0
  %2903 = vmatpush1.msra.mxu0 0.0
  %2904 = vmatprep.subr.mxu0 0.0
  %2905 = vmatpush1.msra.mxu0 0.0
  %2906 = vmatprep.subr.mxu0 0.0
  %2907 = vmatpush1.msra.mxu0 0.0
  %2908 = vmatprep.mubr.f32.mxu0 0.0
  %2909 = vmatmul.mubr.f32.gmra.mrb[0].mxu0 %v2771
  %v2910 = vpop.f32.mrb[0].mxu0
  %v2911 = vadd.f32 0.0, %v2910
  %v2912 = vpop.f32.mrb[0].mxu0
  %v2913 = vadd.f32 0.0, %v2912
  %2914 = vdwg.mxu0
  %2915 = vmatprep.subr.mxu0 %v1612
  %2916 = vmatpush1.msra.mxu0 %v1611
  %2917 = vmatprep.subr.mxu0 %v1620
  %2918 = vmatpush1.msra.mxu0 %v1619
  %2919 = vmatprep.subr.mxu0 %v1628
  %2920 = vmatpush1.msra.mxu0 %v1627
  %2921 = vmatprep.subr.mxu0 %v1636
  %2922 = vmatpush1.msra.mxu0 %v1635
  %2923 = vmatprep.subr.mxu0 0.0
  %2924 = vmatpush1.msra.mxu0 0.0
  %2925 = vmatprep.subr.mxu0 0.0
  %2926 = vmatpush1.msra.mxu0 0.0
  %2927 = vmatprep.subr.mxu0 0.0
  %2928 = vmatpush1.msra.mxu0 0.0
  %2929 = vmatprep.subr.mxu0 0.0
  %2930 = vmatpush1.msra.mxu0 0.0
  %2931 = vmatprep.subr.mxu0 0.0
  %2932 = vmatpush1.msra.mxu0 0.0
  %2933 = vmatprep.subr.mxu0 0.0
  %2934 = vmatpush1.msra.mxu0 0.0
  %2935 = vmatprep.subr.mxu0 0.0
  %2936 = vmatpush1.msra.mxu0 0.0
  %2937 = vmatprep.subr.mxu0 0.0
  %2938 = vmatpush1.msra.mxu0 0.0
  %2939 = vmatprep.subr.mxu0 0.0
  %2940 = vmatpush1.msra.mxu0 0.0
  %2941 = vmatprep.subr.mxu0 0.0
  %2942 = vmatpush1.msra.mxu0 0.0
  %2943 = vmatprep.subr.mxu0 0.0
  %2944 = vmatpush1.msra.mxu0 0.0
  %2945 = vmatprep.subr.mxu0 0.0
  %2946 = vmatpush1.msra.mxu0 0.0
  %2947 = vmatprep.subr.mxu0 0.0
  %2948 = vmatpush1.msra.mxu0 0.0
  %2949 = vmatprep.subr.mxu0 0.0
  %2950 = vmatpush1.msra.mxu0 0.0
  %2951 = vmatprep.subr.mxu0 0.0
  %2952 = vmatpush1.msra.mxu0 0.0
  %2953 = vmatprep.subr.mxu0 0.0
  %2954 = vmatpush1.msra.mxu0 0.0
  %2955 = vmatprep.subr.mxu0 0.0
  %2956 = vmatpush1.msra.mxu0 0.0
  %2957 = vmatprep.subr.mxu0 0.0
  %2958 = vmatpush1.msra.mxu0 0.0
  %2959 = vmatprep.subr.mxu0 0.0
  %2960 = vmatpush1.msra.mxu0 0.0
  %2961 = vmatprep.subr.mxu0 0.0
  %2962 = vmatpush1.msra.mxu0 0.0
  %2963 = vmatprep.subr.mxu0 0.0
  %2964 = vmatpush1.msra.mxu0 0.0
  %2965 = vmatprep.subr.mxu0 0.0
  %2966 = vmatpush1.msra.mxu0 0.0
  %2967 = vmatprep.subr.mxu0 0.0
  %2968 = vmatpush1.msra.mxu0 0.0
  %2969 = vmatprep.subr.mxu0 0.0
  %2970 = vmatpush1.msra.mxu0 0.0
  %2971 = vmatprep.subr.mxu0 0.0
  %2972 = vmatpush1.msra.mxu0 0.0
  %2973 = vmatprep.subr.mxu0 0.0
  %2974 = vmatpush1.msra.mxu0 0.0
  %2975 = vmatprep.subr.mxu0 0.0
  %2976 = vmatpush1.msra.mxu0 0.0
  %2977 = vmatprep.subr.mxu0 0.0
  %2978 = vmatpush1.msra.mxu0 0.0
  %2979 = vmatprep.mubr.f32.mxu0 0.0
  %2980 = vmatmul.mubr.f32.gmra.mrb[0].mxu0 %v2771
  %v2981 = vpop.f32.mrb[0].mxu0
  %v2982 = vadd.f32 0.0, %v2981
  %v2983 = vpop.f32.mrb[0].mxu0
  %v2984 = vadd.f32 0.0, %v2983
  %2985 = vdwg.mxu0
  %2986 = vmatprep.subr.mxu0 %v1614
  %2987 = vmatpush1.msra.mxu0 %v1613
  %2988 = vmatprep.subr.mxu0 %v1622
  %2989 = vmatpush1.msra.mxu0 %v1621
  %2990 = vmatprep.subr.mxu0 %v1630
  %2991 = vmatpush1.msra.mxu0 %v1629
  %2992 = vmatprep.subr.mxu0 %v1638
  %2993 = vmatpush1.msra.mxu0 %v1637
  %2994 = vmatprep.subr.mxu0 0.0
  %2995 = vmatpush1.msra.mxu0 0.0
  %2996 = vmatprep.subr.mxu0 0.0
  %2997 = vmatpush1.msra.mxu0 0.0
  %2998 = vmatprep.subr.mxu0 0.0
  %2999 = vmatpush1.msra.mxu0 0.0
  %3000 = vmatprep.subr.mxu0 0.0
  %3001 = vmatpush1.msra.mxu0 0.0
  %3002 = vmatprep.subr.mxu0 0.0
  %3003 = vmatpush1.msra.mxu0 0.0
  %3004 = vmatprep.subr.mxu0 0.0
  %3005 = vmatpush1.msra.mxu0 0.0
  %3006 = vmatprep.subr.mxu0 0.0
  %3007 = vmatpush1.msra.mxu0 0.0
  %3008 = vmatprep.subr.mxu0 0.0
  %3009 = vmatpush1.msra.mxu0 0.0
  %3010 = vmatprep.subr.mxu0 0.0
  %3011 = vmatpush1.msra.mxu0 0.0
  %3012 = vmatprep.subr.mxu0 0.0
  %3013 = vmatpush1.msra.mxu0 0.0
  %3014 = vmatprep.subr.mxu0 0.0
  %3015 = vmatpush1.msra.mxu0 0.0
  %3016 = vmatprep.subr.mxu0 0.0
  %3017 = vmatpush1.msra.mxu0 0.0
  %3018 = vmatprep.subr.mxu0 0.0
  %3019 = vmatpush1.msra.mxu0 0.0
  %3020 = vmatprep.subr.mxu0 0.0
  %3021 = vmatpush1.msra.mxu0 0.0
  %3022 = vmatprep.subr.mxu0 0.0
  %3023 = vmatpush1.msra.mxu0 0.0
  %3024 = vmatprep.subr.mxu0 0.0
  %3025 = vmatpush1.msra.mxu0 0.0
  %3026 = vmatprep.subr.mxu0 0.0
  %3027 = vmatpush1.msra.mxu0 0.0
  %3028 = vmatprep.subr.mxu0 0.0
  %3029 = vmatpush1.msra.mxu0 0.0
  %3030 = vmatprep.subr.mxu0 0.0
  %3031 = vmatpush1.msra.mxu0 0.0
  %3032 = vmatprep.subr.mxu0 0.0
  %3033 = vmatpush1.msra.mxu0 0.0
  %3034 = vmatprep.subr.mxu0 0.0
  %3035 = vmatpush1.msra.mxu0 0.0
  %3036 = vmatprep.subr.mxu0 0.0
  %3037 = vmatpush1.msra.mxu0 0.0
  %3038 = vmatprep.subr.mxu0 0.0
  %3039 = vmatpush1.msra.mxu0 0.0
  %3040 = vmatprep.subr.mxu0 0.0
  %3041 = vmatpush1.msra.mxu0 0.0
  %3042 = vmatprep.subr.mxu0 0.0
  %3043 = vmatpush1.msra.mxu0 0.0
  %3044 = vmatprep.subr.mxu0 0.0
  %3045 = vmatpush1.msra.mxu0 0.0
  %3046 = vmatprep.subr.mxu0 0.0
  %3047 = vmatpush1.msra.mxu0 0.0
  %3048 = vmatprep.subr.mxu0 0.0
  %3049 = vmatpush1.msra.mxu0 0.0
  %3050 = vmatprep.mubr.f32.mxu0 0.0
  %3051 = vmatmul.mubr.f32.gmra.mrb[0].mxu0 %v2771
  %v3052 = vpop.f32.mrb[0].mxu0
  %v3053 = vadd.f32 0.0, %v3052
  %v3054 = vpop.f32.mrb[0].mxu0
  %v3055 = vadd.f32 0.0, %v3054
  %3056 = vdwg.mxu0
  %v3057 = vlaneseq
  %v3058 = vshrl.u32 %v3057, 7
  %v3059 = vsub.s32 0, %v3058
  %v3060 = vrot.slane %v2553, %v3059
  %v3061 = vlaneseq
  %v3062 = vshrl.u32 %v3061, 7
  %v3063 = vsub.s32 0, %v3062
  %v3064 = vrot.slane %v2555, %v3063
  %v3065 = vlaneseq
  %v3066 = vshrl.u32 %v3065, 7
  %v3067 = vsub.s32 0, %v3066
  %v3068 = vrot.slane %v2624, %v3067
  %v3069 = vlaneseq
  %v3070 = vshrl.u32 %v3069, 7
  %v3071 = vsub.s32 0, %v3070
  %v3072 = vrot.slane %v2626, %v3071
  %v3073 = vlaneseq
  %v3074 = vshrl.u32 %v3073, 7
  %v3075 = vsub.s32 0, %v3074
  %v3076 = vrot.slane %v2695, %v3075
  %v3077 = vlaneseq
  %v3078 = vshrl.u32 %v3077, 7
  %v3079 = vsub.s32 0, %v3078
  %v3080 = vrot.slane %v2697, %v3079
  %v3081 = vlaneseq
  %v3082 = vshrl.u32 %v3081, 7
  %v3083 = vsub.s32 0, %v3082
  %v3084 = vrot.slane %v2766, %v3083
  %v3085 = vlaneseq
  %v3086 = vshrl.u32 %v3085, 7
  %v3087 = vsub.s32 0, %v3086
  %v3088 = vrot.slane %v2768, %v3087
  %v3089 = vmul.f32 %v950, %v3060
  %v3090 = vmul.f32 %v952, %v3064
  %v3091 = vmul.f32 %v1063, %v3068
  %v3092 = vmul.f32 %v1065, %v3072
  %v3093 = vmul.f32 %v1176, %v3076
  %v3094 = vmul.f32 %v1178, %v3080
  %v3095 = vmul.f32 %v1289, %v3084
  %v3096 = vmul.f32 %v1291, %v3088
  %v3097 = vmul.f32 %v956, %v3060
  %v3098 = vmul.f32 %v958, %v3064
  %v3099 = vmul.f32 %v1069, %v3068
  %v3100 = vmul.f32 %v1071, %v3072
  %v3101 = vmul.f32 %v1182, %v3076
  %v3102 = vmul.f32 %v1184, %v3080
  %v3103 = vmul.f32 %v1295, %v3084
  %v3104 = vmul.f32 %v1297, %v3088
  %v3105 = vmul.f32 %v962, %v3060
  %v3106 = vmul.f32 %v964, %v3064
  %v3107 = vmul.f32 %v1075, %v3068
  %v3108 = vmul.f32 %v1077, %v3072
  %v3109 = vmul.f32 %v1188, %v3076
  %v3110 = vmul.f32 %v1190, %v3080
  %v3111 = vmul.f32 %v1301, %v3084
  %v3112 = vmul.f32 %v1303, %v3088
  %v3113 = vmul.f32 %v968, %v3060
  %v3114 = vmul.f32 %v970, %v3064
  %v3115 = vmul.f32 %v1081, %v3068
  %v3116 = vmul.f32 %v1083, %v3072
  %v3117 = vmul.f32 %v1194, %v3076
  %v3118 = vmul.f32 %v1196, %v3080
  %v3119 = vmul.f32 %v1307, %v3084
  %v3120 = vmul.f32 %v1309, %v3088
  %v3121 = vmul.f32 %v974, %v3060
  %v3122 = vmul.f32 %v976, %v3064
  %v3123 = vmul.f32 %v1087, %v3068
  %v3124 = vmul.f32 %v1089, %v3072
  %v3125 = vmul.f32 %v1200, %v3076
  %v3126 = vmul.f32 %v1202, %v3080
  %v3127 = vmul.f32 %v1313, %v3084
  %v3128 = vmul.f32 %v1315, %v3088
  %v3129 = vmul.f32 %v980, %v3060
  %v3130 = vmul.f32 %v982, %v3064
  %v3131 = vmul.f32 %v1093, %v3068
  %v3132 = vmul.f32 %v1095, %v3072
  %v3133 = vmul.f32 %v1206, %v3076
  %v3134 = vmul.f32 %v1208, %v3080
  %v3135 = vmul.f32 %v1319, %v3084
  %v3136 = vmul.f32 %v1321, %v3088
  %v3137 = vmul.f32 %v986, %v3060
  %v3138 = vmul.f32 %v988, %v3064
  %v3139 = vmul.f32 %v1099, %v3068
  %v3140 = vmul.f32 %v1101, %v3072
  %v3141 = vmul.f32 %v1212, %v3076
  %v3142 = vmul.f32 %v1214, %v3080
  %v3143 = vmul.f32 %v1325, %v3084
  %v3144 = vmul.f32 %v1327, %v3088
  %v3145 = vmul.f32 %v992, %v3060
  %v3146 = vmul.f32 %v994, %v3064
  %v3147 = vmul.f32 %v1105, %v3068
  %v3148 = vmul.f32 %v1107, %v3072
  %v3149 = vmul.f32 %v1218, %v3076
  %v3150 = vmul.f32 %v1220, %v3080
  %v3151 = vmul.f32 %v1331, %v3084
  %v3152 = vmul.f32 %v1333, %v3088
  %v3153 = vlaneseq
  %v3154 = vshrl.u32 %v3153, 7
  %v3155 = vsub.s32 0, %v3154
  %v3156 = vrot.slane %v2840, %v3155
  %v3157 = vlaneseq
  %v3158 = vshrl.u32 %v3157, 7
  %v3159 = vsub.s32 0, %v3158
  %v3160 = vrot.slane %v2842, %v3159
  %v3161 = vlaneseq
  %v3162 = vshrl.u32 %v3161, 7
  %v3163 = vsub.s32 0, %v3162
  %v3164 = vrot.slane %v2911, %v3163
  %v3165 = vlaneseq
  %v3166 = vshrl.u32 %v3165, 7
  %v3167 = vsub.s32 0, %v3166
  %v3168 = vrot.slane %v2913, %v3167
  %v3169 = vlaneseq
  %v3170 = vshrl.u32 %v3169, 7
  %v3171 = vsub.s32 0, %v3170
  %v3172 = vrot.slane %v2982, %v3171
  %v3173 = vlaneseq
  %v3174 = vshrl.u32 %v3173, 7
  %v3175 = vsub.s32 0, %v3174
  %v3176 = vrot.slane %v2984, %v3175
  %v3177 = vlaneseq
  %v3178 = vshrl.u32 %v3177, 7
  %v3179 = vsub.s32 0, %v3178
  %v3180 = vrot.slane %v3053, %v3179
  %v3181 = vlaneseq
  %v3182 = vshrl.u32 %v3181, 7
  %v3183 = vsub.s32 0, %v3182
  %v3184 = vrot.slane %v3055, %v3183
  %v3185 = vadd.f32 %v3089, %v3156
  %v3186 = vadd.f32 %v3090, %v3160
  %v3187 = vadd.f32 %v3091, %v3164
  %v3188 = vadd.f32 %v3092, %v3168
  %v3189 = vadd.f32 %v3093, %v3172
  %v3190 = vadd.f32 %v3094, %v3176
  %v3191 = vadd.f32 %v3095, %v3180
  %v3192 = vadd.f32 %v3096, %v3184
  %v3193 = vadd.f32 %v3097, %v3156
  %v3194 = vadd.f32 %v3098, %v3160
  %v3195 = vadd.f32 %v3099, %v3164
  %v3196 = vadd.f32 %v3100, %v3168
  %v3197 = vadd.f32 %v3101, %v3172
  %v3198 = vadd.f32 %v3102, %v3176
  %v3199 = vadd.f32 %v3103, %v3180
  %v3200 = vadd.f32 %v3104, %v3184
  %v3201 = vadd.f32 %v3105, %v3156
  %v3202 = vadd.f32 %v3106, %v3160
  %v3203 = vadd.f32 %v3107, %v3164
  %v3204 = vadd.f32 %v3108, %v3168
  %v3205 = vadd.f32 %v3109, %v3172
  %v3206 = vadd.f32 %v3110, %v3176
  %v3207 = vadd.f32 %v3111, %v3180
  %v3208 = vadd.f32 %v3112, %v3184
  %v3209 = vadd.f32 %v3113, %v3156
  %v3210 = vadd.f32 %v3114, %v3160
  %v3211 = vadd.f32 %v3115, %v3164
  %v3212 = vadd.f32 %v3116, %v3168
  %v3213 = vadd.f32 %v3117, %v3172
  %v3214 = vadd.f32 %v3118, %v3176
  %v3215 = vadd.f32 %v3119, %v3180
  %v3216 = vadd.f32 %v3120, %v3184
  %v3217 = vadd.f32 %v3121, %v3156
  %v3218 = vadd.f32 %v3122, %v3160
  %v3219 = vadd.f32 %v3123, %v3164
  %v3220 = vadd.f32 %v3124, %v3168
  %v3221 = vadd.f32 %v3125, %v3172
  %v3222 = vadd.f32 %v3126, %v3176
  %v3223 = vadd.f32 %v3127, %v3180
  %v3224 = vadd.f32 %v3128, %v3184
  %v3225 = vadd.f32 %v3129, %v3156
  %v3226 = vadd.f32 %v3130, %v3160
  %v3227 = vadd.f32 %v3131, %v3164
  %v3228 = vadd.f32 %v3132, %v3168
  %v3229 = vadd.f32 %v3133, %v3172
  %v3230 = vadd.f32 %v3134, %v3176
  %v3231 = vadd.f32 %v3135, %v3180
  %v3232 = vadd.f32 %v3136, %v3184
  %v3233 = vadd.f32 %v3137, %v3156
  %v3234 = vadd.f32 %v3138, %v3160
  %v3235 = vadd.f32 %v3139, %v3164
  %v3236 = vadd.f32 %v3140, %v3168
  %v3237 = vadd.f32 %v3141, %v3172
  %v3238 = vadd.f32 %v3142, %v3176
  %v3239 = vadd.f32 %v3143, %v3180
  %v3240 = vadd.f32 %v3144, %v3184
  %v3241 = vadd.f32 %v3145, %v3156
  %v3242 = vadd.f32 %v3146, %v3160
  %v3243 = vadd.f32 %v3147, %v3164
  %v3244 = vadd.f32 %v3148, %v3168
  %v3245 = vadd.f32 %v3149, %v3172
  %v3246 = vadd.f32 %v3150, %v3176
  %v3247 = vadd.f32 %v3151, %v3180
  %v3248 = vadd.f32 %v3152, %v3184
  %v3249 = vmax.f32 %v3185, 0.0
  %v3250 = vmax.f32 %v3186, 0.0
  %v3251 = vmax.f32 %v3187, 0.0
  %v3252 = vmax.f32 %v3188, 0.0
  %v3253 = vmax.f32 %v3189, 0.0
  %v3254 = vmax.f32 %v3190, 0.0
  %v3255 = vmax.f32 %v3191, 0.0
  %v3256 = vmax.f32 %v3192, 0.0
  %v3257 = vmax.f32 %v3193, 0.0
  %v3258 = vmax.f32 %v3194, 0.0
  %v3259 = vmax.f32 %v3195, 0.0
  %v3260 = vmax.f32 %v3196, 0.0
  %v3261 = vmax.f32 %v3197, 0.0
  %v3262 = vmax.f32 %v3198, 0.0
  %v3263 = vmax.f32 %v3199, 0.0
  %v3264 = vmax.f32 %v3200, 0.0
  %v3265 = vmax.f32 %v3201, 0.0
  %v3266 = vmax.f32 %v3202, 0.0
  %v3267 = vmax.f32 %v3203, 0.0
  %v3268 = vmax.f32 %v3204, 0.0
  %v3269 = vmax.f32 %v3205, 0.0
  %v3270 = vmax.f32 %v3206, 0.0
  %v3271 = vmax.f32 %v3207, 0.0
  %v3272 = vmax.f32 %v3208, 0.0
  %v3273 = vmax.f32 %v3209, 0.0
  %v3274 = vmax.f32 %v3210, 0.0
  %v3275 = vmax.f32 %v3211, 0.0
  %v3276 = vmax.f32 %v3212, 0.0
  %v3277 = vmax.f32 %v3213, 0.0
  %v3278 = vmax.f32 %v3214, 0.0
  %v3279 = vmax.f32 %v3215, 0.0
  %v3280 = vmax.f32 %v3216, 0.0
  %v3281 = vmax.f32 %v3217, 0.0
  %v3282 = vmax.f32 %v3218, 0.0
  %v3283 = vmax.f32 %v3219, 0.0
  %v3284 = vmax.f32 %v3220, 0.0
  %v3285 = vmax.f32 %v3221, 0.0
  %v3286 = vmax.f32 %v3222, 0.0
  %v3287 = vmax.f32 %v3223, 0.0
  %v3288 = vmax.f32 %v3224, 0.0
  %v3289 = vmax.f32 %v3225, 0.0
  %v3290 = vmax.f32 %v3226, 0.0
  %v3291 = vmax.f32 %v3227, 0.0
  %v3292 = vmax.f32 %v3228, 0.0
  %v3293 = vmax.f32 %v3229, 0.0
  %v3294 = vmax.f32 %v3230, 0.0
  %v3295 = vmax.f32 %v3231, 0.0
  %v3296 = vmax.f32 %v3232, 0.0
  %v3297 = vmax.f32 %v3233, 0.0
  %v3298 = vmax.f32 %v3234, 0.0
  %v3299 = vmax.f32 %v3235, 0.0
  %v3300 = vmax.f32 %v3236, 0.0
  %v3301 = vmax.f32 %v3237, 0.0
  %v3302 = vmax.f32 %v3238, 0.0
  %v3303 = vmax.f32 %v3239, 0.0
  %v3304 = vmax.f32 %v3240, 0.0
  %v3305 = vmax.f32 %v3241, 0.0
  %v3306 = vmax.f32 %v3242, 0.0
  %v3307 = vmax.f32 %v3243, 0.0
  %v3308 = vmax.f32 %v3244, 0.0
  %v3309 = vmax.f32 %v3245, 0.0
  %v3310 = vmax.f32 %v3246, 0.0
  %v3311 = vmax.f32 %v3247, 0.0
  %v3312 = vmax.f32 %v3248, 0.0
  %3313 = vst [vmem:[%s12] sm:$0xff] %v3249
  %3314 = vst [vmem:[%s12 + $0x8] sm:$0xff] %v3250
  %3315 = vst [vmem:[%s12 + $0x10] sm:$0xff] %v3251
  %3316 = vst [vmem:[%s12 + $0x18] sm:$0xff] %v3252
  %3317 = vst [vmem:[%s12 + $0x20] sm:$0xff] %v3253
  %3318 = vst [vmem:[%s12 + $0x28] sm:$0xff] %v3254
  %3319 = vst [vmem:[%s12 + $0x30] sm:$0xff] %v3255
  %3320 = vst [vmem:[%s12 + $0x38] sm:$0xff] %v3256
  %3321 = vst [vmem:[%s12 + $0x40] sm:$0xff] %v3257
  %3322 = vst [vmem:[%s12 + $0x48] sm:$0xff] %v3258
  %3323 = vst [vmem:[%s12 + $0x50] sm:$0xff] %v3259
  %3324 = vst [vmem:[%s12 + $0x58] sm:$0xff] %v3260
  %3325 = vst [vmem:[%s12 + $0x60] sm:$0xff] %v3261
  %3326 = vst [vmem:[%s12 + $0x68] sm:$0xff] %v3262
  %3327 = vst [vmem:[%s12 + $0x70] sm:$0xff] %v3263
  %3328 = vst [vmem:[%s12 + $0x78] sm:$0xff] %v3264
  %3329 = vst [vmem:[%s12 + $0x80] sm:$0xff] %v3265
  %3330 = vst [vmem:[%s12 + $0x88] sm:$0xff] %v3266
  %3331 = vst [vmem:[%s12 + $0x90] sm:$0xff] %v3267
  %3332 = vst [vmem:[%s12 + $0x98] sm:$0xff] %v3268
  %3333 = vst [vmem:[%s12 + $0xa0] sm:$0xff] %v3269
  %3334 = vst [vmem:[%s12 + $0xa8] sm:$0xff] %v3270
  %3335 = vst [vmem:[%s12 + $0xb0] sm:$0xff] %v3271
  %3336 = vst [vmem:[%s12 + $0xb8] sm:$0xff] %v3272
  %3337 = vst [vmem:[%s12 + $0xc0] sm:$0xff] %v3273
  %3338 = vst [vmem:[%s12 + $0xc8] sm:$0xff] %v3274
  %3339 = vst [vmem:[%s12 + $0xd0] sm:$0xff] %v3275
  %3340 = vst [vmem:[%s12 + $0xd8] sm:$0xff] %v3276
  %3341 = vst [vmem:[%s12 + $0xe0] sm:$0xff] %v3277
  %3342 = vst [vmem:[%s12 + $0xe8] sm:$0xff] %v3278
  %3343 = vst [vmem:[%s12 + $0xf0] sm:$0xff] %v3279
  %3344 = vst [vmem:[%s12 + $0xf8] sm:$0xff] %v3280
  %3345 = vst [vmem:[%s12 + $0x100] sm:$0xff] %v3281
  %3346 = vst [vmem:[%s12 + $0x108] sm:$0xff] %v3282
  %3347 = vst [vmem:[%s12 + $0x110] sm:$0xff] %v3283
  %3348 = vst [vmem:[%s12 + $0x118] sm:$0xff] %v3284
  %3349 = vst [vmem:[%s12 + $0x120] sm:$0xff] %v3285
  %3350 = vst [vmem:[%s12 + $0x128] sm:$0xff] %v3286
  %3351 = vst [vmem:[%s12 + $0x130] sm:$0xff] %v3287
  %3352 = vst [vmem:[%s12 + $0x138] sm:$0xff] %v3288
  %3353 = vst [vmem:[%s12 + $0x140] sm:$0xff] %v3289
  %3354 = vst [vmem:[%s12 + $0x148] sm:$0xff] %v3290
  %3355 = vst [vmem:[%s12 + $0x150] sm:$0xff] %v3291
  %3356 = vst [vmem:[%s12 + $0x158] sm:$0xff] %v3292
  %3357 = vst [vmem:[%s12 + $0x160] sm:$0xff] %v3293
  %3358 = vst [vmem:[%s12 + $0x168] sm:$0xff] %v3294
  %3359 = vst [vmem:[%s12 + $0x170] sm:$0xff] %v3295
  %3360 = vst [vmem:[%s12 + $0x178] sm:$0xff] %v3296
  %3361 = vst [vmem:[%s12 + $0x180] sm:$0xff] %v3297
  %3362 = vst [vmem:[%s12 + $0x188] sm:$0xff] %v3298
  %3363 = vst [vmem:[%s12 + $0x190] sm:$0xff] %v3299
  %3364 = vst [vmem:[%s12 + $0x198] sm:$0xff] %v3300
  %3365 = vst [vmem:[%s12 + $0x1a0] sm:$0xff] %v3301
  %3366 = vst [vmem:[%s12 + $0x1a8] sm:$0xff] %v3302
  %3367 = vst [vmem:[%s12 + $0x1b0] sm:$0xff] %v3303
  %3368 = vst [vmem:[%s12 + $0x1b8] sm:$0xff] %v3304
  %3369 = vst [vmem:[%s12 + $0x1c0] sm:$0xff] %v3305
  %3370 = vst [vmem:[%s12 + $0x1c8] sm:$0xff] %v3306
  %3371 = vst [vmem:[%s12 + $0x1d0] sm:$0xff] %v3307
  %3372 = vst [vmem:[%s12 + $0x1d8] sm:$0xff] %v3308
  %3373 = vst [vmem:[%s12 + $0x1e0] sm:$0xff] %v3309
  %3374 = vst [vmem:[%s12 + $0x1e8] sm:$0xff] %v3310
  %3375 = vst [vmem:[%s12 + $0x1f0] sm:$0xff] %v3311
  %3376 = vst [vmem:[%s12 + $0x1f8] sm:$0xff] %v3312
  // Predicated region
  $region50: #{forward.1} parent=0 // pred_check
    _
  $region51: #{forward.1} parent=0 // pred_check_branch
    %3378 = sbr.rel (0) target = $region53
  $region52: #{forward.1} parent=0 // pred_region
    _
  $region53: #{forward.1} parent=0 // pred_fallthru
    _
  // Predicated region
  $region54: #{forward.1} parent=0 // pred_check
    _
  $region55: #{forward.1} parent=0 // pred_check_branch
    %3380 = sbr.rel (0) target = $region57
  $region56: #{forward.1} parent=0 // pred_region
    _
  $region57: #{forward.1} parent=0 // pred_fallthru
    _

</llo_original>
